<compile_context>
chip_gen: v7x
topology: tpu7x:2x2x1
jax: 0.10.0
libtpu: 0.0.40
codegen_flags: <defaults>
</compile_context>

<pallas_src>
import functools

import jax
import jax.numpy as jnp
from jax import lax
from jax.experimental import pallas as pl
from jax.experimental.pallas import tpu as pltpu


def _convlstm_kernel(x_ref, h0_ref, c0_ref, w_ref, mask_ref,
                     ofeat_ref, cout_ref,
                     comb_scr, c_scr,
                     *, hidden_dim, in_dim, kh, kw, W, time_block, compute_dtype):
    tb = pl.program_id(1)                    # time-block index (recurrent axis)

    Ch = hidden_dim
    Cin = in_dim
    Ch4 = 4 * Ch
    NB = comb_scr.shape[1]                   # flattened bb*H*W (lane axis)
    ph, pw = kh // 2, kw // 2
    num_taps = kh * kw

    # ---- init carries at the first time block of this batch block -----------
    @pl.when(tb == 0)
    def _():
        comb_scr[...] = jnp.zeros_like(comb_scr)       # zero pad rows once
        comb_scr[0:Ch, :] = h0_ref[...]                # h carry lives in rows [0, Ch)
        c_scr[...] = c0_ref[...]

    for tt in range(time_block):             # unrolled, static trip count
        # x_t lands in rows [Ch, Ch+Cin) (8-aligned offset since Ch == 8).
        comb_scr[Ch:Ch + Cin, :] = x_ref[tt]

        # One MXU matmul for ALL kh*kw taps at once:
        #   p[k*4Ch + q, n] = sum_c w[tap k, out q, in c] * comb[c, n]
        p = jnp.dot(w_ref[...], comb_scr[...],
                    preferred_element_type=jnp.float32)        # (kh*kw*4Ch, NB) f32

        # Shift each tap's partial product to its output position with a lane
        # roll (dot over channels commutes with the lane shift), mask the
        # out-of-bounds taps and accumulate in f32.
        gates = None
        for k in range(num_taps):
            dy = k // kw - ph
            dx = k % kw - pw
            pk = p[k * Ch4:(k + 1) * Ch4, :]           # 32-aligned sublane slice
            shift = (-(dy * W + dx)) % NB
            if shift:
                pk = pltpu.roll(pk, shift, axis=1)     # XLU, f32
            if (dy, dx) != (0, 0):
                pk = pk * mask_ref[k:k + 1, :]         # zero invalid positions
            gates = pk if gates is None else gates + pk

        # Gate math, channels on sublanes (Ch=8 rows), N on lanes. All f32.
        i = jax.nn.sigmoid(gates[0 * Ch:1 * Ch, :])
        f = jax.nn.sigmoid(gates[1 * Ch:2 * Ch, :])
        o = jax.nn.sigmoid(gates[2 * Ch:3 * Ch, :])
        g = jnp.tanh(gates[3 * Ch:4 * Ch, :])

        c_next = f * c_scr[...] + i * g                # (Ch, NB) f32
        h_next = o * jnp.tanh(c_next)                  # (Ch, NB) f32

        # Carry updates + lane-dense output store.
        c_scr[...] = c_next
        comb_scr[0:Ch, :] = h_next.astype(compute_dtype)
        ofeat_ref[tt] = h_next

        if tt == time_block - 1:
            @pl.when(tb == pl.num_programs(1) - 1)
            def _():
                cout_ref[...] = c_next                 # cell state written once


def upsample_lstm_pallas(x, weight, pool_size, h0=None, c0=None, *,
                         compute_dtype=jnp.bfloat16, batch_block=None,
                         time_block=None, vmem_limit_bytes=None,
                         batch_dim_semantics="parallel"):
    """Pallas implementation of UpSampleLSTM.forward (channels-last).

    x:      (B, T, H, W, Cin) float32
    weight: (kh, kw, Cin+Ch, 4*Ch) float32   (HWIO, no bias — matches module)
    Returns (output_feature_upsampled, c_upsampled):
      output_feature: (B, T, H*ph, W*pw, Ch)
      c:              (B, H*ph, W*pw, Ch)

    compute_dtype: dtype of the MXU matmul operands and of the recurrent
      activation scratch (bf16 works on v5e/v6e/v7x; all gate/state math and
      the cell state stay float32).
    batch_block: batch elements per grid block (default B = single block).
      batch_block*H*W must be a multiple of 128 unless batch_block == B so the
      output stores stay lane-dense. On v7x, pass
      batch_dim_semantics=pltpu.CORE_PARALLEL with a batch split only if each
      core's block keeps N a >=128 multiple.
    time_block: timesteps per grid step (unrolled in-kernel); default = the
      largest divisor of T that is <= 8.
    vmem_limit_bytes: optional explicit VMEM budget (re-derive for v7x 64 MiB).
    """
    f32 = jnp.float32
    B, T, H, W, Cin = x.shape
    kh, kw, C, Ch4 = weight.shape
    Ch = Ch4 // 4
    assert C == Cin + Ch, "weight input channels must equal input_dim + hidden_dim"
    assert kh % 2 == 1 and kw % 2 == 1, \
        "odd kernel sizes only (PyTorch padding = kernel_size // 2 semantics)"
    ph_k, pw_k = kh // 2, kw // 2

    if batch_block is None:
        batch_block = B
    assert B % batch_block == 0
    bb = batch_block
    nb = B // bb
    NB = bb * H * W
    Ntot = B * H * W
    assert bb == B or NB % 128 == 0, (
        "batch_block*H*W must be a multiple of 128 (lane-dense output stores) "
        "unless batch_block == B")

    if time_block is None:
        time_block = next(tt for tt in range(min(T, 8), 0, -1) if T % tt == 0)
    Tt = time_block
    assert T % Tt == 0, "time_block must divide T"
    ntb = T // Tt

    C_pad = ((C + 7) // 8) * 8            # pad combined channels to a sublane multiple

    # ---- wrapper-side layout prep (one-time casts, no per-step work) --------
    if h0 is None:
        h0 = jnp.zeros((B, H, W, Ch), f32)
    if c0 is None:
        c0 = jnp.zeros((B, H, W, Ch), f32)

    # (B,T,H,W,Cin) -> (T, Cin, B*H*W): channels on sublanes, b*H*W on lanes.
    x_k = jnp.transpose(x.astype(compute_dtype), (1, 4, 0, 2, 3)).reshape(T, Cin, Ntot)
    h0_k = jnp.transpose(h0.astype(compute_dtype), (3, 0, 1, 2)).reshape(Ch, Ntot)
    c0_k = jnp.transpose(c0.astype(f32), (3, 0, 1, 2)).reshape(Ch, Ntot)

    # Stacked per-tap weights: rows = tap-major x out-channel, cols = combined
    # input channel in the kernel's comb row order [h (Ch), x (Cin), zero pad].
    w = weight.astype(f32)
    parts = [w[:, :, Cin:, :], w[:, :, :Cin, :]]
    if C_pad > C:
        parts.append(jnp.zeros((kh, kw, C_pad - C, Ch4), f32))
    w_rows = jnp.concatenate(parts, axis=2)                       # (kh,kw,C_pad,4Ch)
    w_all = jnp.transpose(w_rows, (0, 1, 3, 2)).reshape(kh * kw * Ch4, C_pad)
    w_all = w_all.astype(compute_dtype)

    # Per-tap validity masks over the flattened (b, y, x) lane axis.
    yy = jnp.arange(H)[:, None]
    xx = jnp.arange(W)[None, :]
    mask_rows = []
    for ky in range(kh):
        for kx in range(kw):
            dy, dx = ky - ph_k, kx - pw_k
            valid = ((yy + dy >= 0) & (yy + dy < H) &
                     (xx + dx >= 0) & (xx + dx < W)).astype(f32)   # (H, W)
            mask_rows.append(jnp.tile(valid.reshape(-1), (B,)))    # (B*H*W,)
    masks = jnp.stack(mask_rows, axis=0)                           # (kh*kw, B*H*W)

    kernel = functools.partial(_convlstm_kernel, hidden_dim=Ch, in_dim=Cin,
                               kh=kh, kw=kw, W=W, time_block=Tt,
                               compute_dtype=compute_dtype)

    ofeat_raw, cout_raw = pl.pallas_call(
        kernel,
        out_shape=(jax.ShapeDtypeStruct((T, Ch, Ntot), f32),
                   jax.ShapeDtypeStruct((Ch, Ntot), f32)),
        grid_spec=pltpu.PrefetchScalarGridSpec(
            num_scalar_prefetch=0,
            grid=(nb, ntb),                     # time blocks minor (recurrent)
            in_specs=[
                pl.BlockSpec((Tt, Cin, NB),          lambda b, t: (t, 0, b)),
                pl.BlockSpec((Ch, NB),               lambda b, t: (0, b)),
                pl.BlockSpec((Ch, NB),               lambda b, t: (0, b)),
                pl.BlockSpec((kh * kw * Ch4, C_pad), lambda b, t: (0, 0)),
                pl.BlockSpec((kh * kw, NB),          lambda b, t: (0, b)),
            ],
            out_specs=[
                pl.BlockSpec((Tt, Ch, NB), lambda b, t: (t, 0, b)),
                pl.BlockSpec((Ch, NB),     lambda b, t: (0, b)),
            ],
            scratch_shapes=[
                pltpu.VMEM((C_pad, NB), compute_dtype),   # [h | x | 0] activation carry
                pltpu.VMEM((Ch, NB), f32),                # cell-state carry
            ]),
        compiler_params=pltpu.CompilerParams(
            dimension_semantics=(batch_dim_semantics, "arbitrary"),
            vmem_limit_bytes=vmem_limit_bytes),
    )(x_k, h0_k, c0_k, w_all, masks)

    # (T, Ch, B*H*W) -> (B, T, H, W, Ch) permute + nearest upsample; under jit
    # these fuse into a single XLA copy pass (pure data movement).
    ph_up, pw_up = pool_size
    ofeat = jnp.transpose(ofeat_raw.reshape(T, Ch, B, H, W), (2, 0, 3, 4, 1))
    c_last = jnp.transpose(cout_raw.reshape(Ch, B, H, W), (1, 2, 3, 0))
    o_up = jnp.repeat(jnp.repeat(ofeat, ph_up, axis=2), pw_up, axis=3)
    c_up = jnp.repeat(jnp.repeat(c_last, ph_up, axis=1), pw_up, axis=2)
    return o_up, c_up


def upsample_lstm_ref(x, weight, pool_size, h0=None, c0=None):
    """Pure-JAX reference (mirrors the PyTorch forward, channels-last)."""
    B, T, H, W, Cin = x.shape
    kh, kw, C, Ch4 = weight.shape
    Ch = Ch4 // 4
    h = jnp.zeros((B, H, W, Ch), jnp.float32) if h0 is None else h0
    c = jnp.zeros((B, H, W, Ch), jnp.float32) if c0 is None else c0
    dn = lax.conv_dimension_numbers((B, H, W, C), weight.shape,
                                    ('NHWC', 'HWIO', 'NHWC'))
    outs = []
    for t in range(T):
        comb = jnp.concatenate([x[:, t], h], axis=-1)
        gates = lax.conv_general_dilated(comb, weight, (1, 1), 'SAME',
                                         dimension_numbers=dn)
        cc_i, cc_f, cc_o, cc_g = jnp.split(gates, 4, axis=-1)
        i = jax.nn.sigmoid(cc_i)
        f = jax.nn.sigmoid(cc_f)
        o = jax.nn.sigmoid(cc_o)
        g = jnp.tanh(cc_g)
        c = f * c + i * g
        h = o * jnp.tanh(c)
        outs.append(h)
    ofeat = jnp.stack(outs, axis=1)
    ph, pw = pool_size
    c_up = jnp.repeat(jnp.repeat(c, ph, axis=1), pw, axis=2)
    o_up = jnp.repeat(jnp.repeat(ofeat, ph, axis=2), pw, axis=3)
    return o_up, c_up


if __name__ == "__main__":
    # Small shapes consistent with the module's forward:
    # batch=2, time=4, input_dim=4, hidden_dim=8, spatial=8x8,
    # kernel_size=(3,3), pool_size=(2,2), bias=False. (B*H*W = 128 lanes.)
    B, T, H, W = 2, 4, 8, 8
    Cin, Ch = 4, 8
    kh, kw = 3, 3
    pool_size = (2, 2)

    key = jax.random.PRNGKey(0)
    kx, kw_key = jax.random.split(key)
    x = jax.random.normal(kx, (B, T, H, W, Cin), dtype=jnp.float32)
    # Conv weight stored directly in HWIO layout (PyTorch: (4*Ch, Cin+Ch, kh, kw)).
    weight = jax.random.normal(kw_key, (kh, kw, Cin + Ch, 4 * Ch),
                               dtype=jnp.float32) * 0.1

    run_f32 = jax.jit(lambda a, w: upsample_lstm_pallas(
        a, w, pool_size, compute_dtype=jnp.float32))
    run_bf16 = jax.jit(lambda a, w: upsample_lstm_pallas(
        a, w, pool_size, compute_dtype=jnp.bfloat16))

    out_f32, c_f32 = run_f32(x, weight)
    jax.block_until_ready(out_f32)
    jax.block_until_ready(c_f32)

    out_bf16, c_bf16 = run_bf16(x, weight)
    jax.block_until_ready(out_bf16)
    jax.block_until_ready(c_bf16)

    ref_feat, ref_c = upsample_lstm_ref(x, weight, pool_size)

    assert out_f32.shape == (B, T, H * pool_size[0], W * pool_size[1], Ch)
    assert c_f32.shape == (B, H * pool_size[0], W * pool_size[1], Ch)

    # f32 MXU-operand path: tight check against the lax.conv reference.
    assert jnp.allclose(out_f32, ref_feat, atol=2e-3, rtol=2e-3)
    assert jnp.allclose(c_f32, ref_c, atol=2e-3, rtol=2e-3)
    # bf16-operand / f32-accumulation path: looser tolerance (h requantised
    # each step through the matmul; validate for long T before production use).
    assert jnp.allclose(out_bf16, ref_feat, atol=5e-2, rtol=5e-2)
    assert jnp.allclose(c_bf16, ref_c, atol=5e-2, rtol=5e-2)

    print("KERNEL_OK")
</pallas_src>

<mosaic_0001>
module attributes {stable_mosaic.version = 11 : i64} {
  func.func @_convlstm_kernel(%arg0: i32, %arg1: i32, %arg2: memref<4x4x128xf32, #tpu.memory_space<vmem>>, %arg3: memref<8x128xf32, #tpu.memory_space<vmem>>, %arg4: memref<8x128xf32, #tpu.memory_space<vmem>>, %arg5: memref<288x16xf32, #tpu.memory_space<vmem>>, %arg6: memref<9x128xf32, #tpu.memory_space<vmem>>, %arg7: memref<4x8x128xf32, #tpu.memory_space<vmem>>, %arg8: memref<8x128xf32, #tpu.memory_space<vmem>>, %arg9: memref<16x128xf32, #tpu.memory_space<vmem>>, %arg10: memref<8x128xf32, #tpu.memory_space<vmem>>) attributes {dimension_semantics = [#tpu.dimension_semantics<parallel>, #tpu.dimension_semantics<arbitrary>], iteration_bounds = array<i64: 1, 1>, scalar_prefetch = 0 : i64, scratch_operands = 2 : i64, tpu.core_type = #tpu.core_type<tc>, window_params = [{transform_indices = @transform_0, window_bounds = array<i64: 4, 4, 128>}, {transform_indices = @transform_1, window_bounds = array<i64: 8, 128>}, {transform_indices = @transform_2, window_bounds = array<i64: 8, 128>}, {pipeline_mode = #tpu.pipeline_mode<synchronous>, transform_indices = @transform_3, window_bounds = array<i64: 288, 16>}, {transform_indices = @transform_4, window_bounds = array<i64: 9, 128>}, {transform_indices = @transform_5, window_bounds = array<i64: 4, 8, 128>}, {transform_indices = @transform_6, window_bounds = array<i64: 8, 128>}]} {
    %c0_i32 = arith.constant 0 : i32
    %0 = arith.cmpi eq, %arg1, %c0_i32 : i32
    %1 = arith.extui %0 : i1 to i32
    %c0_i32_0 = arith.constant 0 : i32
    %2 = arith.cmpi ne, %1, %c0_i32_0 : i32
    scf.if %2 {
      %cst_170 = arith.constant 0.000000e+00 : f32
      %350 = vector.broadcast %cst_170 : f32 to vector<16x128xf32>
      %c0_171 = arith.constant 0 : index
      %c0_172 = arith.constant 0 : index
      %351 = vector.load %arg9[%c0_171, %c0_172] : memref<16x128xf32, #tpu.memory_space<vmem>>, vector<16x128xf32>
      tpu.vector_store %arg9[%c0_171, %c0_172], %350 {strides = array<i32>} : memref<16x128xf32, #tpu.memory_space<vmem>>, vector<16x128xf32>,
      %c0_173 = arith.constant 0 : index
      %c0_174 = arith.constant 0 : index
      %352 = vector.load %arg3[%c0_173, %c0_174] : memref<8x128xf32, #tpu.memory_space<vmem>>, vector<8x128xf32>
      %c0_175 = arith.constant 0 : index
      %c0_176 = arith.constant 0 : index
      %353 = vector.load %arg9[%c0_175, %c0_176] : memref<16x128xf32, #tpu.memory_space<vmem>>, vector<8x128xf32>
      tpu.vector_store %arg9[%c0_175, %c0_176], %352 {strides = array<i32>} : memref<16x128xf32, #tpu.memory_space<vmem>>, vector<8x128xf32>,
      %c0_177 = arith.constant 0 : index
      %c0_178 = arith.constant 0 : index
      %354 = vector.load %arg4[%c0_177, %c0_178] : memref<8x128xf32, #tpu.memory_space<vmem>>, vector<8x128xf32>
      %c0_179 = arith.constant 0 : index
      %c0_180 = arith.constant 0 : index
      %355 = vector.load %arg10[%c0_179, %c0_180] : memref<8x128xf32, #tpu.memory_space<vmem>>, vector<8x128xf32>
      tpu.vector_store %arg10[%c0_179, %c0_180], %354 {strides = array<i32>} : memref<8x128xf32, #tpu.memory_space<vmem>>, vector<8x128xf32>,
    } else {
    }
    %c0 = arith.constant 0 : index
    %c0_1 = arith.constant 0 : index
    %c0_2 = arith.constant 0 : index
    %3 = vector.load %arg2[%c0, %c0_1, %c0_2] : memref<4x4x128xf32, #tpu.memory_space<vmem>>, vector<1x4x128xf32>
    %4 = vector.shape_cast %3 : vector<1x4x128xf32> to vector<4x128xf32>
    %c8 = arith.constant 8 : index
    %c0_3 = arith.constant 0 : index
    %5 = vector.load %arg9[%c8, %c0_3] : memref<16x128xf32, #tpu.memory_space<vmem>>, vector<4x128xf32>
    tpu.vector_store %arg9[%c8, %c0_3], %4 {strides = array<i32>} : memref<16x128xf32, #tpu.memory_space<vmem>>, vector<4x128xf32>,
    %c0_4 = arith.constant 0 : index
    %c0_5 = arith.constant 0 : index
    %6 = vector.load %arg5[%c0_4, %c0_5] : memref<288x16xf32, #tpu.memory_space<vmem>>, vector<288x16xf32>
    %c0_6 = arith.constant 0 : index
    %c0_7 = arith.constant 0 : index
    %7 = vector.load %arg9[%c0_6, %c0_7] : memref<16x128xf32, #tpu.memory_space<vmem>>, vector<16x128xf32>
    %cst = arith.constant dense<0.000000e+00> : vector<288x128xf32>
    %8 = tpu.matmul %6, %7, %cst {dimension_numbers = #tpu.dot_dimension_numbers<[1], [0], [0], [1], [0, 0, 1, 1], [], []>} : vector<288x16xf32>, vector<16x128xf32>, vector<288x128xf32> -> vector<288x128xf32>
    %9 = vector.extract_strided_slice %8 {offsets = [0, 0], sizes = [32, 128], strides = [1, 1]} : vector<288x128xf32> to vector<32x128xf32>
    %c9_i32 = arith.constant 9 : i32
    %10 = tpu.dynamic_rotate %9 by %c9_i32 dim 1 : vector<32x128xf32>, i32 -> vector<32x128xf32>
    %c0_8 = arith.constant 0 : index
    %c0_9 = arith.constant 0 : index
    %11 = vector.load %arg6[%c0_8, %c0_9] : memref<9x128xf32, #tpu.memory_space<vmem>>, vector<1x128xf32>
    %12 = vector.broadcast %11 : vector<1x128xf32> to vector<32x128xf32>
    %13 = arith.mulf %10, %12 : vector<32x128xf32>
    %14 = vector.extract_strided_slice %8 {offsets = [32, 0], sizes = [32, 128], strides = [1, 1]} : vector<288x128xf32> to vector<32x128xf32>
    %c8_i32 = arith.constant 8 : i32
    %15 = tpu.dynamic_rotate %14 by %c8_i32 dim 1 : vector<32x128xf32>, i32 -> vector<32x128xf32>
    %c1 = arith.constant 1 : index
    %c0_10 = arith.constant 0 : index
    %16 = vector.load %arg6[%c1, %c0_10] : memref<9x128xf32, #tpu.memory_space<vmem>>, vector<1x128xf32>
    %17 = vector.broadcast %16 : vector<1x128xf32> to vector<32x128xf32>
    %18 = arith.mulf %15, %17 : vector<32x128xf32>
    %19 = arith.addf %13, %18 : vector<32x128xf32>
    %20 = vector.extract_strided_slice %8 {offsets = [64, 0], sizes = [32, 128], strides = [1, 1]} : vector<288x128xf32> to vector<32x128xf32>
    %c7_i32 = arith.constant 7 : i32
    %21 = tpu.dynamic_rotate %20 by %c7_i32 dim 1 : vector<32x128xf32>, i32 -> vector<32x128xf32>
    %c2 = arith.constant 2 : index
    %c0_11 = arith.constant 0 : index
    %22 = vector.load %arg6[%c2, %c0_11] : memref<9x128xf32, #tpu.memory_space<vmem>>, vector<1x128xf32>
    %23 = vector.broadcast %22 : vector<1x128xf32> to vector<32x128xf32>
    %24 = arith.mulf %21, %23 : vector<32x128xf32>
    %25 = arith.addf %19, %24 : vector<32x128xf32>
    %26 = vector.extract_strided_slice %8 {offsets = [96, 0], sizes = [32, 128], strides = [1, 1]} : vector<288x128xf32> to vector<32x128xf32>
    %c1_i32 = arith.constant 1 : i32
    %27 = tpu.dynamic_rotate %26 by %c1_i32 dim 1 : vector<32x128xf32>, i32 -> vector<32x128xf32>
    %c3 = arith.constant 3 : index
    %c0_12 = arith.constant 0 : index
    %28 = vector.load %arg6[%c3, %c0_12] : memref<9x128xf32, #tpu.memory_space<vmem>>, vector<1x128xf32>
    %29 = vector.broadcast %28 : vector<1x128xf32> to vector<32x128xf32>
    %30 = arith.mulf %27, %29 : vector<32x128xf32>
    %31 = arith.addf %25, %30 : vector<32x128xf32>
    %32 = vector.extract_strided_slice %8 {offsets = [128, 0], sizes = [32, 128], strides = [1, 1]} : vector<288x128xf32> to vector<32x128xf32>
    %33 = arith.addf %31, %32 : vector<32x128xf32>
    %34 = vector.extract_strided_slice %8 {offsets = [160, 0], sizes = [32, 128], strides = [1, 1]} : vector<288x128xf32> to vector<32x128xf32>
    %c127_i32 = arith.constant 127 : i32
    %35 = tpu.dynamic_rotate %34 by %c127_i32 dim 1 : vector<32x128xf32>, i32 -> vector<32x128xf32>
    %c5 = arith.constant 5 : index
    %c0_13 = arith.constant 0 : index
    %36 = vector.load %arg6[%c5, %c0_13] : memref<9x128xf32, #tpu.memory_space<vmem>>, vector<1x128xf32>
    %37 = vector.broadcast %36 : vector<1x128xf32> to vector<32x128xf32>
    %38 = arith.mulf %35, %37 : vector<32x128xf32>
    %39 = arith.addf %33, %38 : vector<32x128xf32>
    %40 = vector.extract_strided_slice %8 {offsets = [192, 0], sizes = [32, 128], strides = [1, 1]} : vector<288x128xf32> to vector<32x128xf32>
    %c121_i32 = arith.constant 121 : i32
    %41 = tpu.dynamic_rotate %40 by %c121_i32 dim 1 : vector<32x128xf32>, i32 -> vector<32x128xf32>
    %c6 = arith.constant 6 : index
    %c0_14 = arith.constant 0 : index
    %42 = vector.load %arg6[%c6, %c0_14] : memref<9x128xf32, #tpu.memory_space<vmem>>, vector<1x128xf32>
    %43 = vector.broadcast %42 : vector<1x128xf32> to vector<32x128xf32>
    %44 = arith.mulf %41, %43 : vector<32x128xf32>
    %45 = arith.addf %39, %44 : vector<32x128xf32>
    %46 = vector.extract_strided_slice %8 {offsets = [224, 0], sizes = [32, 128], strides = [1, 1]} : vector<288x128xf32> to vector<32x128xf32>
    %c120_i32 = arith.constant 120 : i32
    %47 = tpu.dynamic_rotate %46 by %c120_i32 dim 1 : vector<32x128xf32>, i32 -> vector<32x128xf32>
    %c7 = arith.constant 7 : index
    %c0_15 = arith.constant 0 : index
    %48 = vector.load %arg6[%c7, %c0_15] : memref<9x128xf32, #tpu.memory_space<vmem>>, vector<1x128xf32>
    %49 = vector.broadcast %48 : vector<1x128xf32> to vector<32x128xf32>
    %50 = arith.mulf %47, %49 : vector<32x128xf32>
    %51 = arith.addf %45, %50 : vector<32x128xf32>
    %52 = vector.extract_strided_slice %8 {offsets = [256, 0], sizes = [32, 128], strides = [1, 1]} : vector<288x128xf32> to vector<32x128xf32>
    %c119_i32 = arith.constant 119 : i32
    %53 = tpu.dynamic_rotate %52 by %c119_i32 dim 1 : vector<32x128xf32>, i32 -> vector<32x128xf32>
    %c8_16 = arith.constant 8 : index
    %c0_17 = arith.constant 0 : index
    %54 = vector.load %arg6[%c8_16, %c0_17] : memref<9x128xf32, #tpu.memory_space<vmem>>, vector<1x128xf32>
    %55 = vector.broadcast %54 : vector<1x128xf32> to vector<32x128xf32>
    %56 = arith.mulf %53, %55 : vector<32x128xf32>
    %57 = arith.addf %51, %56 : vector<32x128xf32>
    %58 = vector.extract_strided_slice %57 {offsets = [0, 0], sizes = [8, 128], strides = [1, 1]} : vector<32x128xf32> to vector<8x128xf32>
    %59 = arith.negf %58 : vector<8x128xf32>
    %60 = math.exp %59 : vector<8x128xf32>
    %cst_18 = arith.constant 1.000000e+00 : f32
    %61 = vector.broadcast %cst_18 : f32 to vector<8x128xf32>
    %62 = arith.addf %61, %60 : vector<8x128xf32>
    %63 = arith.divf %61, %62 : vector<8x128xf32>
    %64 = vector.extract_strided_slice %57 {offsets = [8, 0], sizes = [8, 128], strides = [1, 1]} : vector<32x128xf32> to vector<8x128xf32>
    %65 = arith.negf %64 : vector<8x128xf32>
    %66 = math.exp %65 : vector<8x128xf32>
    %cst_19 = arith.constant 1.000000e+00 : f32
    %67 = vector.broadcast %cst_19 : f32 to vector<8x128xf32>
    %68 = arith.addf %67, %66 : vector<8x128xf32>
    %69 = arith.divf %67, %68 : vector<8x128xf32>
    %70 = vector.extract_strided_slice %57 {offsets = [16, 0], sizes = [8, 128], strides = [1, 1]} : vector<32x128xf32> to vector<8x128xf32>
    %71 = arith.negf %70 : vector<8x128xf32>
    %72 = math.exp %71 : vector<8x128xf32>
    %cst_20 = arith.constant 1.000000e+00 : f32
    %73 = vector.broadcast %cst_20 : f32 to vector<8x128xf32>
    %74 = arith.addf %73, %72 : vector<8x128xf32>
    %75 = arith.divf %73, %74 : vector<8x128xf32>
    %76 = vector.extract_strided_slice %57 {offsets = [24, 0], sizes = [8, 128], strides = [1, 1]} : vector<32x128xf32> to vector<8x128xf32>
    %77 = math.tanh %76 : vector<8x128xf32>
    %c0_21 = arith.constant 0 : index
    %c0_22 = arith.constant 0 : index
    %78 = vector.load %arg10[%c0_21, %c0_22] : memref<8x128xf32, #tpu.memory_space<vmem>>, vector<8x128xf32>
    %79 = arith.mulf %69, %78 : vector<8x128xf32>
    %80 = arith.mulf %63, %77 : vector<8x128xf32>
    %81 = arith.addf %79, %80 : vector<8x128xf32>
    %82 = math.tanh %81 : vector<8x128xf32>
    %83 = arith.mulf %75, %82 : vector<8x128xf32>
    %c0_23 = arith.constant 0 : index
    %c0_24 = arith.constant 0 : index
    %84 = vector.load %arg10[%c0_23, %c0_24] : memref<8x128xf32, #tpu.memory_space<vmem>>, vector<8x128xf32>
    tpu.vector_store %arg10[%c0_23, %c0_24], %81 {strides = array<i32>} : memref<8x128xf32, #tpu.memory_space<vmem>>, vector<8x128xf32>,
    %c0_25 = arith.constant 0 : index
    %c0_26 = arith.constant 0 : index
    %85 = vector.load %arg9[%c0_25, %c0_26] : memref<16x128xf32, #tpu.memory_space<vmem>>, vector<8x128xf32>
    tpu.vector_store %arg9[%c0_25, %c0_26], %83 {strides = array<i32>} : memref<16x128xf32, #tpu.memory_space<vmem>>, vector<8x128xf32>,
    %c0_27 = arith.constant 0 : index
    %c0_28 = arith.constant 0 : index
    %c0_29 = arith.constant 0 : index
    %86 = vector.load %arg7[%c0_27, %c0_28, %c0_29] : memref<4x8x128xf32, #tpu.memory_space<vmem>>, vector<1x8x128xf32>
    %87 = vector.shape_cast %86 : vector<1x8x128xf32> to vector<8x128xf32>
    %88 = vector.shape_cast %83 : vector<8x128xf32> to vector<1x8x128xf32>
    tpu.vector_store %arg7[%c0_27, %c0_28, %c0_29], %88 {strides = array<i32>} : memref<4x8x128xf32, #tpu.memory_space<vmem>>, vector<1x8x128xf32>,
    %c1_30 = arith.constant 1 : index
    %c0_31 = arith.constant 0 : index
    %c0_32 = arith.constant 0 : index
    %89 = vector.load %arg2[%c1_30, %c0_31, %c0_32] : memref<4x4x128xf32, #tpu.memory_space<vmem>>, vector<1x4x128xf32>
    %90 = vector.shape_cast %89 : vector<1x4x128xf32> to vector<4x128xf32>
    %c8_33 = arith.constant 8 : index
    %c0_34 = arith.constant 0 : index
    %91 = vector.load %arg9[%c8_33, %c0_34] : memref<16x128xf32, #tpu.memory_space<vmem>>, vector<4x128xf32>
    tpu.vector_store %arg9[%c8_33, %c0_34], %90 {strides = array<i32>} : memref<16x128xf32, #tpu.memory_space<vmem>>, vector<4x128xf32>,
    %c0_35 = arith.constant 0 : index
    %c0_36 = arith.constant 0 : index
    %92 = vector.load %arg5[%c0_35, %c0_36] : memref<288x16xf32, #tpu.memory_space<vmem>>, vector<288x16xf32>
    %c0_37 = arith.constant 0 : index
    %c0_38 = arith.constant 0 : index
    %93 = vector.load %arg9[%c0_37, %c0_38] : memref<16x128xf32, #tpu.memory_space<vmem>>, vector<16x128xf32>
    %cst_39 = arith.constant dense<0.000000e+00> : vector<288x128xf32>
    %94 = tpu.matmul %92, %93, %cst_39 {dimension_numbers = #tpu.dot_dimension_numbers<[1], [0], [0], [1], [0, 0, 1, 1], [], []>} : vector<288x16xf32>, vector<16x128xf32>, vector<288x128xf32> -> vector<288x128xf32>
    %95 = vector.extract_strided_slice %94 {offsets = [0, 0], sizes = [32, 128], strides = [1, 1]} : vector<288x128xf32> to vector<32x128xf32>
    %c9_i32_40 = arith.constant 9 : i32
    %96 = tpu.dynamic_rotate %95 by %c9_i32_40 dim 1 : vector<32x128xf32>, i32 -> vector<32x128xf32>
    %c0_41 = arith.constant 0 : index
    %c0_42 = arith.constant 0 : index
    %97 = vector.load %arg6[%c0_41, %c0_42] : memref<9x128xf32, #tpu.memory_space<vmem>>, vector<1x128xf32>
    %98 = vector.broadcast %97 : vector<1x128xf32> to vector<32x128xf32>
    %99 = arith.mulf %96, %98 : vector<32x128xf32>
    %100 = vector.extract_strided_slice %94 {offsets = [32, 0], sizes = [32, 128], strides = [1, 1]} : vector<288x128xf32> to vector<32x128xf32>
    %c8_i32_43 = arith.constant 8 : i32
    %101 = tpu.dynamic_rotate %100 by %c8_i32_43 dim 1 : vector<32x128xf32>, i32 -> vector<32x128xf32>
    %c1_44 = arith.constant 1 : index
    %c0_45 = arith.constant 0 : index
    %102 = vector.load %arg6[%c1_44, %c0_45] : memref<9x128xf32, #tpu.memory_space<vmem>>, vector<1x128xf32>
    %103 = vector.broadcast %102 : vector<1x128xf32> to vector<32x128xf32>
    %104 = arith.mulf %101, %103 : vector<32x128xf32>
    %105 = arith.addf %99, %104 : vector<32x128xf32>
    %106 = vector.extract_strided_slice %94 {offsets = [64, 0], sizes = [32, 128], strides = [1, 1]} : vector<288x128xf32> to vector<32x128xf32>
    %c7_i32_46 = arith.constant 7 : i32
    %107 = tpu.dynamic_rotate %106 by %c7_i32_46 dim 1 : vector<32x128xf32>, i32 -> vector<32x128xf32>
    %c2_47 = arith.constant 2 : index
    %c0_48 = arith.constant 0 : index
    %108 = vector.load %arg6[%c2_47, %c0_48] : memref<9x128xf32, #tpu.memory_space<vmem>>, vector<1x128xf32>
    %109 = vector.broadcast %108 : vector<1x128xf32> to vector<32x128xf32>
    %110 = arith.mulf %107, %109 : vector<32x128xf32>
    %111 = arith.addf %105, %110 : vector<32x128xf32>
    %112 = vector.extract_strided_slice %94 {offsets = [96, 0], sizes = [32, 128], strides = [1, 1]} : vector<288x128xf32> to vector<32x128xf32>
    %c1_i32_49 = arith.constant 1 : i32
    %113 = tpu.dynamic_rotate %112 by %c1_i32_49 dim 1 : vector<32x128xf32>, i32 -> vector<32x128xf32>
    %c3_50 = arith.constant 3 : index
    %c0_51 = arith.constant 0 : index
    %114 = vector.load %arg6[%c3_50, %c0_51] : memref<9x128xf32, #tpu.memory_space<vmem>>, vector<1x128xf32>
    %115 = vector.broadcast %114 : vector<1x128xf32> to vector<32x128xf32>
    %116 = arith.mulf %113, %115 : vector<32x128xf32>
    %117 = arith.addf %111, %116 : vector<32x128xf32>
    %118 = vector.extract_strided_slice %94 {offsets = [128, 0], sizes = [32, 128], strides = [1, 1]} : vector<288x128xf32> to vector<32x128xf32>
    %119 = arith.addf %117, %118 : vector<32x128xf32>
    %120 = vector.extract_strided_slice %94 {offsets = [160, 0], sizes = [32, 128], strides = [1, 1]} : vector<288x128xf32> to vector<32x128xf32>
    %c127_i32_52 = arith.constant 127 : i32
    %121 = tpu.dynamic_rotate %120 by %c127_i32_52 dim 1 : vector<32x128xf32>, i32 -> vector<32x128xf32>
    %c5_53 = arith.constant 5 : index
    %c0_54 = arith.constant 0 : index
    %122 = vector.load %arg6[%c5_53, %c0_54] : memref<9x128xf32, #tpu.memory_space<vmem>>, vector<1x128xf32>
    %123 = vector.broadcast %122 : vector<1x128xf32> to vector<32x128xf32>
    %124 = arith.mulf %121, %123 : vector<32x128xf32>
    %125 = arith.addf %119, %124 : vector<32x128xf32>
    %126 = vector.extract_strided_slice %94 {offsets = [192, 0], sizes = [32, 128], strides = [1, 1]} : vector<288x128xf32> to vector<32x128xf32>
    %c121_i32_55 = arith.constant 121 : i32
    %127 = tpu.dynamic_rotate %126 by %c121_i32_55 dim 1 : vector<32x128xf32>, i32 -> vector<32x128xf32>
    %c6_56 = arith.constant 6 : index
    %c0_57 = arith.constant 0 : index
    %128 = vector.load %arg6[%c6_56, %c0_57] : memref<9x128xf32, #tpu.memory_space<vmem>>, vector<1x128xf32>
    %129 = vector.broadcast %128 : vector<1x128xf32> to vector<32x128xf32>
    %130 = arith.mulf %127, %129 : vector<32x128xf32>
    %131 = arith.addf %125, %130 : vector<32x128xf32>
    %132 = vector.extract_strided_slice %94 {offsets = [224, 0], sizes = [32, 128], strides = [1, 1]} : vector<288x128xf32> to vector<32x128xf32>
    %c120_i32_58 = arith.constant 120 : i32
    %133 = tpu.dynamic_rotate %132 by %c120_i32_58 dim 1 : vector<32x128xf32>, i32 -> vector<32x128xf32>
    %c7_59 = arith.constant 7 : index
    %c0_60 = arith.constant 0 : index
    %134 = vector.load %arg6[%c7_59, %c0_60] : memref<9x128xf32, #tpu.memory_space<vmem>>, vector<1x128xf32>
    %135 = vector.broadcast %134 : vector<1x128xf32> to vector<32x128xf32>
    %136 = arith.mulf %133, %135 : vector<32x128xf32>
    %137 = arith.addf %131, %136 : vector<32x128xf32>
    %138 = vector.extract_strided_slice %94 {offsets = [256, 0], sizes = [32, 128], strides = [1, 1]} : vector<288x128xf32> to vector<32x128xf32>
    %c119_i32_61 = arith.constant 119 : i32
    %139 = tpu.dynamic_rotate %138 by %c119_i32_61 dim 1 : vector<32x128xf32>, i32 -> vector<32x128xf32>
    %c8_62 = arith.constant 8 : index
    %c0_63 = arith.constant 0 : index
    %140 = vector.load %arg6[%c8_62, %c0_63] : memref<9x128xf32, #tpu.memory_space<vmem>>, vector<1x128xf32>
    %141 = vector.broadcast %140 : vector<1x128xf32> to vector<32x128xf32>
    %142 = arith.mulf %139, %141 : vector<32x128xf32>
    %143 = arith.addf %137, %142 : vector<32x128xf32>
    %144 = vector.extract_strided_slice %143 {offsets = [0, 0], sizes = [8, 128], strides = [1, 1]} : vector<32x128xf32> to vector<8x128xf32>
    %145 = arith.negf %144 : vector<8x128xf32>
    %146 = math.exp %145 : vector<8x128xf32>
    %cst_64 = arith.constant 1.000000e+00 : f32
    %147 = vector.broadcast %cst_64 : f32 to vector<8x128xf32>
    %148 = arith.addf %147, %146 : vector<8x128xf32>
    %149 = arith.divf %147, %148 : vector<8x128xf32>
    %150 = vector.extract_strided_slice %143 {offsets = [8, 0], sizes = [8, 128], strides = [1, 1]} : vector<32x128xf32> to vector<8x128xf32>
    %151 = arith.negf %150 : vector<8x128xf32>
    %152 = math.exp %151 : vector<8x128xf32>
    %cst_65 = arith.constant 1.000000e+00 : f32
    %153 = vector.broadcast %cst_65 : f32 to vector<8x128xf32>
    %154 = arith.addf %153, %152 : vector<8x128xf32>
    %155 = arith.divf %153, %154 : vector<8x128xf32>
    %156 = vector.extract_strided_slice %143 {offsets = [16, 0], sizes = [8, 128], strides = [1, 1]} : vector<32x128xf32> to vector<8x128xf32>
    %157 = arith.negf %156 : vector<8x128xf32>
    %158 = math.exp %157 : vector<8x128xf32>
    %cst_66 = arith.constant 1.000000e+00 : f32
    %159 = vector.broadcast %cst_66 : f32 to vector<8x128xf32>
    %160 = arith.addf %159, %158 : vector<8x128xf32>
    %161 = arith.divf %159, %160 : vector<8x128xf32>
    %162 = vector.extract_strided_slice %143 {offsets = [24, 0], sizes = [8, 128], strides = [1, 1]} : vector<32x128xf32> to vector<8x128xf32>
    %163 = math.tanh %162 : vector<8x128xf32>
    %c0_67 = arith.constant 0 : index
    %c0_68 = arith.constant 0 : index
    %164 = vector.load %arg10[%c0_67, %c0_68] : memref<8x128xf32, #tpu.memory_space<vmem>>, vector<8x128xf32>
    %165 = arith.mulf %155, %164 : vector<8x128xf32>
    %166 = arith.mulf %149, %163 : vector<8x128xf32>
    %167 = arith.addf %165, %166 : vector<8x128xf32>
    %168 = math.tanh %167 : vector<8x128xf32>
    %169 = arith.mulf %161, %168 : vector<8x128xf32>
    %c0_69 = arith.constant 0 : index
    %c0_70 = arith.constant 0 : index
    %170 = vector.load %arg10[%c0_69, %c0_70] : memref<8x128xf32, #tpu.memory_space<vmem>>, vector<8x128xf32>
    tpu.vector_store %arg10[%c0_69, %c0_70], %167 {strides = array<i32>} : memref<8x128xf32, #tpu.memory_space<vmem>>, vector<8x128xf32>,
    %c0_71 = arith.constant 0 : index
    %c0_72 = arith.constant 0 : index
    %171 = vector.load %arg9[%c0_71, %c0_72] : memref<16x128xf32, #tpu.memory_space<vmem>>, vector<8x128xf32>
    tpu.vector_store %arg9[%c0_71, %c0_72], %169 {strides = array<i32>} : memref<16x128xf32, #tpu.memory_space<vmem>>, vector<8x128xf32>,
    %c1_73 = arith.constant 1 : index
    %c0_74 = arith.constant 0 : index
    %c0_75 = arith.constant 0 : index
    %172 = vector.load %arg7[%c1_73, %c0_74, %c0_75] : memref<4x8x128xf32, #tpu.memory_space<vmem>>, vector<1x8x128xf32>
    %173 = vector.shape_cast %172 : vector<1x8x128xf32> to vector<8x128xf32>
    %174 = vector.shape_cast %169 : vector<8x128xf32> to vector<1x8x128xf32>
    tpu.vector_store %arg7[%c1_73, %c0_74, %c0_75], %174 {strides = array<i32>} : memref<4x8x128xf32, #tpu.memory_space<vmem>>, vector<1x8x128xf32>,
    %c2_76 = arith.constant 2 : index
    %c0_77 = arith.constant 0 : index
    %c0_78 = arith.constant 0 : index
    %175 = vector.load %arg2[%c2_76, %c0_77, %c0_78] : memref<4x4x128xf32, #tpu.memory_space<vmem>>, vector<1x4x128xf32>
    %176 = vector.shape_cast %175 : vector<1x4x128xf32> to vector<4x128xf32>
    %c8_79 = arith.constant 8 : index
    %c0_80 = arith.constant 0 : index
    %177 = vector.load %arg9[%c8_79, %c0_80] : memref<16x128xf32, #tpu.memory_space<vmem>>, vector<4x128xf32>
    tpu.vector_store %arg9[%c8_79, %c0_80], %176 {strides = array<i32>} : memref<16x128xf32, #tpu.memory_space<vmem>>, vector<4x128xf32>,
    %c0_81 = arith.constant 0 : index
    %c0_82 = arith.constant 0 : index
    %178 = vector.load %arg5[%c0_81, %c0_82] : memref<288x16xf32, #tpu.memory_space<vmem>>, vector<288x16xf32>
    %c0_83 = arith.constant 0 : index
    %c0_84 = arith.constant 0 : index
    %179 = vector.load %arg9[%c0_83, %c0_84] : memref<16x128xf32, #tpu.memory_space<vmem>>, vector<16x128xf32>
    %cst_85 = arith.constant dense<0.000000e+00> : vector<288x128xf32>
    %180 = tpu.matmul %178, %179, %cst_85 {dimension_numbers = #tpu.dot_dimension_numbers<[1], [0], [0], [1], [0, 0, 1, 1], [], []>} : vector<288x16xf32>, vector<16x128xf32>, vector<288x128xf32> -> vector<288x128xf32>
    %181 = vector.extract_strided_slice %180 {offsets = [0, 0], sizes = [32, 128], strides = [1, 1]} : vector<288x128xf32> to vector<32x128xf32>
    %c9_i32_86 = arith.constant 9 : i32
    %182 = tpu.dynamic_rotate %181 by %c9_i32_86 dim 1 : vector<32x128xf32>, i32 -> vector<32x128xf32>
    %c0_87 = arith.constant 0 : index
    %c0_88 = arith.constant 0 : index
    %183 = vector.load %arg6[%c0_87, %c0_88] : memref<9x128xf32, #tpu.memory_space<vmem>>, vector<1x128xf32>
    %184 = vector.broadcast %183 : vector<1x128xf32> to vector<32x128xf32>
    %185 = arith.mulf %182, %184 : vector<32x128xf32>
    %186 = vector.extract_strided_slice %180 {offsets = [32, 0], sizes = [32, 128], strides = [1, 1]} : vector<288x128xf32> to vector<32x128xf32>
    %c8_i32_89 = arith.constant 8 : i32
    %187 = tpu.dynamic_rotate %186 by %c8_i32_89 dim 1 : vector<32x128xf32>, i32 -> vector<32x128xf32>
    %c1_90 = arith.constant 1 : index
    %c0_91 = arith.constant 0 : index
    %188 = vector.load %arg6[%c1_90, %c0_91] : memref<9x128xf32, #tpu.memory_space<vmem>>, vector<1x128xf32>
    %189 = vector.broadcast %188 : vector<1x128xf32> to vector<32x128xf32>
    %190 = arith.mulf %187, %189 : vector<32x128xf32>
    %191 = arith.addf %185, %190 : vector<32x128xf32>
    %192 = vector.extract_strided_slice %180 {offsets = [64, 0], sizes = [32, 128], strides = [1, 1]} : vector<288x128xf32> to vector<32x128xf32>
    %c7_i32_92 = arith.constant 7 : i32
    %193 = tpu.dynamic_rotate %192 by %c7_i32_92 dim 1 : vector<32x128xf32>, i32 -> vector<32x128xf32>
    %c2_93 = arith.constant 2 : index
    %c0_94 = arith.constant 0 : index
    %194 = vector.load %arg6[%c2_93, %c0_94] : memref<9x128xf32, #tpu.memory_space<vmem>>, vector<1x128xf32>
    %195 = vector.broadcast %194 : vector<1x128xf32> to vector<32x128xf32>
    %196 = arith.mulf %193, %195 : vector<32x128xf32>
    %197 = arith.addf %191, %196 : vector<32x128xf32>
    %198 = vector.extract_strided_slice %180 {offsets = [96, 0], sizes = [32, 128], strides = [1, 1]} : vector<288x128xf32> to vector<32x128xf32>
    %c1_i32_95 = arith.constant 1 : i32
    %199 = tpu.dynamic_rotate %198 by %c1_i32_95 dim 1 : vector<32x128xf32>, i32 -> vector<32x128xf32>
    %c3_96 = arith.constant 3 : index
    %c0_97 = arith.constant 0 : index
    %200 = vector.load %arg6[%c3_96, %c0_97] : memref<9x128xf32, #tpu.memory_space<vmem>>, vector<1x128xf32>
    %201 = vector.broadcast %200 : vector<1x128xf32> to vector<32x128xf32>
    %202 = arith.mulf %199, %201 : vector<32x128xf32>
    %203 = arith.addf %197, %202 : vector<32x128xf32>
    %204 = vector.extract_strided_slice %180 {offsets = [128, 0], sizes = [32, 128], strides = [1, 1]} : vector<288x128xf32> to vector<32x128xf32>
    %205 = arith.addf %203, %204 : vector<32x128xf32>
    %206 = vector.extract_strided_slice %180 {offsets = [160, 0], sizes = [32, 128], strides = [1, 1]} : vector<288x128xf32> to vector<32x128xf32>
    %c127_i32_98 = arith.constant 127 : i32
    %207 = tpu.dynamic_rotate %206 by %c127_i32_98 dim 1 : vector<32x128xf32>, i32 -> vector<32x128xf32>
    %c5_99 = arith.constant 5 : index
    %c0_100 = arith.constant 0 : index
    %208 = vector.load %arg6[%c5_99, %c0_100] : memref<9x128xf32, #tpu.memory_space<vmem>>, vector<1x128xf32>
    %209 = vector.broadcast %208 : vector<1x128xf32> to vector<32x128xf32>
    %210 = arith.mulf %207, %209 : vector<32x128xf32>
    %211 = arith.addf %205, %210 : vector<32x128xf32>
    %212 = vector.extract_strided_slice %180 {offsets = [192, 0], sizes = [32, 128], strides = [1, 1]} : vector<288x128xf32> to vector<32x128xf32>
    %c121_i32_101 = arith.constant 121 : i32
    %213 = tpu.dynamic_rotate %212 by %c121_i32_101 dim 1 : vector<32x128xf32>, i32 -> vector<32x128xf32>
    %c6_102 = arith.constant 6 : index
    %c0_103 = arith.constant 0 : index
    %214 = vector.load %arg6[%c6_102, %c0_103] : memref<9x128xf32, #tpu.memory_space<vmem>>, vector<1x128xf32>
    %215 = vector.broadcast %214 : vector<1x128xf32> to vector<32x128xf32>
    %216 = arith.mulf %213, %215 : vector<32x128xf32>
    %217 = arith.addf %211, %216 : vector<32x128xf32>
    %218 = vector.extract_strided_slice %180 {offsets = [224, 0], sizes = [32, 128], strides = [1, 1]} : vector<288x128xf32> to vector<32x128xf32>
    %c120_i32_104 = arith.constant 120 : i32
    %219 = tpu.dynamic_rotate %218 by %c120_i32_104 dim 1 : vector<32x128xf32>, i32 -> vector<32x128xf32>
    %c7_105 = arith.constant 7 : index
    %c0_106 = arith.constant 0 : index
    %220 = vector.load %arg6[%c7_105, %c0_106] : memref<9x128xf32, #tpu.memory_space<vmem>>, vector<1x128xf32>
    %221 = vector.broadcast %220 : vector<1x128xf32> to vector<32x128xf32>
    %222 = arith.mulf %219, %221 : vector<32x128xf32>
    %223 = arith.addf %217, %222 : vector<32x128xf32>
    %224 = vector.extract_strided_slice %180 {offsets = [256, 0], sizes = [32, 128], strides = [1, 1]} : vector<288x128xf32> to vector<32x128xf32>
    %c119_i32_107 = arith.constant 119 : i32
    %225 = tpu.dynamic_rotate %224 by %c119_i32_107 dim 1 : vector<32x128xf32>, i32 -> vector<32x128xf32>
    %c8_108 = arith.constant 8 : index
    %c0_109 = arith.constant 0 : index
    %226 = vector.load %arg6[%c8_108, %c0_109] : memref<9x128xf32, #tpu.memory_space<vmem>>, vector<1x128xf32>
    %227 = vector.broadcast %226 : vector<1x128xf32> to vector<32x128xf32>
    %228 = arith.mulf %225, %227 : vector<32x128xf32>
    %229 = arith.addf %223, %228 : vector<32x128xf32>
    %230 = vector.extract_strided_slice %229 {offsets = [0, 0], sizes = [8, 128], strides = [1, 1]} : vector<32x128xf32> to vector<8x128xf32>
    %231 = arith.negf %230 : vector<8x128xf32>
    %232 = math.exp %231 : vector<8x128xf32>
    %cst_110 = arith.constant 1.000000e+00 : f32
    %233 = vector.broadcast %cst_110 : f32 to vector<8x128xf32>
    %234 = arith.addf %233, %232 : vector<8x128xf32>
    %235 = arith.divf %233, %234 : vector<8x128xf32>
    %236 = vector.extract_strided_slice %229 {offsets = [8, 0], sizes = [8, 128], strides = [1, 1]} : vector<32x128xf32> to vector<8x128xf32>
    %237 = arith.negf %236 : vector<8x128xf32>
    %238 = math.exp %237 : vector<8x128xf32>
    %cst_111 = arith.constant 1.000000e+00 : f32
    %239 = vector.broadcast %cst_111 : f32 to vector<8x128xf32>
    %240 = arith.addf %239, %238 : vector<8x128xf32>
    %241 = arith.divf %239, %240 : vector<8x128xf32>
    %242 = vector.extract_strided_slice %229 {offsets = [16, 0], sizes = [8, 128], strides = [1, 1]} : vector<32x128xf32> to vector<8x128xf32>
    %243 = arith.negf %242 : vector<8x128xf32>
    %244 = math.exp %243 : vector<8x128xf32>
    %cst_112 = arith.constant 1.000000e+00 : f32
    %245 = vector.broadcast %cst_112 : f32 to vector<8x128xf32>
    %246 = arith.addf %245, %244 : vector<8x128xf32>
    %247 = arith.divf %245, %246 : vector<8x128xf32>
    %248 = vector.extract_strided_slice %229 {offsets = [24, 0], sizes = [8, 128], strides = [1, 1]} : vector<32x128xf32> to vector<8x128xf32>
    %249 = math.tanh %248 : vector<8x128xf32>
    %c0_113 = arith.constant 0 : index
    %c0_114 = arith.constant 0 : index
    %250 = vector.load %arg10[%c0_113, %c0_114] : memref<8x128xf32, #tpu.memory_space<vmem>>, vector<8x128xf32>
    %251 = arith.mulf %241, %250 : vector<8x128xf32>
    %252 = arith.mulf %235, %249 : vector<8x128xf32>
    %253 = arith.addf %251, %252 : vector<8x128xf32>
    %254 = math.tanh %253 : vector<8x128xf32>
    %255 = arith.mulf %247, %254 : vector<8x128xf32>
    %c0_115 = arith.constant 0 : index
    %c0_116 = arith.constant 0 : index
    %256 = vector.load %arg10[%c0_115, %c0_116] : memref<8x128xf32, #tpu.memory_space<vmem>>, vector<8x128xf32>
    tpu.vector_store %arg10[%c0_115, %c0_116], %253 {strides = array<i32>} : memref<8x128xf32, #tpu.memory_space<vmem>>, vector<8x128xf32>,
    %c0_117 = arith.constant 0 : index
    %c0_118 = arith.constant 0 : index
    %257 = vector.load %arg9[%c0_117, %c0_118] : memref<16x128xf32, #tpu.memory_space<vmem>>, vector<8x128xf32>
    tpu.vector_store %arg9[%c0_117, %c0_118], %255 {strides = array<i32>} : memref<16x128xf32, #tpu.memory_space<vmem>>, vector<8x128xf32>,
    %c2_119 = arith.constant 2 : index
    %c0_120 = arith.constant 0 : index
    %c0_121 = arith.constant 0 : index
    %258 = vector.load %arg7[%c2_119, %c0_120, %c0_121] : memref<4x8x128xf32, #tpu.memory_space<vmem>>, vector<1x8x128xf32>
    %259 = vector.shape_cast %258 : vector<1x8x128xf32> to vector<8x128xf32>
    %260 = vector.shape_cast %255 : vector<8x128xf32> to vector<1x8x128xf32>
    tpu.vector_store %arg7[%c2_119, %c0_120, %c0_121], %260 {strides = array<i32>} : memref<4x8x128xf32, #tpu.memory_space<vmem>>, vector<1x8x128xf32>,
    %c3_122 = arith.constant 3 : index
    %c0_123 = arith.constant 0 : index
    %c0_124 = arith.constant 0 : index
    %261 = vector.load %arg2[%c3_122, %c0_123, %c0_124] : memref<4x4x128xf32, #tpu.memory_space<vmem>>, vector<1x4x128xf32>
    %262 = vector.shape_cast %261 : vector<1x4x128xf32> to vector<4x128xf32>
    %c8_125 = arith.constant 8 : index
    %c0_126 = arith.constant 0 : index
    %263 = vector.load %arg9[%c8_125, %c0_126] : memref<16x128xf32, #tpu.memory_space<vmem>>, vector<4x128xf32>
    tpu.vector_store %arg9[%c8_125, %c0_126], %262 {strides = array<i32>} : memref<16x128xf32, #tpu.memory_space<vmem>>, vector<4x128xf32>,
    %c0_127 = arith.constant 0 : index
    %c0_128 = arith.constant 0 : index
    %264 = vector.load %arg5[%c0_127, %c0_128] : memref<288x16xf32, #tpu.memory_space<vmem>>, vector<288x16xf32>
    %c0_129 = arith.constant 0 : index
    %c0_130 = arith.constant 0 : index
    %265 = vector.load %arg9[%c0_129, %c0_130] : memref<16x128xf32, #tpu.memory_space<vmem>>, vector<16x128xf32>
    %cst_131 = arith.constant dense<0.000000e+00> : vector<288x128xf32>
    %266 = tpu.matmul %264, %265, %cst_131 {dimension_numbers = #tpu.dot_dimension_numbers<[1], [0], [0], [1], [0, 0, 1, 1], [], []>} : vector<288x16xf32>, vector<16x128xf32>, vector<288x128xf32> -> vector<288x128xf32>
    %267 = vector.extract_strided_slice %266 {offsets = [0, 0], sizes = [32, 128], strides = [1, 1]} : vector<288x128xf32> to vector<32x128xf32>
    %c9_i32_132 = arith.constant 9 : i32
    %268 = tpu.dynamic_rotate %267 by %c9_i32_132 dim 1 : vector<32x128xf32>, i32 -> vector<32x128xf32>
    %c0_133 = arith.constant 0 : index
    %c0_134 = arith.constant 0 : index
    %269 = vector.load %arg6[%c0_133, %c0_134] : memref<9x128xf32, #tpu.memory_space<vmem>>, vector<1x128xf32>
    %270 = vector.broadcast %269 : vector<1x128xf32> to vector<32x128xf32>
    %271 = arith.mulf %268, %270 : vector<32x128xf32>
    %272 = vector.extract_strided_slice %266 {offsets = [32, 0], sizes = [32, 128], strides = [1, 1]} : vector<288x128xf32> to vector<32x128xf32>
    %c8_i32_135 = arith.constant 8 : i32
    %273 = tpu.dynamic_rotate %272 by %c8_i32_135 dim 1 : vector<32x128xf32>, i32 -> vector<32x128xf32>
    %c1_136 = arith.constant 1 : index
    %c0_137 = arith.constant 0 : index
    %274 = vector.load %arg6[%c1_136, %c0_137] : memref<9x128xf32, #tpu.memory_space<vmem>>, vector<1x128xf32>
    %275 = vector.broadcast %274 : vector<1x128xf32> to vector<32x128xf32>
    %276 = arith.mulf %273, %275 : vector<32x128xf32>
    %277 = arith.addf %271, %276 : vector<32x128xf32>
    %278 = vector.extract_strided_slice %266 {offsets = [64, 0], sizes = [32, 128], strides = [1, 1]} : vector<288x128xf32> to vector<32x128xf32>
    %c7_i32_138 = arith.constant 7 : i32
    %279 = tpu.dynamic_rotate %278 by %c7_i32_138 dim 1 : vector<32x128xf32>, i32 -> vector<32x128xf32>
    %c2_139 = arith.constant 2 : index
    %c0_140 = arith.constant 0 : index
    %280 = vector.load %arg6[%c2_139, %c0_140] : memref<9x128xf32, #tpu.memory_space<vmem>>, vector<1x128xf32>
    %281 = vector.broadcast %280 : vector<1x128xf32> to vector<32x128xf32>
    %282 = arith.mulf %279, %281 : vector<32x128xf32>
    %283 = arith.addf %277, %282 : vector<32x128xf32>
    %284 = vector.extract_strided_slice %266 {offsets = [96, 0], sizes = [32, 128], strides = [1, 1]} : vector<288x128xf32> to vector<32x128xf32>
    %c1_i32_141 = arith.constant 1 : i32
    %285 = tpu.dynamic_rotate %284 by %c1_i32_141 dim 1 : vector<32x128xf32>, i32 -> vector<32x128xf32>
    %c3_142 = arith.constant 3 : index
    %c0_143 = arith.constant 0 : index
    %286 = vector.load %arg6[%c3_142, %c0_143] : memref<9x128xf32, #tpu.memory_space<vmem>>, vector<1x128xf32>
    %287 = vector.broadcast %286 : vector<1x128xf32> to vector<32x128xf32>
    %288 = arith.mulf %285, %287 : vector<32x128xf32>
    %289 = arith.addf %283, %288 : vector<32x128xf32>
    %290 = vector.extract_strided_slice %266 {offsets = [128, 0], sizes = [32, 128], strides = [1, 1]} : vector<288x128xf32> to vector<32x128xf32>
    %291 = arith.addf %289, %290 : vector<32x128xf32>
    %292 = vector.extract_strided_slice %266 {offsets = [160, 0], sizes = [32, 128], strides = [1, 1]} : vector<288x128xf32> to vector<32x128xf32>
    %c127_i32_144 = arith.constant 127 : i32
    %293 = tpu.dynamic_rotate %292 by %c127_i32_144 dim 1 : vector<32x128xf32>, i32 -> vector<32x128xf32>
    %c5_145 = arith.constant 5 : index
    %c0_146 = arith.constant 0 : index
    %294 = vector.load %arg6[%c5_145, %c0_146] : memref<9x128xf32, #tpu.memory_space<vmem>>, vector<1x128xf32>
    %295 = vector.broadcast %294 : vector<1x128xf32> to vector<32x128xf32>
    %296 = arith.mulf %293, %295 : vector<32x128xf32>
    %297 = arith.addf %291, %296 : vector<32x128xf32>
    %298 = vector.extract_strided_slice %266 {offsets = [192, 0], sizes = [32, 128], strides = [1, 1]} : vector<288x128xf32> to vector<32x128xf32>
    %c121_i32_147 = arith.constant 121 : i32
    %299 = tpu.dynamic_rotate %298 by %c121_i32_147 dim 1 : vector<32x128xf32>, i32 -> vector<32x128xf32>
    %c6_148 = arith.constant 6 : index
    %c0_149 = arith.constant 0 : index
    %300 = vector.load %arg6[%c6_148, %c0_149] : memref<9x128xf32, #tpu.memory_space<vmem>>, vector<1x128xf32>
    %301 = vector.broadcast %300 : vector<1x128xf32> to vector<32x128xf32>
    %302 = arith.mulf %299, %301 : vector<32x128xf32>
    %303 = arith.addf %297, %302 : vector<32x128xf32>
    %304 = vector.extract_strided_slice %266 {offsets = [224, 0], sizes = [32, 128], strides = [1, 1]} : vector<288x128xf32> to vector<32x128xf32>
    %c120_i32_150 = arith.constant 120 : i32
    %305 = tpu.dynamic_rotate %304 by %c120_i32_150 dim 1 : vector<32x128xf32>, i32 -> vector<32x128xf32>
    %c7_151 = arith.constant 7 : index
    %c0_152 = arith.constant 0 : index
    %306 = vector.load %arg6[%c7_151, %c0_152] : memref<9x128xf32, #tpu.memory_space<vmem>>, vector<1x128xf32>
    %307 = vector.broadcast %306 : vector<1x128xf32> to vector<32x128xf32>
    %308 = arith.mulf %305, %307 : vector<32x128xf32>
    %309 = arith.addf %303, %308 : vector<32x128xf32>
    %310 = vector.extract_strided_slice %266 {offsets = [256, 0], sizes = [32, 128], strides = [1, 1]} : vector<288x128xf32> to vector<32x128xf32>
    %c119_i32_153 = arith.constant 119 : i32
    %311 = tpu.dynamic_rotate %310 by %c119_i32_153 dim 1 : vector<32x128xf32>, i32 -> vector<32x128xf32>
    %c8_154 = arith.constant 8 : index
    %c0_155 = arith.constant 0 : index
    %312 = vector.load %arg6[%c8_154, %c0_155] : memref<9x128xf32, #tpu.memory_space<vmem>>, vector<1x128xf32>
    %313 = vector.broadcast %312 : vector<1x128xf32> to vector<32x128xf32>
    %314 = arith.mulf %311, %313 : vector<32x128xf32>
    %315 = arith.addf %309, %314 : vector<32x128xf32>
    %316 = vector.extract_strided_slice %315 {offsets = [0, 0], sizes = [8, 128], strides = [1, 1]} : vector<32x128xf32> to vector<8x128xf32>
    %317 = arith.negf %316 : vector<8x128xf32>
    %318 = math.exp %317 : vector<8x128xf32>
    %cst_156 = arith.constant 1.000000e+00 : f32
    %319 = vector.broadcast %cst_156 : f32 to vector<8x128xf32>
    %320 = arith.addf %319, %318 : vector<8x128xf32>
    %321 = arith.divf %319, %320 : vector<8x128xf32>
    %322 = vector.extract_strided_slice %315 {offsets = [8, 0], sizes = [8, 128], strides = [1, 1]} : vector<32x128xf32> to vector<8x128xf32>
    %323 = arith.negf %322 : vector<8x128xf32>
    %324 = math.exp %323 : vector<8x128xf32>
    %cst_157 = arith.constant 1.000000e+00 : f32
    %325 = vector.broadcast %cst_157 : f32 to vector<8x128xf32>
    %326 = arith.addf %325, %324 : vector<8x128xf32>
    %327 = arith.divf %325, %326 : vector<8x128xf32>
    %328 = vector.extract_strided_slice %315 {offsets = [16, 0], sizes = [8, 128], strides = [1, 1]} : vector<32x128xf32> to vector<8x128xf32>
    %329 = arith.negf %328 : vector<8x128xf32>
    %330 = math.exp %329 : vector<8x128xf32>
    %cst_158 = arith.constant 1.000000e+00 : f32
    %331 = vector.broadcast %cst_158 : f32 to vector<8x128xf32>
    %332 = arith.addf %331, %330 : vector<8x128xf32>
    %333 = arith.divf %331, %332 : vector<8x128xf32>
    %334 = vector.extract_strided_slice %315 {offsets = [24, 0], sizes = [8, 128], strides = [1, 1]} : vector<32x128xf32> to vector<8x128xf32>
    %335 = math.tanh %334 : vector<8x128xf32>
    %c0_159 = arith.constant 0 : index
    %c0_160 = arith.constant 0 : index
    %336 = vector.load %arg10[%c0_159, %c0_160] : memref<8x128xf32, #tpu.memory_space<vmem>>, vector<8x128xf32>
    %337 = arith.mulf %327, %336 : vector<8x128xf32>
    %338 = arith.mulf %321, %335 : vector<8x128xf32>
    %339 = arith.addf %337, %338 : vector<8x128xf32>
    %340 = math.tanh %339 : vector<8x128xf32>
    %341 = arith.mulf %333, %340 : vector<8x128xf32>
    %c0_161 = arith.constant 0 : index
    %c0_162 = arith.constant 0 : index
    %342 = vector.load %arg10[%c0_161, %c0_162] : memref<8x128xf32, #tpu.memory_space<vmem>>, vector<8x128xf32>
    tpu.vector_store %arg10[%c0_161, %c0_162], %339 {strides = array<i32>} : memref<8x128xf32, #tpu.memory_space<vmem>>, vector<8x128xf32>,
    %c0_163 = arith.constant 0 : index
    %c0_164 = arith.constant 0 : index
    %343 = vector.load %arg9[%c0_163, %c0_164] : memref<16x128xf32, #tpu.memory_space<vmem>>, vector<8x128xf32>
    tpu.vector_store %arg9[%c0_163, %c0_164], %341 {strides = array<i32>} : memref<16x128xf32, #tpu.memory_space<vmem>>, vector<8x128xf32>,
    %c3_165 = arith.constant 3 : index
    %c0_166 = arith.constant 0 : index
    %c0_167 = arith.constant 0 : index
    %344 = vector.load %arg7[%c3_165, %c0_166, %c0_167] : memref<4x8x128xf32, #tpu.memory_space<vmem>>, vector<1x8x128xf32>
    %345 = vector.shape_cast %344 : vector<1x8x128xf32> to vector<8x128xf32>
    %346 = vector.shape_cast %341 : vector<8x128xf32> to vector<1x8x128xf32>
    tpu.vector_store %arg7[%c3_165, %c0_166, %c0_167], %346 {strides = array<i32>} : memref<4x8x128xf32, #tpu.memory_space<vmem>>, vector<1x8x128xf32>,
    %c0_i32_168 = arith.constant 0 : i32
    %347 = arith.cmpi eq, %arg1, %c0_i32_168 : i32
    %348 = arith.extui %347 : i1 to i32
    %c0_i32_169 = arith.constant 0 : i32
    %349 = arith.cmpi ne, %348, %c0_i32_169 : i32
    scf.if %349 {
      %c0_170 = arith.constant 0 : index
      %c0_171 = arith.constant 0 : index
      %350 = vector.load %arg8[%c0_170, %c0_171] : memref<8x128xf32, #tpu.memory_space<vmem>>, vector<8x128xf32>
      tpu.vector_store %arg8[%c0_170, %c0_171], %339 {strides = array<i32>} : memref<8x128xf32, #tpu.memory_space<vmem>>, vector<8x128xf32>,
    } else {
    }
    return
  }
  func.func @transform_0(%arg0: i32, %arg1: i32) -> (i32, i32, i32) {
    %c0_i32 = arith.constant 0 : i32
    %c0_i32_0 = arith.constant 0 : i32
    return %arg1, %c0_i32, %arg0 : i32, i32, i32
  }
  func.func @transform_1(%arg0: i32, %arg1: i32) -> (i32, i32) {
    %c0_i32 = arith.constant 0 : i32
    %c0_i32_0 = arith.constant 0 : i32
    return %c0_i32, %arg0 : i32, i32
  }
  func.func @transform_2(%arg0: i32, %arg1: i32) -> (i32, i32) {
    %c0_i32 = arith.constant 0 : i32
    %c0_i32_0 = arith.constant 0 : i32
    return %c0_i32, %arg0 : i32, i32
  }
  func.func @transform_3(%arg0: i32, %arg1: i32) -> (i32, i32) {
    %c0_i32 = arith.constant 0 : i32
    %c0_i32_0 = arith.constant 0 : i32
    %c0_i32_1 = arith.constant 0 : i32
    return %c0_i32, %c0_i32_0 : i32, i32
  }
  func.func @transform_4(%arg0: i32, %arg1: i32) -> (i32, i32) {
    %c0_i32 = arith.constant 0 : i32
    %c0_i32_0 = arith.constant 0 : i32
    return %c0_i32, %arg0 : i32, i32
  }
  func.func @transform_5(%arg0: i32, %arg1: i32) -> (i32, i32, i32) {
    %c0_i32 = arith.constant 0 : i32
    %c0_i32_0 = arith.constant 0 : i32
    return %arg1, %c0_i32, %arg0 : i32, i32, i32
  }
  func.func @transform_6(%arg0: i32, %arg1: i32) -> (i32, i32) {
    %c0_i32 = arith.constant 0 : i32
    %c0_i32_0 = arith.constant 0 : i32
    return %c0_i32, %arg0 : i32, i32
  }
}

</mosaic_0001>

<llo_original>
// kernel: tile.38
$region0: #{tile.38}
  #allocation0 [shape = 's32[1]{0}', space=sflag, size = 0x4, scoped, tag = 'scoped memory for tile.38']
  %s0 = inlined_call_operand.vmem [shape: f32[64], index: 0, kind: input, shape index: {}]
  %s1 = inlined_call_operand.vmem [shape: f32[2,64], index: 1, kind: output, shape index: {}]
  // Predicated region
  $region2: #{tile.38} parent=0 // pred_check
    _
  $region3: #{tile.38} parent=0 // pred_check_branch
    %3 = sbr.rel (0) target = $region5
  $region4: #{tile.38} parent=0 // pred_region
    _
  $region5: #{tile.38} parent=0 // pred_fallthru
    _
  %v4 = vld [vmem:[%s0] ss:$0 sm:$0xff]
  %5 = vst [vmem:[%s1] sm:$0x3] %v4

// kernel: tile.63
$region0: #{tile.63}
  %s0 = inlined_call_operand.vmem [shape: f32[2,64], index: 0, kind: input, shape index: {}]
  %s1 = inlined_call_operand.vmem [shape: f32[1,128], index: 1, kind: output, shape index: {}]
  $region1: #{tile.63} parent=0
    #allocation0 [shape = 'u8[4096]{0}', space=vmem, size = 0x1000, scoped, tag = 'scoped mem for output reshape']
    #allocation1 [shape = 'u8[4096]{0}', space=vmem, size = 0x1000, scoped, tag = 'scoped mem for input reshape']
    %s3 = sshllo.u32 0, 2
    %v4 = vld [vmem:[%s0] sm:%s3]
    %5 = vst [vmem:[#allocation1] sm:%s3] %v4
    %v6 = vld [vmem:[#allocation1] sm:$0x1]
    %vm7 = vcmask 523264
    %8 = vst.msk [vmem:[#allocation0] sm:$0x1] %vm7, %v6
    %s9 = scalar_lea.vmem [#allocation1], 1
    %v10 = vld [vmem:[%s9] sm:$0x1]
    %11 = vrot.lane.b32.xlu0 %v10, 64
    %v12 = vpop.permute.xlu0 %11
    %vm13 = vcmask 1048064
    %14 = vst.msk [vmem:[#allocation0] sm:$0x1] %vm13, %v12
    %s16 = sshllo.u32 0, 1
    %v18 = vld [vmem:[#allocation0] sm:%s16]
    %s19 = sshllo.u32 0, 1
    %20 = vst [vmem:[%s1] sm:%s19] %v18

// kernel: _lambda_.1
$region0: #{_lambda_.1}
  #allocation0 [shape = 'u32[]', space=smem, size = 0x4, offset = 0x4, fixed_abs, tag = 'smem constant byte address 0x4 - core index']
  #allocation1 [shape = 'u32[144,128]{1,0:T(1,128)}', space=vmem, size = 0x12000, scoped, tag = 'internal scratch']
  #allocation2 [shape = 'f32[16,128]{1,0:T(8,128)}', space=vmem, size = 0x2000, scoped, tag = 'scratch operand']
  #allocation3 [shape = 'f32[8,128]{1,0:T(8,128)}', space=vmem, size = 0x1000, scoped, tag = 'scratch operand']
  %s0 = inlined_call_operand.vmem [shape: f32[4,4,128], index: 0, kind: input, shape index: {}]
  %s1 = inlined_call_operand.vmem [shape: f32[8,128], index: 1, kind: input, shape index: {}, may-alias: {1,2}]
  %s2 = inlined_call_operand.vmem [shape: f32[8,128], index: 2, kind: input, shape index: {}, may-alias: {1,2}]
  %s3 = inlined_call_operand.vmem [shape: f32[288,16], index: 3, kind: input, shape index: {}]
  %s4 = inlined_call_operand.vmem [shape: f32[9,128], index: 4, kind: input, shape index: {}]
  %s5 = inlined_call_operand.vmem [shape: f32[4,8,128], index: 5, kind: output, shape index: {0}]
  %s6 = inlined_call_operand.vmem [shape: f32[8,128], index: 6, kind: output, shape index: {1}]
  %7 = xla_tuple %s5, %s6
  %s8 = sld [smem:[#allocation0]]
  $region46: #{_lambda_.1} parent=0
    _
  %s10 = ssub.s32 1, %s8
  %s11 = scalar_select 0, %s10, %s8
  // Predicated region
  $region2: #{_lambda_.1} parent=0 // pred_check
    _
  $region3: #{_lambda_.1} parent=0 // pred_check_branch
    %13 = sbr.rel (0) target = $region5
  $region4: #{_lambda_.1} parent=0 // pred_region
    _
  $region5: #{_lambda_.1} parent=0 // pred_fallthru
    _
  // Predicated region
  $region6: #{_lambda_.1} parent=0 // pred_check
    _
  $region7: #{_lambda_.1} parent=0 // pred_check_branch
    %15 = sbr.rel (0) target = $region9
  $region8: #{_lambda_.1} parent=0 // pred_region
    _
  $region9: #{_lambda_.1} parent=0 // pred_fallthru
    _
  // Predicated region
  $region10: #{_lambda_.1} parent=0 // pred_check
    _
  $region11: #{_lambda_.1} parent=0 // pred_check_branch
    %17 = sbr.rel (0) target = $region13
  $region12: #{_lambda_.1} parent=0 // pred_region
    _
  $region13: #{_lambda_.1} parent=0 // pred_fallthru
    _
  // Predicated region
  $region14: #{_lambda_.1} parent=0 // pred_check
    _
  $region15: #{_lambda_.1} parent=0 // pred_check_branch
    %19 = sbr.rel (0) target = $region17
  $region16: #{_lambda_.1} parent=0 // pred_region
    _
  $region17: #{_lambda_.1} parent=0 // pred_fallthru
    _
  // Predicated region
  $region18: #{_lambda_.1} parent=0 // pred_check
    _
  $region19: #{_lambda_.1} parent=0 // pred_check_branch
    %21 = sbr.rel (0) target = $region21
  $region20: #{_lambda_.1} parent=0 // pred_region
    _
  $region21: #{_lambda_.1} parent=0 // pred_fallthru
    _
  %p22 = scmp.eq.s32.totalorder 0, 0
  // Predicated region
  $region22: #{_lambda_.1} parent=0 // pred_check
    %p23 = pneg %p22
  $region23: #{_lambda_.1} parent=0 // pred_check_branch
    %25 = sbr.rel (%p23) target = $region25
  $region24: #{_lambda_.1} parent=0 // pred_region
    %26 = vst [vmem:[#allocation2] sm:$0xff] 0.0
    %27 = vst [vmem:[#allocation2 + $0x8] sm:$0xff] 0.0
    %v28 = vld [vmem:[%s1] sm:$0xff]
    %29 = vst [vmem:[#allocation2] sm:$0xff] %v28
    %v30 = vld [vmem:[%s2] sm:$0xff]
    %31 = vst [vmem:[#allocation3] sm:$0xff] %v30
  $region25: #{_lambda_.1} parent=0 // pred_fallthru
    _
  %v32 = vld [vmem:[%s0] sm:$0xf]
  %33 = vst [vmem:[#allocation2 + $0x8] sm:$0xf] %v32
  %v34 = vld [vmem:[%s3] sm:$0xff]
  %v35 = vld [vmem:[%s3 + $0x8] sm:$0xff]
  %v36 = vld [vmem:[%s3 + $0x10] sm:$0xff]
  %v37 = vld [vmem:[%s3 + $0x18] sm:$0xff]
  %v38 = vld [vmem:[%s3 + $0x20] sm:$0xff]
  %v39 = vld [vmem:[%s3 + $0x28] sm:$0xff]
  %v40 = vld [vmem:[%s3 + $0x30] sm:$0xff]
  %v41 = vld [vmem:[%s3 + $0x38] sm:$0xff]
  %v42 = vld [vmem:[%s3 + $0x40] sm:$0xff]
  %v43 = vld [vmem:[%s3 + $0x48] sm:$0xff]
  %v44 = vld [vmem:[%s3 + $0x50] sm:$0xff]
  %v45 = vld [vmem:[%s3 + $0x58] sm:$0xff]
  %v46 = vld [vmem:[%s3 + $0x60] sm:$0xff]
  %v47 = vld [vmem:[%s3 + $0x68] sm:$0xff]
  %v48 = vld [vmem:[%s3 + $0x70] sm:$0xff]
  %v49 = vld [vmem:[%s3 + $0x78] sm:$0xff]
  %v50 = vld [vmem:[%s3 + $0x80] sm:$0xff]
  %v51 = vld [vmem:[%s3 + $0x88] sm:$0xff]
  %v52 = vld [vmem:[%s3 + $0x90] sm:$0xff]
  %v53 = vld [vmem:[%s3 + $0x98] sm:$0xff]
  %v54 = vld [vmem:[%s3 + $0xa0] sm:$0xff]
  %v55 = vld [vmem:[%s3 + $0xa8] sm:$0xff]
  %v56 = vld [vmem:[%s3 + $0xb0] sm:$0xff]
  %v57 = vld [vmem:[%s3 + $0xb8] sm:$0xff]
  %v58 = vld [vmem:[%s3 + $0xc0] sm:$0xff]
  %v59 = vld [vmem:[%s3 + $0xc8] sm:$0xff]
  %v60 = vld [vmem:[%s3 + $0xd0] sm:$0xff]
  %v61 = vld [vmem:[%s3 + $0xd8] sm:$0xff]
  %v62 = vld [vmem:[%s3 + $0xe0] sm:$0xff]
  %v63 = vld [vmem:[%s3 + $0xe8] sm:$0xff]
  %v64 = vld [vmem:[%s3 + $0xf0] sm:$0xff]
  %v65 = vld [vmem:[%s3 + $0xf8] sm:$0xff]
  %v66 = vld [vmem:[%s3 + $0x100] sm:$0xff]
  %v67 = vld [vmem:[%s3 + $0x108] sm:$0xff]
  %v68 = vld [vmem:[%s3 + $0x110] sm:$0xff]
  %v69 = vld [vmem:[%s3 + $0x118] sm:$0xff]
  %v70 = vld [vmem:[#allocation2] sm:$0xff]
  %v71 = vld [vmem:[#allocation2 + $0x8] sm:$0xff]
  %vm72 = vcmask 130048
  %v74 = vsel %vm72, %v34, 0
  %v77 = vsel %vm72, %v35, 0
  %v80 = vsel %vm72, %v36, 0
  %v83 = vsel %vm72, %v37, 0
  %v86 = vsel %vm72, %v38, 0
  %v89 = vsel %vm72, %v39, 0
  %v92 = vsel %vm72, %v40, 0
  %v95 = vsel %vm72, %v41, 0
  %v98 = vsel %vm72, %v42, 0
  %v101 = vsel %vm72, %v43, 0
  %v104 = vsel %vm72, %v44, 0
  %v107 = vsel %vm72, %v45, 0
  %v110 = vsel %vm72, %v46, 0
  %v113 = vsel %vm72, %v47, 0
  %v116 = vsel %vm72, %v48, 0
  %v119 = vsel %vm72, %v49, 0
  %v122 = vsel %vm72, %v50, 0
  %v125 = vsel %vm72, %v51, 0
  %v128 = vsel %vm72, %v52, 0
  %v131 = vsel %vm72, %v53, 0
  %v134 = vsel %vm72, %v54, 0
  %v137 = vsel %vm72, %v55, 0
  %v140 = vsel %vm72, %v56, 0
  %v143 = vsel %vm72, %v57, 0
  %v146 = vsel %vm72, %v58, 0
  %v149 = vsel %vm72, %v59, 0
  %v152 = vsel %vm72, %v60, 0
  %v155 = vsel %vm72, %v61, 0
  %v158 = vsel %vm72, %v62, 0
  %v161 = vsel %vm72, %v63, 0
  %v164 = vsel %vm72, %v64, 0
  %v167 = vsel %vm72, %v65, 0
  %v170 = vsel %vm72, %v66, 0
  %v173 = vsel %vm72, %v67, 0
  %v176 = vsel %vm72, %v68, 0
  %v179 = vsel %vm72, %v69, 0
  %181 = vmatprep.subr.mxu0 0.0
  %182 = vmatpush1.msra.mxu0 %v70
  %183 = vmatprep.subr.mxu0 0.0
  %184 = vmatpush1.msra.mxu0 %v71
  %185 = vmatprep.subr.mxu0 0.0
  %186 = vmatpush1.msra.mxu0 0.0
  %187 = vmatprep.subr.mxu0 0.0
  %188 = vmatpush1.msra.mxu0 0.0
  %189 = vmatprep.subr.mxu0 0.0
  %190 = vmatpush1.msra.mxu0 0.0
  %191 = vmatprep.subr.mxu0 0.0
  %192 = vmatpush1.msra.mxu0 0.0
  %193 = vmatprep.subr.mxu0 0.0
  %194 = vmatpush1.msra.mxu0 0.0
  %195 = vmatprep.subr.mxu0 0.0
  %196 = vmatpush1.msra.mxu0 0.0
  %197 = vmatprep.subr.mxu0 0.0
  %198 = vmatpush1.msra.mxu0 0.0
  %199 = vmatprep.subr.mxu0 0.0
  %200 = vmatpush1.msra.mxu0 0.0
  %201 = vmatprep.subr.mxu0 0.0
  %202 = vmatpush1.msra.mxu0 0.0
  %203 = vmatprep.subr.mxu0 0.0
  %204 = vmatpush1.msra.mxu0 0.0
  %205 = vmatprep.subr.mxu0 0.0
  %206 = vmatpush1.msra.mxu0 0.0
  %207 = vmatprep.subr.mxu0 0.0
  %208 = vmatpush1.msra.mxu0 0.0
  %209 = vmatprep.subr.mxu0 0.0
  %210 = vmatpush1.msra.mxu0 0.0
  %211 = vmatprep.subr.mxu0 0.0
  %212 = vmatpush1.msra.mxu0 0.0
  %213 = vmatprep.subr.mxu0 0.0
  %214 = vmatpush1.msra.mxu0 0.0
  %215 = vmatprep.subr.mxu0 0.0
  %216 = vmatpush1.msra.mxu0 0.0
  %217 = vmatprep.subr.mxu0 0.0
  %218 = vmatpush1.msra.mxu0 0.0
  %219 = vmatprep.subr.mxu0 0.0
  %220 = vmatpush1.msra.mxu0 0.0
  %221 = vmatprep.subr.mxu0 0.0
  %222 = vmatpush1.msra.mxu0 0.0
  %223 = vmatprep.subr.mxu0 0.0
  %224 = vmatpush1.msra.mxu0 0.0
  %225 = vmatprep.subr.mxu0 0.0
  %226 = vmatpush1.msra.mxu0 0.0
  %227 = vmatprep.subr.mxu0 0.0
  %228 = vmatpush1.msra.mxu0 0.0
  %229 = vmatprep.subr.mxu0 0.0
  %230 = vmatpush1.msra.mxu0 0.0
  %231 = vmatprep.subr.mxu0 0.0
  %232 = vmatpush1.msra.mxu0 0.0
  %233 = vmatprep.subr.mxu0 0.0
  %234 = vmatpush1.msra.mxu0 0.0
  %235 = vmatprep.subr.mxu0 0.0
  %236 = vmatpush1.msra.mxu0 0.0
  %237 = vmatprep.subr.mxu0 0.0
  %238 = vmatpush1.msra.mxu0 0.0
  %239 = vmatprep.subr.mxu0 0.0
  %240 = vmatpush1.msra.mxu0 0.0
  %241 = vmatprep.subr.mxu0 0.0
  %242 = vmatpush1.msra.mxu0 0.0
  %243 = vmatprep.subr.mxu0 0.0
  %244 = vmatpush1.msra.mxu0 0.0
  %245 = vmatprep.mubr.f32.mxu0 0.0
  %246 = vmatmul.mubr.f32.gmra.mrb[0].mxu0 %v74
  %v247 = vpop.f32.mrb[0].mxu0
  %v248 = vadd.f32 0.0, %v247
  %v249 = vpop.f32.mrb[0].mxu0
  %250 = vmatprep.mubr.f32.mxu0 0.0
  %251 = vmatmul.mubr.f32.gmra.mrb[0].mxu0 %v77
  %v252 = vpop.f32.mrb[0].mxu0
  %v253 = vadd.f32 0.0, %v252
  %v254 = vpop.f32.mrb[0].mxu0
  %255 = vmatprep.mubr.f32.mxu0 0.0
  %256 = vmatmul.mubr.f32.gmra.mrb[0].mxu0 %v80
  %v257 = vpop.f32.mrb[0].mxu0
  %v258 = vadd.f32 0.0, %v257
  %v259 = vpop.f32.mrb[0].mxu0
  %260 = vmatprep.mubr.f32.mxu0 0.0
  %261 = vmatmul.mubr.f32.gmra.mrb[0].mxu0 %v83
  %v262 = vpop.f32.mrb[0].mxu0
  %v263 = vadd.f32 0.0, %v262
  %v264 = vpop.f32.mrb[0].mxu0
  %265 = vmatprep.mubr.f32.mxu0 0.0
  %266 = vmatmul.mubr.f32.gmra.mrb[0].mxu0 %v86
  %v267 = vpop.f32.mrb[0].mxu0
  %v268 = vadd.f32 0.0, %v267
  %v269 = vpop.f32.mrb[0].mxu0
  %270 = vmatprep.mubr.f32.mxu0 0.0
  %271 = vmatmul.mubr.f32.gmra.mrb[0].mxu0 %v89
  %v272 = vpop.f32.mrb[0].mxu0
  %v273 = vadd.f32 0.0, %v272
  %v274 = vpop.f32.mrb[0].mxu0
  %275 = vmatprep.mubr.f32.mxu0 0.0
  %276 = vmatmul.mubr.f32.gmra.mrb[0].mxu0 %v92
  %v277 = vpop.f32.mrb[0].mxu0
  %v278 = vadd.f32 0.0, %v277
  %v279 = vpop.f32.mrb[0].mxu0
  %280 = vmatprep.mubr.f32.mxu0 0.0
  %281 = vmatmul.mubr.f32.gmra.mrb[0].mxu0 %v95
  %v282 = vpop.f32.mrb[0].mxu0
  %v283 = vadd.f32 0.0, %v282
  %v284 = vpop.f32.mrb[0].mxu0
  %285 = vmatprep.mubr.f32.mxu0 0.0
  %286 = vmatmul.mubr.f32.gmra.mrb[0].mxu0 %v98
  %v287 = vpop.f32.mrb[0].mxu0
  %v288 = vadd.f32 0.0, %v287
  %v289 = vpop.f32.mrb[0].mxu0
  %290 = vmatprep.mubr.f32.mxu0 0.0
  %291 = vmatmul.mubr.f32.gmra.mrb[0].mxu0 %v101
  %v292 = vpop.f32.mrb[0].mxu0
  %v293 = vadd.f32 0.0, %v292
  %v294 = vpop.f32.mrb[0].mxu0
  %295 = vmatprep.mubr.f32.mxu0 0.0
  %296 = vmatmul.mubr.f32.gmra.mrb[0].mxu0 %v104
  %v297 = vpop.f32.mrb[0].mxu0
  %v298 = vadd.f32 0.0, %v297
  %v299 = vpop.f32.mrb[0].mxu0
  %300 = vmatprep.mubr.f32.mxu0 0.0
  %301 = vmatmul.mubr.f32.gmra.mrb[0].mxu0 %v107
  %v302 = vpop.f32.mrb[0].mxu0
  %v303 = vadd.f32 0.0, %v302
  %v304 = vpop.f32.mrb[0].mxu0
  %305 = vmatprep.mubr.f32.mxu0 0.0
  %306 = vmatmul.mubr.f32.gmra.mrb[0].mxu0 %v110
  %v307 = vpop.f32.mrb[0].mxu0
  %v308 = vadd.f32 0.0, %v307
  %v309 = vpop.f32.mrb[0].mxu0
  %310 = vmatprep.mubr.f32.mxu0 0.0
  %311 = vmatmul.mubr.f32.gmra.mrb[0].mxu0 %v113
  %v312 = vpop.f32.mrb[0].mxu0
  %v313 = vadd.f32 0.0, %v312
  %v314 = vpop.f32.mrb[0].mxu0
  %315 = vmatprep.mubr.f32.mxu0 0.0
  %316 = vmatmul.mubr.f32.gmra.mrb[0].mxu0 %v116
  %v317 = vpop.f32.mrb[0].mxu0
  %v318 = vadd.f32 0.0, %v317
  %v319 = vpop.f32.mrb[0].mxu0
  %320 = vmatprep.mubr.f32.mxu0 0.0
  %321 = vmatmul.mubr.f32.gmra.mrb[0].mxu0 %v119
  %v322 = vpop.f32.mrb[0].mxu0
  %v323 = vadd.f32 0.0, %v322
  %v324 = vpop.f32.mrb[0].mxu0
  %325 = vmatprep.mubr.f32.mxu0 0.0
  %326 = vmatmul.mubr.f32.gmra.mrb[0].mxu0 %v122
  %v327 = vpop.f32.mrb[0].mxu0
  %v328 = vadd.f32 0.0, %v327
  %v329 = vpop.f32.mrb[0].mxu0
  %330 = vmatprep.mubr.f32.mxu0 0.0
  %331 = vmatmul.mubr.f32.gmra.mrb[0].mxu0 %v125
  %v332 = vpop.f32.mrb[0].mxu0
  %v333 = vadd.f32 0.0, %v332
  %v334 = vpop.f32.mrb[0].mxu0
  %335 = vmatprep.mubr.f32.mxu0 0.0
  %336 = vmatmul.mubr.f32.gmra.mrb[0].mxu0 %v128
  %v337 = vpop.f32.mrb[0].mxu0
  %v338 = vadd.f32 0.0, %v337
  %v339 = vpop.f32.mrb[0].mxu0
  %340 = vmatprep.mubr.f32.mxu0 0.0
  %341 = vmatmul.mubr.f32.gmra.mrb[0].mxu0 %v131
  %v342 = vpop.f32.mrb[0].mxu0
  %v343 = vadd.f32 0.0, %v342
  %v344 = vpop.f32.mrb[0].mxu0
  %345 = vmatprep.mubr.f32.mxu0 0.0
  %346 = vmatmul.mubr.f32.gmra.mrb[0].mxu0 %v134
  %v347 = vpop.f32.mrb[0].mxu0
  %v348 = vadd.f32 0.0, %v347
  %v349 = vpop.f32.mrb[0].mxu0
  %350 = vmatprep.mubr.f32.mxu0 0.0
  %351 = vmatmul.mubr.f32.gmra.mrb[0].mxu0 %v137
  %v352 = vpop.f32.mrb[0].mxu0
  %v353 = vadd.f32 0.0, %v352
  %v354 = vpop.f32.mrb[0].mxu0
  %355 = vmatprep.mubr.f32.mxu0 0.0
  %356 = vmatmul.mubr.f32.gmra.mrb[0].mxu0 %v140
  %v357 = vpop.f32.mrb[0].mxu0
  %v358 = vadd.f32 0.0, %v357
  %v359 = vpop.f32.mrb[0].mxu0
  %360 = vmatprep.mubr.f32.mxu0 0.0
  %361 = vmatmul.mubr.f32.gmra.mrb[0].mxu0 %v143
  %v362 = vpop.f32.mrb[0].mxu0
  %v363 = vadd.f32 0.0, %v362
  %v364 = vpop.f32.mrb[0].mxu0
  %365 = vmatprep.mubr.f32.mxu0 0.0
  %366 = vmatmul.mubr.f32.gmra.mrb[0].mxu0 %v146
  %v367 = vpop.f32.mrb[0].mxu0
  %v368 = vadd.f32 0.0, %v367
  %v369 = vpop.f32.mrb[0].mxu0
  %370 = vmatprep.mubr.f32.mxu0 0.0
  %371 = vmatmul.mubr.f32.gmra.mrb[0].mxu0 %v149
  %v372 = vpop.f32.mrb[0].mxu0
  %v373 = vadd.f32 0.0, %v372
  %v374 = vpop.f32.mrb[0].mxu0
  %375 = vmatprep.mubr.f32.mxu0 0.0
  %376 = vmatmul.mubr.f32.gmra.mrb[0].mxu0 %v152
  %v377 = vpop.f32.mrb[0].mxu0
  %v378 = vadd.f32 0.0, %v377
  %v379 = vpop.f32.mrb[0].mxu0
  %380 = vmatprep.mubr.f32.mxu0 0.0
  %381 = vmatmul.mubr.f32.gmra.mrb[0].mxu0 %v155
  %v382 = vpop.f32.mrb[0].mxu0
  %v383 = vadd.f32 0.0, %v382
  %v384 = vpop.f32.mrb[0].mxu0
  %385 = vmatprep.mubr.f32.mxu0 0.0
  %386 = vmatmul.mubr.f32.gmra.mrb[0].mxu0 %v158
  %v387 = vpop.f32.mrb[0].mxu0
  %v388 = vadd.f32 0.0, %v387
  %v389 = vpop.f32.mrb[0].mxu0
  %390 = vmatprep.mubr.f32.mxu0 0.0
  %391 = vmatmul.mubr.f32.gmra.mrb[0].mxu0 %v161
  %v392 = vpop.f32.mrb[0].mxu0
  %v393 = vadd.f32 0.0, %v392
  %v394 = vpop.f32.mrb[0].mxu0
  %395 = vmatprep.mubr.f32.mxu0 0.0
  %396 = vmatmul.mubr.f32.gmra.mrb[0].mxu0 %v164
  %v397 = vpop.f32.mrb[0].mxu0
  %v398 = vadd.f32 0.0, %v397
  %v399 = vpop.f32.mrb[0].mxu0
  %400 = vmatprep.mubr.f32.mxu0 0.0
  %401 = vmatmul.mubr.f32.gmra.mrb[0].mxu0 %v167
  %v402 = vpop.f32.mrb[0].mxu0
  %v403 = vadd.f32 0.0, %v402
  %v404 = vpop.f32.mrb[0].mxu0
  %405 = vmatprep.mubr.f32.mxu0 0.0
  %406 = vmatmul.mubr.f32.gmra.mrb[0].mxu0 %v170
  %v407 = vpop.f32.mrb[0].mxu0
  %v408 = vadd.f32 0.0, %v407
  %v409 = vpop.f32.mrb[0].mxu0
  %410 = vmatprep.mubr.f32.mxu0 0.0
  %411 = vmatmul.mubr.f32.gmra.mrb[0].mxu0 %v173
  %v412 = vpop.f32.mrb[0].mxu0
  %v413 = vadd.f32 0.0, %v412
  %v414 = vpop.f32.mrb[0].mxu0
  %415 = vmatprep.mubr.f32.mxu0 0.0
  %416 = vmatmul.mubr.f32.gmra.mrb[0].mxu0 %v176
  %v417 = vpop.f32.mrb[0].mxu0
  %v418 = vadd.f32 0.0, %v417
  %v419 = vpop.f32.mrb[0].mxu0
  %420 = vmatprep.mubr.f32.mxu0 0.0
  %421 = vmatmul.mubr.f32.gmra.mrb[0].mxu0 %v179
  %v422 = vpop.f32.mrb[0].mxu0
  %v423 = vadd.f32 0.0, %v422
  %v424 = vpop.f32.mrb[0].mxu0
  %425 = vdwg.mxu0
  %426 = vrot.lane.b32.xlu0 %v248, 9
  %v427 = vpop.permute.xlu0 %426
  %428 = vrot.lane.b32.xlu0 %v253, 9
  %v429 = vpop.permute.xlu0 %428
  %430 = vrot.lane.b32.xlu0 %v258, 9
  %v431 = vpop.permute.xlu0 %430
  %432 = vrot.lane.b32.xlu0 %v263, 9
  %v433 = vpop.permute.xlu0 %432
  %v434 = vld [vmem:[%s4] sm:$0x1]
  %v435 = vlaneseq
  %v436 = vshrl.u32 %v435, 7
  %v437 = vsub.s32 0, %v436
  %v438 = vrot.slane %v434, %v437
  %v439 = vmul.f32 %v427, %v438
  %v440 = vmul.f32 %v429, %v438
  %v441 = vmul.f32 %v431, %v438
  %v442 = vmul.f32 %v433, %v438
  %443 = vrot.lane.b32.xlu0 %v268, 8
  %v444 = vpop.permute.xlu0 %443
  %445 = vrot.lane.b32.xlu0 %v273, 8
  %v446 = vpop.permute.xlu0 %445
  %447 = vrot.lane.b32.xlu0 %v278, 8
  %v448 = vpop.permute.xlu0 %447
  %449 = vrot.lane.b32.xlu0 %v283, 8
  %v450 = vpop.permute.xlu0 %449
  %v451 = vld [vmem:[%s4 + $0x1] sm:$0x1]
  %v452 = vlaneseq
  %v453 = vshrl.u32 %v452, 7
  %v454 = vsub.s32 0, %v453
  %v455 = vrot.slane %v451, %v454
  %v456 = vmul.f32 %v444, %v455
  %v457 = vmul.f32 %v446, %v455
  %v458 = vmul.f32 %v448, %v455
  %v459 = vmul.f32 %v450, %v455
  %v460 = vadd.f32 %v439, %v456
  %v461 = vadd.f32 %v440, %v457
  %v462 = vadd.f32 %v441, %v458
  %v463 = vadd.f32 %v442, %v459
  %464 = vrot.lane.b32.xlu0 %v288, 7
  %v465 = vpop.permute.xlu0 %464
  %466 = vrot.lane.b32.xlu0 %v293, 7
  %v467 = vpop.permute.xlu0 %466
  %468 = vrot.lane.b32.xlu0 %v298, 7
  %v469 = vpop.permute.xlu0 %468
  %470 = vrot.lane.b32.xlu0 %v303, 7
  %v471 = vpop.permute.xlu0 %470
  %v472 = vld [vmem:[%s4 + $0x2] sm:$0x1]
  %v473 = vlaneseq
  %v474 = vshrl.u32 %v473, 7
  %v475 = vsub.s32 0, %v474
  %v476 = vrot.slane %v472, %v475
  %v477 = vmul.f32 %v465, %v476
  %v478 = vmul.f32 %v467, %v476
  %v479 = vmul.f32 %v469, %v476
  %v480 = vmul.f32 %v471, %v476
  %v481 = vadd.f32 %v460, %v477
  %v482 = vadd.f32 %v461, %v478
  %v483 = vadd.f32 %v462, %v479
  %v484 = vadd.f32 %v463, %v480
  %485 = vrot.lane.b32.xlu0 %v308, 1
  %v486 = vpop.permute.xlu0 %485
  %487 = vrot.lane.b32.xlu0 %v313, 1
  %v488 = vpop.permute.xlu0 %487
  %489 = vrot.lane.b32.xlu0 %v318, 1
  %v490 = vpop.permute.xlu0 %489
  %491 = vrot.lane.b32.xlu0 %v323, 1
  %v492 = vpop.permute.xlu0 %491
  %v493 = vld [vmem:[%s4 + $0x3] sm:$0x1]
  %v494 = vlaneseq
  %v495 = vshrl.u32 %v494, 7
  %v496 = vsub.s32 0, %v495
  %v497 = vrot.slane %v493, %v496
  %v498 = vmul.f32 %v486, %v497
  %v499 = vmul.f32 %v488, %v497
  %v500 = vmul.f32 %v490, %v497
  %v501 = vmul.f32 %v492, %v497
  %v502 = vadd.f32 %v481, %v498
  %v503 = vadd.f32 %v482, %v499
  %v504 = vadd.f32 %v483, %v500
  %v505 = vadd.f32 %v484, %v501
  %v506 = vadd.f32 %v502, %v328
  %v507 = vadd.f32 %v503, %v333
  %v508 = vadd.f32 %v504, %v338
  %v509 = vadd.f32 %v505, %v343
  %510 = vrot.lane.b32.xlu0 %v348, 127
  %v511 = vpop.permute.xlu0 %510
  %512 = vrot.lane.b32.xlu0 %v353, 127
  %v513 = vpop.permute.xlu0 %512
  %514 = vrot.lane.b32.xlu0 %v358, 127
  %v515 = vpop.permute.xlu0 %514
  %516 = vrot.lane.b32.xlu0 %v363, 127
  %v517 = vpop.permute.xlu0 %516
  %v518 = vld [vmem:[%s4 + $0x5] sm:$0x1]
  %v519 = vlaneseq
  %v520 = vshrl.u32 %v519, 7
  %v521 = vsub.s32 0, %v520
  %v522 = vrot.slane %v518, %v521
  %v523 = vmul.f32 %v511, %v522
  %v524 = vmul.f32 %v513, %v522
  %v525 = vmul.f32 %v515, %v522
  %v526 = vmul.f32 %v517, %v522
  %v527 = vadd.f32 %v506, %v523
  %v528 = vadd.f32 %v507, %v524
  %v529 = vadd.f32 %v508, %v525
  %v530 = vadd.f32 %v509, %v526
  %531 = vrot.lane.b32.xlu0 %v368, 121
  %v532 = vpop.permute.xlu0 %531
  %533 = vrot.lane.b32.xlu0 %v373, 121
  %v534 = vpop.permute.xlu0 %533
  %535 = vrot.lane.b32.xlu0 %v378, 121
  %v536 = vpop.permute.xlu0 %535
  %537 = vrot.lane.b32.xlu0 %v383, 121
  %v538 = vpop.permute.xlu0 %537
  %v539 = vld [vmem:[%s4 + $0x6] sm:$0x1]
  %v540 = vlaneseq
  %v541 = vshrl.u32 %v540, 7
  %v542 = vsub.s32 0, %v541
  %v543 = vrot.slane %v539, %v542
  %v544 = vmul.f32 %v532, %v543
  %v545 = vmul.f32 %v534, %v543
  %v546 = vmul.f32 %v536, %v543
  %v547 = vmul.f32 %v538, %v543
  %v548 = vadd.f32 %v527, %v544
  %v549 = vadd.f32 %v528, %v545
  %v550 = vadd.f32 %v529, %v546
  %v551 = vadd.f32 %v530, %v547
  %552 = vrot.lane.b32.xlu0 %v388, 120
  %v553 = vpop.permute.xlu0 %552
  %554 = vrot.lane.b32.xlu0 %v393, 120
  %v555 = vpop.permute.xlu0 %554
  %556 = vrot.lane.b32.xlu0 %v398, 120
  %v557 = vpop.permute.xlu0 %556
  %558 = vrot.lane.b32.xlu0 %v403, 120
  %v559 = vpop.permute.xlu0 %558
  %v560 = vld [vmem:[%s4 + $0x7] sm:$0x1]
  %v561 = vlaneseq
  %v562 = vshrl.u32 %v561, 7
  %v563 = vsub.s32 0, %v562
  %v564 = vrot.slane %v560, %v563
  %v565 = vmul.f32 %v553, %v564
  %v566 = vmul.f32 %v555, %v564
  %v567 = vmul.f32 %v557, %v564
  %v568 = vmul.f32 %v559, %v564
  %v569 = vadd.f32 %v548, %v565
  %v570 = vadd.f32 %v549, %v566
  %v571 = vadd.f32 %v550, %v567
  %v572 = vadd.f32 %v551, %v568
  %573 = vrot.lane.b32.xlu0 %v408, 119
  %v574 = vpop.permute.xlu0 %573
  %575 = vrot.lane.b32.xlu0 %v413, 119
  %v576 = vpop.permute.xlu0 %575
  %577 = vrot.lane.b32.xlu0 %v418, 119
  %v578 = vpop.permute.xlu0 %577
  %579 = vrot.lane.b32.xlu0 %v423, 119
  %v580 = vpop.permute.xlu0 %579
  %v581 = vld [vmem:[%s4 + $0x8] sm:$0x1]
  %v582 = vlaneseq
  %v583 = vshrl.u32 %v582, 7
  %v584 = vsub.s32 0, %v583
  %v585 = vrot.slane %v581, %v584
  %v586 = vmul.f32 %v574, %v585
  %v587 = vmul.f32 %v576, %v585
  %v588 = vmul.f32 %v578, %v585
  %v589 = vmul.f32 %v580, %v585
  %v590 = vadd.f32 %v569, %v586
  %v591 = vadd.f32 %v570, %v587
  %v592 = vadd.f32 %v571, %v588
  %v593 = vadd.f32 %v572, %v589
  %v594 = vxor.u32 %v590, 2147483648
  %v595 = vmul.f32 %v594, 1.442695
  %v596 = vpow.pop %v595
  %v597 = vadd.f32 %v596, 1.0
  %v598 = vrcp.pop %v597
  %v599 = vmul.f32 1.0, %v598
  %v600 = vxor.u32 %v591, 2147483648
  %v601 = vmul.f32 %v600, 1.442695
  %v602 = vpow.pop %v601
  %v603 = vadd.f32 %v602, 1.0
  %v604 = vrcp.pop %v603
  %v605 = vmul.f32 1.0, %v604
  %v606 = vxor.u32 %v592, 2147483648
  %v607 = vmul.f32 %v606, 1.442695
  %v608 = vpow.pop %v607
  %v609 = vadd.f32 %v608, 1.0
  %v610 = vrcp.pop %v609
  %v611 = vmul.f32 1.0, %v610
  %v612 = vtanh.pop %v593
  %v613 = vld [vmem:[#allocation3] sm:$0xff]
  %v614 = vmul.f32 %v605, %v613
  %v615 = vmul.f32 %v599, %v612
  %v616 = vadd.f32 %v614, %v615
  %v617 = vtanh.pop %v616
  %v618 = vmul.f32 %v611, %v617
  %619 = vst [vmem:[#allocation3] sm:$0xff] %v616
  %620 = vst [vmem:[#allocation2] sm:$0xff] %v618
  %621 = vst [vmem:[%s5] sm:$0xff] %v618
  %s622 = scalar_lea.vmem %s0, 4
  %v623 = vld [vmem:[%s622] sm:$0xf]
  %624 = vst [vmem:[#allocation2 + $0x8] sm:$0xf] %v623
  %v625 = vld [vmem:[%s3] sm:$0xff]
  %v626 = vld [vmem:[%s3 + $0x8] sm:$0xff]
  %v627 = vld [vmem:[%s3 + $0x10] sm:$0xff]
  %v628 = vld [vmem:[%s3 + $0x18] sm:$0xff]
  %v629 = vld [vmem:[%s3 + $0x20] sm:$0xff]
  %v630 = vld [vmem:[%s3 + $0x28] sm:$0xff]
  %v631 = vld [vmem:[%s3 + $0x30] sm:$0xff]
  %v632 = vld [vmem:[%s3 + $0x38] sm:$0xff]
  %v633 = vld [vmem:[%s3 + $0x40] sm:$0xff]
  %v634 = vld [vmem:[%s3 + $0x48] sm:$0xff]
  %v635 = vld [vmem:[%s3 + $0x50] sm:$0xff]
  %v636 = vld [vmem:[%s3 + $0x58] sm:$0xff]
  %v637 = vld [vmem:[%s3 + $0x60] sm:$0xff]
  %v638 = vld [vmem:[%s3 + $0x68] sm:$0xff]
  %v639 = vld [vmem:[%s3 + $0x70] sm:$0xff]
  %v640 = vld [vmem:[%s3 + $0x78] sm:$0xff]
  %v641 = vld [vmem:[%s3 + $0x80] sm:$0xff]
  %v642 = vld [vmem:[%s3 + $0x88] sm:$0xff]
  %v643 = vld [vmem:[%s3 + $0x90] sm:$0xff]
  %v644 = vld [vmem:[%s3 + $0x98] sm:$0xff]
  %v645 = vld [vmem:[%s3 + $0xa0] sm:$0xff]
  %v646 = vld [vmem:[%s3 + $0xa8] sm:$0xff]
  %v647 = vld [vmem:[%s3 + $0xb0] sm:$0xff]
  %v648 = vld [vmem:[%s3 + $0xb8] sm:$0xff]
  %v649 = vld [vmem:[%s3 + $0xc0] sm:$0xff]
  %v650 = vld [vmem:[%s3 + $0xc8] sm:$0xff]
  %v651 = vld [vmem:[%s3 + $0xd0] sm:$0xff]
  %v652 = vld [vmem:[%s3 + $0xd8] sm:$0xff]
  %v653 = vld [vmem:[%s3 + $0xe0] sm:$0xff]
  %v654 = vld [vmem:[%s3 + $0xe8] sm:$0xff]
  %v655 = vld [vmem:[%s3 + $0xf0] sm:$0xff]
  %v656 = vld [vmem:[%s3 + $0xf8] sm:$0xff]
  %v657 = vld [vmem:[%s3 + $0x100] sm:$0xff]
  %v658 = vld [vmem:[%s3 + $0x108] sm:$0xff]
  %v659 = vld [vmem:[%s3 + $0x110] sm:$0xff]
  %v660 = vld [vmem:[%s3 + $0x118] sm:$0xff]
  %v661 = vld [vmem:[#allocation2] sm:$0xff]
  %v662 = vld [vmem:[#allocation2 + $0x8] sm:$0xff]
  %v664 = vsel %vm72, %v625, 0
  %v667 = vsel %vm72, %v626, 0
  %v670 = vsel %vm72, %v627, 0
  %v673 = vsel %vm72, %v628, 0
  %v676 = vsel %vm72, %v629, 0
  %v679 = vsel %vm72, %v630, 0
  %v682 = vsel %vm72, %v631, 0
  %v685 = vsel %vm72, %v632, 0
  %v688 = vsel %vm72, %v633, 0
  %v691 = vsel %vm72, %v634, 0
  %v694 = vsel %vm72, %v635, 0
  %v697 = vsel %vm72, %v636, 0
  %v700 = vsel %vm72, %v637, 0
  %v703 = vsel %vm72, %v638, 0
  %v706 = vsel %vm72, %v639, 0
  %v709 = vsel %vm72, %v640, 0
  %v712 = vsel %vm72, %v641, 0
  %v715 = vsel %vm72, %v642, 0
  %v718 = vsel %vm72, %v643, 0
  %v721 = vsel %vm72, %v644, 0
  %v724 = vsel %vm72, %v645, 0
  %v727 = vsel %vm72, %v646, 0
  %v730 = vsel %vm72, %v647, 0
  %v733 = vsel %vm72, %v648, 0
  %v736 = vsel %vm72, %v649, 0
  %v739 = vsel %vm72, %v650, 0
  %v742 = vsel %vm72, %v651, 0
  %v745 = vsel %vm72, %v652, 0
  %v748 = vsel %vm72, %v653, 0
  %v751 = vsel %vm72, %v654, 0
  %v754 = vsel %vm72, %v655, 0
  %v757 = vsel %vm72, %v656, 0
  %v760 = vsel %vm72, %v657, 0
  %v763 = vsel %vm72, %v658, 0
  %v766 = vsel %vm72, %v659, 0
  %v769 = vsel %vm72, %v660, 0
  %771 = vmatprep.subr.mxu0 0.0
  %772 = vmatpush1.msra.mxu0 %v661
  %773 = vmatprep.subr.mxu0 0.0
  %774 = vmatpush1.msra.mxu0 %v662
  %775 = vmatprep.subr.mxu0 0.0
  %776 = vmatpush1.msra.mxu0 0.0
  %777 = vmatprep.subr.mxu0 0.0
  %778 = vmatpush1.msra.mxu0 0.0
  %779 = vmatprep.subr.mxu0 0.0
  %780 = vmatpush1.msra.mxu0 0.0
  %781 = vmatprep.subr.mxu0 0.0
  %782 = vmatpush1.msra.mxu0 0.0
  %783 = vmatprep.subr.mxu0 0.0
  %784 = vmatpush1.msra.mxu0 0.0
  %785 = vmatprep.subr.mxu0 0.0
  %786 = vmatpush1.msra.mxu0 0.0
  %787 = vmatprep.subr.mxu0 0.0
  %788 = vmatpush1.msra.mxu0 0.0
  %789 = vmatprep.subr.mxu0 0.0
  %790 = vmatpush1.msra.mxu0 0.0
  %791 = vmatprep.subr.mxu0 0.0
  %792 = vmatpush1.msra.mxu0 0.0
  %793 = vmatprep.subr.mxu0 0.0
  %794 = vmatpush1.msra.mxu0 0.0
  %795 = vmatprep.subr.mxu0 0.0
  %796 = vmatpush1.msra.mxu0 0.0
  %797 = vmatprep.subr.mxu0 0.0
  %798 = vmatpush1.msra.mxu0 0.0
  %799 = vmatprep.subr.mxu0 0.0
  %800 = vmatpush1.msra.mxu0 0.0
  %801 = vmatprep.subr.mxu0 0.0
  %802 = vmatpush1.msra.mxu0 0.0
  %803 = vmatprep.subr.mxu0 0.0
  %804 = vmatpush1.msra.mxu0 0.0
  %805 = vmatprep.subr.mxu0 0.0
  %806 = vmatpush1.msra.mxu0 0.0
  %807 = vmatprep.subr.mxu0 0.0
  %808 = vmatpush1.msra.mxu0 0.0
  %809 = vmatprep.subr.mxu0 0.0
  %810 = vmatpush1.msra.mxu0 0.0
  %811 = vmatprep.subr.mxu0 0.0
  %812 = vmatpush1.msra.mxu0 0.0
  %813 = vmatprep.subr.mxu0 0.0
  %814 = vmatpush1.msra.mxu0 0.0
  %815 = vmatprep.subr.mxu0 0.0
  %816 = vmatpush1.msra.mxu0 0.0
  %817 = vmatprep.subr.mxu0 0.0
  %818 = vmatpush1.msra.mxu0 0.0
  %819 = vmatprep.subr.mxu0 0.0
  %820 = vmatpush1.msra.mxu0 0.0
  %821 = vmatprep.subr.mxu0 0.0
  %822 = vmatpush1.msra.mxu0 0.0
  %823 = vmatprep.subr.mxu0 0.0
  %824 = vmatpush1.msra.mxu0 0.0
  %825 = vmatprep.subr.mxu0 0.0
  %826 = vmatpush1.msra.mxu0 0.0
  %827 = vmatprep.subr.mxu0 0.0
  %828 = vmatpush1.msra.mxu0 0.0
  %829 = vmatprep.subr.mxu0 0.0
  %830 = vmatpush1.msra.mxu0 0.0
  %831 = vmatprep.subr.mxu0 0.0
  %832 = vmatpush1.msra.mxu0 0.0
  %833 = vmatprep.subr.mxu0 0.0
  %834 = vmatpush1.msra.mxu0 0.0
  %835 = vmatprep.mubr.f32.mxu0 0.0
  %836 = vmatmul.mubr.f32.gmra.mrb[0].mxu0 %v664
  %v837 = vpop.f32.mrb[0].mxu0
  %v838 = vadd.f32 0.0, %v837
  %v839 = vpop.f32.mrb[0].mxu0
  %840 = vmatprep.mubr.f32.mxu0 0.0
  %841 = vmatmul.mubr.f32.gmra.mrb[0].mxu0 %v667
  %v842 = vpop.f32.mrb[0].mxu0
  %v843 = vadd.f32 0.0, %v842
  %v844 = vpop.f32.mrb[0].mxu0
  %845 = vmatprep.mubr.f32.mxu0 0.0
  %846 = vmatmul.mubr.f32.gmra.mrb[0].mxu0 %v670
  %v847 = vpop.f32.mrb[0].mxu0
  %v848 = vadd.f32 0.0, %v847
  %v849 = vpop.f32.mrb[0].mxu0
  %850 = vmatprep.mubr.f32.mxu0 0.0
  %851 = vmatmul.mubr.f32.gmra.mrb[0].mxu0 %v673
  %v852 = vpop.f32.mrb[0].mxu0
  %v853 = vadd.f32 0.0, %v852
  %v854 = vpop.f32.mrb[0].mxu0
  %855 = vmatprep.mubr.f32.mxu0 0.0
  %856 = vmatmul.mubr.f32.gmra.mrb[0].mxu0 %v676
  %v857 = vpop.f32.mrb[0].mxu0
  %v858 = vadd.f32 0.0, %v857
  %v859 = vpop.f32.mrb[0].mxu0
  %860 = vmatprep.mubr.f32.mxu0 0.0
  %861 = vmatmul.mubr.f32.gmra.mrb[0].mxu0 %v679
  %v862 = vpop.f32.mrb[0].mxu0
  %v863 = vadd.f32 0.0, %v862
  %v864 = vpop.f32.mrb[0].mxu0
  %865 = vmatprep.mubr.f32.mxu0 0.0
  %866 = vmatmul.mubr.f32.gmra.mrb[0].mxu0 %v682
  %v867 = vpop.f32.mrb[0].mxu0
  %v868 = vadd.f32 0.0, %v867
  %v869 = vpop.f32.mrb[0].mxu0
  %870 = vmatprep.mubr.f32.mxu0 0.0
  %871 = vmatmul.mubr.f32.gmra.mrb[0].mxu0 %v685
  %v872 = vpop.f32.mrb[0].mxu0
  %v873 = vadd.f32 0.0, %v872
  %v874 = vpop.f32.mrb[0].mxu0
  %875 = vmatprep.mubr.f32.mxu0 0.0
  %876 = vmatmul.mubr.f32.gmra.mrb[0].mxu0 %v688
  %v877 = vpop.f32.mrb[0].mxu0
  %v878 = vadd.f32 0.0, %v877
  %v879 = vpop.f32.mrb[0].mxu0
  %880 = vmatprep.mubr.f32.mxu0 0.0
  %881 = vmatmul.mubr.f32.gmra.mrb[0].mxu0 %v691
  %v882 = vpop.f32.mrb[0].mxu0
  %v883 = vadd.f32 0.0, %v882
  %v884 = vpop.f32.mrb[0].mxu0
  %885 = vmatprep.mubr.f32.mxu0 0.0
  %886 = vmatmul.mubr.f32.gmra.mrb[0].mxu0 %v694
  %v887 = vpop.f32.mrb[0].mxu0
  %v888 = vadd.f32 0.0, %v887
  %v889 = vpop.f32.mrb[0].mxu0
  %890 = vmatprep.mubr.f32.mxu0 0.0
  %891 = vmatmul.mubr.f32.gmra.mrb[0].mxu0 %v697
  %v892 = vpop.f32.mrb[0].mxu0
  %v893 = vadd.f32 0.0, %v892
  %v894 = vpop.f32.mrb[0].mxu0
  %895 = vmatprep.mubr.f32.mxu0 0.0
  %896 = vmatmul.mubr.f32.gmra.mrb[0].mxu0 %v700
  %v897 = vpop.f32.mrb[0].mxu0
  %v898 = vadd.f32 0.0, %v897
  %v899 = vpop.f32.mrb[0].mxu0
  %900 = vmatprep.mubr.f32.mxu0 0.0
  %901 = vmatmul.mubr.f32.gmra.mrb[0].mxu0 %v703
  %v902 = vpop.f32.mrb[0].mxu0
  %v903 = vadd.f32 0.0, %v902
  %v904 = vpop.f32.mrb[0].mxu0
  %905 = vmatprep.mubr.f32.mxu0 0.0
  %906 = vmatmul.mubr.f32.gmra.mrb[0].mxu0 %v706
  %v907 = vpop.f32.mrb[0].mxu0
  %v908 = vadd.f32 0.0, %v907
  %v909 = vpop.f32.mrb[0].mxu0
  %910 = vmatprep.mubr.f32.mxu0 0.0
  %911 = vmatmul.mubr.f32.gmra.mrb[0].mxu0 %v709
  %v912 = vpop.f32.mrb[0].mxu0
  %v913 = vadd.f32 0.0, %v912
  %v914 = vpop.f32.mrb[0].mxu0
  %915 = vmatprep.mubr.f32.mxu0 0.0
  %916 = vmatmul.mubr.f32.gmra.mrb[0].mxu0 %v712
  %v917 = vpop.f32.mrb[0].mxu0
  %v918 = vadd.f32 0.0, %v917
  %v919 = vpop.f32.mrb[0].mxu0
  %920 = vmatprep.mubr.f32.mxu0 0.0
  %921 = vmatmul.mubr.f32.gmra.mrb[0].mxu0 %v715
  %v922 = vpop.f32.mrb[0].mxu0
  %v923 = vadd.f32 0.0, %v922
  %v924 = vpop.f32.mrb[0].mxu0
  %925 = vmatprep.mubr.f32.mxu0 0.0
  %926 = vmatmul.mubr.f32.gmra.mrb[0].mxu0 %v718
  %v927 = vpop.f32.mrb[0].mxu0
  %v928 = vadd.f32 0.0, %v927
  %v929 = vpop.f32.mrb[0].mxu0
  %930 = vmatprep.mubr.f32.mxu0 0.0
  %931 = vmatmul.mubr.f32.gmra.mrb[0].mxu0 %v721
  %v932 = vpop.f32.mrb[0].mxu0
  %v933 = vadd.f32 0.0, %v932
  %v934 = vpop.f32.mrb[0].mxu0
  %935 = vmatprep.mubr.f32.mxu0 0.0
  %936 = vmatmul.mubr.f32.gmra.mrb[0].mxu0 %v724
  %v937 = vpop.f32.mrb[0].mxu0
  %v938 = vadd.f32 0.0, %v937
  %v939 = vpop.f32.mrb[0].mxu0
  %940 = vmatprep.mubr.f32.mxu0 0.0
  %941 = vmatmul.mubr.f32.gmra.mrb[0].mxu0 %v727
  %v942 = vpop.f32.mrb[0].mxu0
  %v943 = vadd.f32 0.0, %v942
  %v944 = vpop.f32.mrb[0].mxu0
  %945 = vmatprep.mubr.f32.mxu0 0.0
  %946 = vmatmul.mubr.f32.gmra.mrb[0].mxu0 %v730
  %v947 = vpop.f32.mrb[0].mxu0
  %v948 = vadd.f32 0.0, %v947
  %v949 = vpop.f32.mrb[0].mxu0
  %950 = vmatprep.mubr.f32.mxu0 0.0
  %951 = vmatmul.mubr.f32.gmra.mrb[0].mxu0 %v733
  %v952 = vpop.f32.mrb[0].mxu0
  %v953 = vadd.f32 0.0, %v952
  %v954 = vpop.f32.mrb[0].mxu0
  %955 = vmatprep.mubr.f32.mxu0 0.0
  %956 = vmatmul.mubr.f32.gmra.mrb[0].mxu0 %v736
  %v957 = vpop.f32.mrb[0].mxu0
  %v958 = vadd.f32 0.0, %v957
  %v959 = vpop.f32.mrb[0].mxu0
  %960 = vmatprep.mubr.f32.mxu0 0.0
  %961 = vmatmul.mubr.f32.gmra.mrb[0].mxu0 %v739
  %v962 = vpop.f32.mrb[0].mxu0
  %v963 = vadd.f32 0.0, %v962
  %v964 = vpop.f32.mrb[0].mxu0
  %965 = vmatprep.mubr.f32.mxu0 0.0
  %966 = vmatmul.mubr.f32.gmra.mrb[0].mxu0 %v742
  %v967 = vpop.f32.mrb[0].mxu0
  %v968 = vadd.f32 0.0, %v967
  %v969 = vpop.f32.mrb[0].mxu0
  %970 = vmatprep.mubr.f32.mxu0 0.0
  %971 = vmatmul.mubr.f32.gmra.mrb[0].mxu0 %v745
  %v972 = vpop.f32.mrb[0].mxu0
  %v973 = vadd.f32 0.0, %v972
  %v974 = vpop.f32.mrb[0].mxu0
  %975 = vmatprep.mubr.f32.mxu0 0.0
  %976 = vmatmul.mubr.f32.gmra.mrb[0].mxu0 %v748
  %v977 = vpop.f32.mrb[0].mxu0
  %v978 = vadd.f32 0.0, %v977
  %v979 = vpop.f32.mrb[0].mxu0
  %980 = vmatprep.mubr.f32.mxu0 0.0
  %981 = vmatmul.mubr.f32.gmra.mrb[0].mxu0 %v751
  %v982 = vpop.f32.mrb[0].mxu0
  %v983 = vadd.f32 0.0, %v982
  %v984 = vpop.f32.mrb[0].mxu0
  %985 = vmatprep.mubr.f32.mxu0 0.0
  %986 = vmatmul.mubr.f32.gmra.mrb[0].mxu0 %v754
  %v987 = vpop.f32.mrb[0].mxu0
  %v988 = vadd.f32 0.0, %v987
  %v989 = vpop.f32.mrb[0].mxu0
  %990 = vmatprep.mubr.f32.mxu0 0.0
  %991 = vmatmul.mubr.f32.gmra.mrb[0].mxu0 %v757
  %v992 = vpop.f32.mrb[0].mxu0
  %v993 = vadd.f32 0.0, %v992
  %v994 = vpop.f32.mrb[0].mxu0
  %995 = vmatprep.mubr.f32.mxu0 0.0
  %996 = vmatmul.mubr.f32.gmra.mrb[0].mxu0 %v760
  %v997 = vpop.f32.mrb[0].mxu0
  %v998 = vadd.f32 0.0, %v997
  %v999 = vpop.f32.mrb[0].mxu0
  %1000 = vmatprep.mubr.f32.mxu0 0.0
  %1001 = vmatmul.mubr.f32.gmra.mrb[0].mxu0 %v763
  %v1002 = vpop.f32.mrb[0].mxu0
  %v1003 = vadd.f32 0.0, %v1002
  %v1004 = vpop.f32.mrb[0].mxu0
  %1005 = vmatprep.mubr.f32.mxu0 0.0
  %1006 = vmatmul.mubr.f32.gmra.mrb[0].mxu0 %v766
  %v1007 = vpop.f32.mrb[0].mxu0
  %v1008 = vadd.f32 0.0, %v1007
  %v1009 = vpop.f32.mrb[0].mxu0
  %1010 = vmatprep.mubr.f32.mxu0 0.0
  %1011 = vmatmul.mubr.f32.gmra.mrb[0].mxu0 %v769
  %v1012 = vpop.f32.mrb[0].mxu0
  %v1013 = vadd.f32 0.0, %v1012
  %v1014 = vpop.f32.mrb[0].mxu0
  %1015 = vdwg.mxu0
  %1016 = vrot.lane.b32.xlu0 %v838, 9
  %v1017 = vpop.permute.xlu0 %1016
  %1018 = vrot.lane.b32.xlu0 %v843, 9
  %v1019 = vpop.permute.xlu0 %1018
  %1020 = vrot.lane.b32.xlu0 %v848, 9
  %v1021 = vpop.permute.xlu0 %1020
  %1022 = vrot.lane.b32.xlu0 %v853, 9
  %v1023 = vpop.permute.xlu0 %1022
  %v1024 = vld [vmem:[%s4] sm:$0x1]
  %v1025 = vlaneseq
  %v1026 = vshrl.u32 %v1025, 7
  %v1027 = vsub.s32 0, %v1026
  %v1028 = vrot.slane %v1024, %v1027
  %v1029 = vmul.f32 %v1017, %v1028
  %v1030 = vmul.f32 %v1019, %v1028
  %v1031 = vmul.f32 %v1021, %v1028
  %v1032 = vmul.f32 %v1023, %v1028
  %1033 = vrot.lane.b32.xlu0 %v858, 8
  %v1034 = vpop.permute.xlu0 %1033
  %1035 = vrot.lane.b32.xlu0 %v863, 8
  %v1036 = vpop.permute.xlu0 %1035
  %1037 = vrot.lane.b32.xlu0 %v868, 8
  %v1038 = vpop.permute.xlu0 %1037
  %1039 = vrot.lane.b32.xlu0 %v873, 8
  %v1040 = vpop.permute.xlu0 %1039
  %v1041 = vld [vmem:[%s4 + $0x1] sm:$0x1]
  %v1042 = vlaneseq
  %v1043 = vshrl.u32 %v1042, 7
  %v1044 = vsub.s32 0, %v1043
  %v1045 = vrot.slane %v1041, %v1044
  %v1046 = vmul.f32 %v1034, %v1045
  %v1047 = vmul.f32 %v1036, %v1045
  %v1048 = vmul.f32 %v1038, %v1045
  %v1049 = vmul.f32 %v1040, %v1045
  %v1050 = vadd.f32 %v1029, %v1046
  %v1051 = vadd.f32 %v1030, %v1047
  %v1052 = vadd.f32 %v1031, %v1048
  %v1053 = vadd.f32 %v1032, %v1049
  %1054 = vrot.lane.b32.xlu0 %v878, 7
  %v1055 = vpop.permute.xlu0 %1054
  %1056 = vrot.lane.b32.xlu0 %v883, 7
  %v1057 = vpop.permute.xlu0 %1056
  %1058 = vrot.lane.b32.xlu0 %v888, 7
  %v1059 = vpop.permute.xlu0 %1058
  %1060 = vrot.lane.b32.xlu0 %v893, 7
  %v1061 = vpop.permute.xlu0 %1060
  %v1062 = vld [vmem:[%s4 + $0x2] sm:$0x1]
  %v1063 = vlaneseq
  %v1064 = vshrl.u32 %v1063, 7
  %v1065 = vsub.s32 0, %v1064
  %v1066 = vrot.slane %v1062, %v1065
  %v1067 = vmul.f32 %v1055, %v1066
  %v1068 = vmul.f32 %v1057, %v1066
  %v1069 = vmul.f32 %v1059, %v1066
  %v1070 = vmul.f32 %v1061, %v1066
  %v1071 = vadd.f32 %v1050, %v1067
  %v1072 = vadd.f32 %v1051, %v1068
  %v1073 = vadd.f32 %v1052, %v1069
  %v1074 = vadd.f32 %v1053, %v1070
  %1075 = vrot.lane.b32.xlu0 %v898, 1
  %v1076 = vpop.permute.xlu0 %1075
  %1077 = vrot.lane.b32.xlu0 %v903, 1
  %v1078 = vpop.permute.xlu0 %1077
  %1079 = vrot.lane.b32.xlu0 %v908, 1
  %v1080 = vpop.permute.xlu0 %1079
  %1081 = vrot.lane.b32.xlu0 %v913, 1
  %v1082 = vpop.permute.xlu0 %1081
  %v1083 = vld [vmem:[%s4 + $0x3] sm:$0x1]
  %v1084 = vlaneseq
  %v1085 = vshrl.u32 %v1084, 7
  %v1086 = vsub.s32 0, %v1085
  %v1087 = vrot.slane %v1083, %v1086
  %v1088 = vmul.f32 %v1076, %v1087
  %v1089 = vmul.f32 %v1078, %v1087
  %v1090 = vmul.f32 %v1080, %v1087
  %v1091 = vmul.f32 %v1082, %v1087
  %v1092 = vadd.f32 %v1071, %v1088
  %v1093 = vadd.f32 %v1072, %v1089
  %v1094 = vadd.f32 %v1073, %v1090
  %v1095 = vadd.f32 %v1074, %v1091
  %v1096 = vadd.f32 %v1092, %v918
  %v1097 = vadd.f32 %v1093, %v923
  %v1098 = vadd.f32 %v1094, %v928
  %v1099 = vadd.f32 %v1095, %v933
  %1100 = vrot.lane.b32.xlu0 %v938, 127
  %v1101 = vpop.permute.xlu0 %1100
  %1102 = vrot.lane.b32.xlu0 %v943, 127
  %v1103 = vpop.permute.xlu0 %1102
  %1104 = vrot.lane.b32.xlu0 %v948, 127
  %v1105 = vpop.permute.xlu0 %1104
  %1106 = vrot.lane.b32.xlu0 %v953, 127
  %v1107 = vpop.permute.xlu0 %1106
  %v1108 = vld [vmem:[%s4 + $0x5] sm:$0x1]
  %v1109 = vlaneseq
  %v1110 = vshrl.u32 %v1109, 7
  %v1111 = vsub.s32 0, %v1110
  %v1112 = vrot.slane %v1108, %v1111
  %v1113 = vmul.f32 %v1101, %v1112
  %v1114 = vmul.f32 %v1103, %v1112
  %v1115 = vmul.f32 %v1105, %v1112
  %v1116 = vmul.f32 %v1107, %v1112
  %v1117 = vadd.f32 %v1096, %v1113
  %v1118 = vadd.f32 %v1097, %v1114
  %v1119 = vadd.f32 %v1098, %v1115
  %v1120 = vadd.f32 %v1099, %v1116
  %1121 = vrot.lane.b32.xlu0 %v958, 121
  %v1122 = vpop.permute.xlu0 %1121
  %1123 = vrot.lane.b32.xlu0 %v963, 121
  %v1124 = vpop.permute.xlu0 %1123
  %1125 = vrot.lane.b32.xlu0 %v968, 121
  %v1126 = vpop.permute.xlu0 %1125
  %1127 = vrot.lane.b32.xlu0 %v973, 121
  %v1128 = vpop.permute.xlu0 %1127
  %v1129 = vld [vmem:[%s4 + $0x6] sm:$0x1]
  %v1130 = vlaneseq
  %v1131 = vshrl.u32 %v1130, 7
  %v1132 = vsub.s32 0, %v1131
  %v1133 = vrot.slane %v1129, %v1132
  %v1134 = vmul.f32 %v1122, %v1133
  %v1135 = vmul.f32 %v1124, %v1133
  %v1136 = vmul.f32 %v1126, %v1133
  %v1137 = vmul.f32 %v1128, %v1133
  %v1138 = vadd.f32 %v1117, %v1134
  %v1139 = vadd.f32 %v1118, %v1135
  %v1140 = vadd.f32 %v1119, %v1136
  %v1141 = vadd.f32 %v1120, %v1137
  %1142 = vrot.lane.b32.xlu0 %v978, 120
  %v1143 = vpop.permute.xlu0 %1142
  %1144 = vrot.lane.b32.xlu0 %v983, 120
  %v1145 = vpop.permute.xlu0 %1144
  %1146 = vrot.lane.b32.xlu0 %v988, 120
  %v1147 = vpop.permute.xlu0 %1146
  %1148 = vrot.lane.b32.xlu0 %v993, 120
  %v1149 = vpop.permute.xlu0 %1148
  %v1150 = vld [vmem:[%s4 + $0x7] sm:$0x1]
  %v1151 = vlaneseq
  %v1152 = vshrl.u32 %v1151, 7
  %v1153 = vsub.s32 0, %v1152
  %v1154 = vrot.slane %v1150, %v1153
  %v1155 = vmul.f32 %v1143, %v1154
  %v1156 = vmul.f32 %v1145, %v1154
  %v1157 = vmul.f32 %v1147, %v1154
  %v1158 = vmul.f32 %v1149, %v1154
  %v1159 = vadd.f32 %v1138, %v1155
  %v1160 = vadd.f32 %v1139, %v1156
  %v1161 = vadd.f32 %v1140, %v1157
  %v1162 = vadd.f32 %v1141, %v1158
  %1163 = vrot.lane.b32.xlu0 %v998, 119
  %v1164 = vpop.permute.xlu0 %1163
  %1165 = vrot.lane.b32.xlu0 %v1003, 119
  %v1166 = vpop.permute.xlu0 %1165
  %1167 = vrot.lane.b32.xlu0 %v1008, 119
  %v1168 = vpop.permute.xlu0 %1167
  %1169 = vrot.lane.b32.xlu0 %v1013, 119
  %v1170 = vpop.permute.xlu0 %1169
  %v1171 = vld [vmem:[%s4 + $0x8] sm:$0x1]
  %v1172 = vlaneseq
  %v1173 = vshrl.u32 %v1172, 7
  %v1174 = vsub.s32 0, %v1173
  %v1175 = vrot.slane %v1171, %v1174
  %v1176 = vmul.f32 %v1164, %v1175
  %v1177 = vmul.f32 %v1166, %v1175
  %v1178 = vmul.f32 %v1168, %v1175
  %v1179 = vmul.f32 %v1170, %v1175
  %v1180 = vadd.f32 %v1159, %v1176
  %v1181 = vadd.f32 %v1160, %v1177
  %v1182 = vadd.f32 %v1161, %v1178
  %v1183 = vadd.f32 %v1162, %v1179
  %v1184 = vxor.u32 %v1180, 2147483648
  %v1185 = vmul.f32 %v1184, 1.442695
  %v1186 = vpow.pop %v1185
  %v1187 = vadd.f32 %v1186, 1.0
  %v1188 = vrcp.pop %v1187
  %v1189 = vmul.f32 1.0, %v1188
  %v1190 = vxor.u32 %v1181, 2147483648
  %v1191 = vmul.f32 %v1190, 1.442695
  %v1192 = vpow.pop %v1191
  %v1193 = vadd.f32 %v1192, 1.0
  %v1194 = vrcp.pop %v1193
  %v1195 = vmul.f32 1.0, %v1194
  %v1196 = vxor.u32 %v1182, 2147483648
  %v1197 = vmul.f32 %v1196, 1.442695
  %v1198 = vpow.pop %v1197
  %v1199 = vadd.f32 %v1198, 1.0
  %v1200 = vrcp.pop %v1199
  %v1201 = vmul.f32 1.0, %v1200
  %v1202 = vtanh.pop %v1183
  %v1203 = vld [vmem:[#allocation3] sm:$0xff]
  %v1204 = vmul.f32 %v1195, %v1203
  %v1205 = vmul.f32 %v1189, %v1202
  %v1206 = vadd.f32 %v1204, %v1205
  %v1207 = vtanh.pop %v1206
  %v1208 = vmul.f32 %v1201, %v1207
  %1209 = vst [vmem:[#allocation3] sm:$0xff] %v1206
  %1210 = vst [vmem:[#allocation2] sm:$0xff] %v1208
  %s1211 = scalar_lea.vmem %s5, 8
  %1212 = vst [vmem:[%s1211] sm:$0xff] %v1208
  %s1213 = scalar_lea.vmem %s0, 8
  %v1214 = vld [vmem:[%s1213] sm:$0xf]
  %1215 = vst [vmem:[#allocation2 + $0x8] sm:$0xf] %v1214
  %v1216 = vld [vmem:[%s3] sm:$0xff]
  %v1217 = vld [vmem:[%s3 + $0x8] sm:$0xff]
  %v1218 = vld [vmem:[%s3 + $0x10] sm:$0xff]
  %v1219 = vld [vmem:[%s3 + $0x18] sm:$0xff]
  %v1220 = vld [vmem:[%s3 + $0x20] sm:$0xff]
  %v1221 = vld [vmem:[%s3 + $0x28] sm:$0xff]
  %v1222 = vld [vmem:[%s3 + $0x30] sm:$0xff]
  %v1223 = vld [vmem:[%s3 + $0x38] sm:$0xff]
  %v1224 = vld [vmem:[%s3 + $0x40] sm:$0xff]
  %v1225 = vld [vmem:[%s3 + $0x48] sm:$0xff]
  %v1226 = vld [vmem:[%s3 + $0x50] sm:$0xff]
  %v1227 = vld [vmem:[%s3 + $0x58] sm:$0xff]
  %v1228 = vld [vmem:[%s3 + $0x60] sm:$0xff]
  %v1229 = vld [vmem:[%s3 + $0x68] sm:$0xff]
  %v1230 = vld [vmem:[%s3 + $0x70] sm:$0xff]
  %v1231 = vld [vmem:[%s3 + $0x78] sm:$0xff]
  %v1232 = vld [vmem:[%s3 + $0x80] sm:$0xff]
  %v1233 = vld [vmem:[%s3 + $0x88] sm:$0xff]
  %v1234 = vld [vmem:[%s3 + $0x90] sm:$0xff]
  %v1235 = vld [vmem:[%s3 + $0x98] sm:$0xff]
  %v1236 = vld [vmem:[%s3 + $0xa0] sm:$0xff]
  %v1237 = vld [vmem:[%s3 + $0xa8] sm:$0xff]
  %v1238 = vld [vmem:[%s3 + $0xb0] sm:$0xff]
  %v1239 = vld [vmem:[%s3 + $0xb8] sm:$0xff]
  %v1240 = vld [vmem:[%s3 + $0xc0] sm:$0xff]
  %v1241 = vld [vmem:[%s3 + $0xc8] sm:$0xff]
  %v1242 = vld [vmem:[%s3 + $0xd0] sm:$0xff]
  %v1243 = vld [vmem:[%s3 + $0xd8] sm:$0xff]
  %v1244 = vld [vmem:[%s3 + $0xe0] sm:$0xff]
  %v1245 = vld [vmem:[%s3 + $0xe8] sm:$0xff]
  %v1246 = vld [vmem:[%s3 + $0xf0] sm:$0xff]
  %v1247 = vld [vmem:[%s3 + $0xf8] sm:$0xff]
  %v1248 = vld [vmem:[%s3 + $0x100] sm:$0xff]
  %v1249 = vld [vmem:[%s3 + $0x108] sm:$0xff]
  %v1250 = vld [vmem:[%s3 + $0x110] sm:$0xff]
  %v1251 = vld [vmem:[%s3 + $0x118] sm:$0xff]
  %v1252 = vld [vmem:[#allocation2] sm:$0xff]
  %v1253 = vld [vmem:[#allocation2 + $0x8] sm:$0xff]
  %v1255 = vsel %vm72, %v1216, 0
  %v1258 = vsel %vm72, %v1217, 0
  %v1261 = vsel %vm72, %v1218, 0
  %v1264 = vsel %vm72, %v1219, 0
  %v1267 = vsel %vm72, %v1220, 0
  %v1270 = vsel %vm72, %v1221, 0
  %v1273 = vsel %vm72, %v1222, 0
  %v1276 = vsel %vm72, %v1223, 0
  %v1279 = vsel %vm72, %v1224, 0
  %v1282 = vsel %vm72, %v1225, 0
  %v1285 = vsel %vm72, %v1226, 0
  %v1288 = vsel %vm72, %v1227, 0
  %v1291 = vsel %vm72, %v1228, 0
  %v1294 = vsel %vm72, %v1229, 0
  %v1297 = vsel %vm72, %v1230, 0
  %v1300 = vsel %vm72, %v1231, 0
  %v1303 = vsel %vm72, %v1232, 0
  %v1306 = vsel %vm72, %v1233, 0
  %v1309 = vsel %vm72, %v1234, 0
  %v1312 = vsel %vm72, %v1235, 0
  %v1315 = vsel %vm72, %v1236, 0
  %v1318 = vsel %vm72, %v1237, 0
  %v1321 = vsel %vm72, %v1238, 0
  %v1324 = vsel %vm72, %v1239, 0
  %v1327 = vsel %vm72, %v1240, 0
  %v1330 = vsel %vm72, %v1241, 0
  %v1333 = vsel %vm72, %v1242, 0
  %v1336 = vsel %vm72, %v1243, 0
  %v1339 = vsel %vm72, %v1244, 0
  %v1342 = vsel %vm72, %v1245, 0
  %v1345 = vsel %vm72, %v1246, 0
  %v1348 = vsel %vm72, %v1247, 0
  %v1351 = vsel %vm72, %v1248, 0
  %v1354 = vsel %vm72, %v1249, 0
  %v1357 = vsel %vm72, %v1250, 0
  %v1360 = vsel %vm72, %v1251, 0
  %1362 = vmatprep.subr.mxu0 0.0
  %1363 = vmatpush1.msra.mxu0 %v1252
  %1364 = vmatprep.subr.mxu0 0.0
  %1365 = vmatpush1.msra.mxu0 %v1253
  %1366 = vmatprep.subr.mxu0 0.0
  %1367 = vmatpush1.msra.mxu0 0.0
  %1368 = vmatprep.subr.mxu0 0.0
  %1369 = vmatpush1.msra.mxu0 0.0
  %1370 = vmatprep.subr.mxu0 0.0
  %1371 = vmatpush1.msra.mxu0 0.0
  %1372 = vmatprep.subr.mxu0 0.0
  %1373 = vmatpush1.msra.mxu0 0.0
  %1374 = vmatprep.subr.mxu0 0.0
  %1375 = vmatpush1.msra.mxu0 0.0
  %1376 = vmatprep.subr.mxu0 0.0
  %1377 = vmatpush1.msra.mxu0 0.0
  %1378 = vmatprep.subr.mxu0 0.0
  %1379 = vmatpush1.msra.mxu0 0.0
  %1380 = vmatprep.subr.mxu0 0.0
  %1381 = vmatpush1.msra.mxu0 0.0
  %1382 = vmatprep.subr.mxu0 0.0
  %1383 = vmatpush1.msra.mxu0 0.0
  %1384 = vmatprep.subr.mxu0 0.0
  %1385 = vmatpush1.msra.mxu0 0.0
  %1386 = vmatprep.subr.mxu0 0.0
  %1387 = vmatpush1.msra.mxu0 0.0
  %1388 = vmatprep.subr.mxu0 0.0
  %1389 = vmatpush1.msra.mxu0 0.0
  %1390 = vmatprep.subr.mxu0 0.0
  %1391 = vmatpush1.msra.mxu0 0.0
  %1392 = vmatprep.subr.mxu0 0.0
  %1393 = vmatpush1.msra.mxu0 0.0
  %1394 = vmatprep.subr.mxu0 0.0
  %1395 = vmatpush1.msra.mxu0 0.0
  %1396 = vmatprep.subr.mxu0 0.0
  %1397 = vmatpush1.msra.mxu0 0.0
  %1398 = vmatprep.subr.mxu0 0.0
  %1399 = vmatpush1.msra.mxu0 0.0
  %1400 = vmatprep.subr.mxu0 0.0
  %1401 = vmatpush1.msra.mxu0 0.0
  %1402 = vmatprep.subr.mxu0 0.0
  %1403 = vmatpush1.msra.mxu0 0.0
  %1404 = vmatprep.subr.mxu0 0.0
  %1405 = vmatpush1.msra.mxu0 0.0
  %1406 = vmatprep.subr.mxu0 0.0
  %1407 = vmatpush1.msra.mxu0 0.0
  %1408 = vmatprep.subr.mxu0 0.0
  %1409 = vmatpush1.msra.mxu0 0.0
  %1410 = vmatprep.subr.mxu0 0.0
  %1411 = vmatpush1.msra.mxu0 0.0
  %1412 = vmatprep.subr.mxu0 0.0
  %1413 = vmatpush1.msra.mxu0 0.0
  %1414 = vmatprep.subr.mxu0 0.0
  %1415 = vmatpush1.msra.mxu0 0.0
  %1416 = vmatprep.subr.mxu0 0.0
  %1417 = vmatpush1.msra.mxu0 0.0
  %1418 = vmatprep.subr.mxu0 0.0
  %1419 = vmatpush1.msra.mxu0 0.0
  %1420 = vmatprep.subr.mxu0 0.0
  %1421 = vmatpush1.msra.mxu0 0.0
  %1422 = vmatprep.subr.mxu0 0.0
  %1423 = vmatpush1.msra.mxu0 0.0
  %1424 = vmatprep.subr.mxu0 0.0
  %1425 = vmatpush1.msra.mxu0 0.0
  %1426 = vmatprep.mubr.f32.mxu0 0.0
  %1427 = vmatmul.mubr.f32.gmra.mrb[0].mxu0 %v1255
  %v1428 = vpop.f32.mrb[0].mxu0
  %v1429 = vadd.f32 0.0, %v1428
  %v1430 = vpop.f32.mrb[0].mxu0
  %1431 = vmatprep.mubr.f32.mxu0 0.0
  %1432 = vmatmul.mubr.f32.gmra.mrb[0].mxu0 %v1258
  %v1433 = vpop.f32.mrb[0].mxu0
  %v1434 = vadd.f32 0.0, %v1433
  %v1435 = vpop.f32.mrb[0].mxu0
  %1436 = vmatprep.mubr.f32.mxu0 0.0
  %1437 = vmatmul.mubr.f32.gmra.mrb[0].mxu0 %v1261
  %v1438 = vpop.f32.mrb[0].mxu0
  %v1439 = vadd.f32 0.0, %v1438
  %v1440 = vpop.f32.mrb[0].mxu0
  %1441 = vmatprep.mubr.f32.mxu0 0.0
  %1442 = vmatmul.mubr.f32.gmra.mrb[0].mxu0 %v1264
  %v1443 = vpop.f32.mrb[0].mxu0
  %v1444 = vadd.f32 0.0, %v1443
  %v1445 = vpop.f32.mrb[0].mxu0
  %1446 = vmatprep.mubr.f32.mxu0 0.0
  %1447 = vmatmul.mubr.f32.gmra.mrb[0].mxu0 %v1267
  %v1448 = vpop.f32.mrb[0].mxu0
  %v1449 = vadd.f32 0.0, %v1448
  %v1450 = vpop.f32.mrb[0].mxu0
  %1451 = vmatprep.mubr.f32.mxu0 0.0
  %1452 = vmatmul.mubr.f32.gmra.mrb[0].mxu0 %v1270
  %v1453 = vpop.f32.mrb[0].mxu0
  %v1454 = vadd.f32 0.0, %v1453
  %v1455 = vpop.f32.mrb[0].mxu0
  %1456 = vmatprep.mubr.f32.mxu0 0.0
  %1457 = vmatmul.mubr.f32.gmra.mrb[0].mxu0 %v1273
  %v1458 = vpop.f32.mrb[0].mxu0
  %v1459 = vadd.f32 0.0, %v1458
  %v1460 = vpop.f32.mrb[0].mxu0
  %1461 = vmatprep.mubr.f32.mxu0 0.0
  %1462 = vmatmul.mubr.f32.gmra.mrb[0].mxu0 %v1276
  %v1463 = vpop.f32.mrb[0].mxu0
  %v1464 = vadd.f32 0.0, %v1463
  %v1465 = vpop.f32.mrb[0].mxu0
  %1466 = vmatprep.mubr.f32.mxu0 0.0
  %1467 = vmatmul.mubr.f32.gmra.mrb[0].mxu0 %v1279
  %v1468 = vpop.f32.mrb[0].mxu0
  %v1469 = vadd.f32 0.0, %v1468
  %v1470 = vpop.f32.mrb[0].mxu0
  %1471 = vmatprep.mubr.f32.mxu0 0.0
  %1472 = vmatmul.mubr.f32.gmra.mrb[0].mxu0 %v1282
  %v1473 = vpop.f32.mrb[0].mxu0
  %v1474 = vadd.f32 0.0, %v1473
  %v1475 = vpop.f32.mrb[0].mxu0
  %1476 = vmatprep.mubr.f32.mxu0 0.0
  %1477 = vmatmul.mubr.f32.gmra.mrb[0].mxu0 %v1285
  %v1478 = vpop.f32.mrb[0].mxu0
  %v1479 = vadd.f32 0.0, %v1478
  %v1480 = vpop.f32.mrb[0].mxu0
  %1481 = vmatprep.mubr.f32.mxu0 0.0
  %1482 = vmatmul.mubr.f32.gmra.mrb[0].mxu0 %v1288
  %v1483 = vpop.f32.mrb[0].mxu0
  %v1484 = vadd.f32 0.0, %v1483
  %v1485 = vpop.f32.mrb[0].mxu0
  %1486 = vmatprep.mubr.f32.mxu0 0.0
  %1487 = vmatmul.mubr.f32.gmra.mrb[0].mxu0 %v1291
  %v1488 = vpop.f32.mrb[0].mxu0
  %v1489 = vadd.f32 0.0, %v1488
  %v1490 = vpop.f32.mrb[0].mxu0
  %1491 = vmatprep.mubr.f32.mxu0 0.0
  %1492 = vmatmul.mubr.f32.gmra.mrb[0].mxu0 %v1294
  %v1493 = vpop.f32.mrb[0].mxu0
  %v1494 = vadd.f32 0.0, %v1493
  %v1495 = vpop.f32.mrb[0].mxu0
  %1496 = vmatprep.mubr.f32.mxu0 0.0
  %1497 = vmatmul.mubr.f32.gmra.mrb[0].mxu0 %v1297
  %v1498 = vpop.f32.mrb[0].mxu0
  %v1499 = vadd.f32 0.0, %v1498
  %v1500 = vpop.f32.mrb[0].mxu0
  %1501 = vmatprep.mubr.f32.mxu0 0.0
  %1502 = vmatmul.mubr.f32.gmra.mrb[0].mxu0 %v1300
  %v1503 = vpop.f32.mrb[0].mxu0
  %v1504 = vadd.f32 0.0, %v1503
  %v1505 = vpop.f32.mrb[0].mxu0
  %1506 = vmatprep.mubr.f32.mxu0 0.0
  %1507 = vmatmul.mubr.f32.gmra.mrb[0].mxu0 %v1303
  %v1508 = vpop.f32.mrb[0].mxu0
  %v1509 = vadd.f32 0.0, %v1508
  %v1510 = vpop.f32.mrb[0].mxu0
  %1511 = vmatprep.mubr.f32.mxu0 0.0
  %1512 = vmatmul.mubr.f32.gmra.mrb[0].mxu0 %v1306
  %v1513 = vpop.f32.mrb[0].mxu0
  %v1514 = vadd.f32 0.0, %v1513
  %v1515 = vpop.f32.mrb[0].mxu0
  %1516 = vmatprep.mubr.f32.mxu0 0.0
  %1517 = vmatmul.mubr.f32.gmra.mrb[0].mxu0 %v1309
  %v1518 = vpop.f32.mrb[0].mxu0
  %v1519 = vadd.f32 0.0, %v1518
  %v1520 = vpop.f32.mrb[0].mxu0
  %1521 = vmatprep.mubr.f32.mxu0 0.0
  %1522 = vmatmul.mubr.f32.gmra.mrb[0].mxu0 %v1312
  %v1523 = vpop.f32.mrb[0].mxu0
  %v1524 = vadd.f32 0.0, %v1523
  %v1525 = vpop.f32.mrb[0].mxu0
  %1526 = vmatprep.mubr.f32.mxu0 0.0
  %1527 = vmatmul.mubr.f32.gmra.mrb[0].mxu0 %v1315
  %v1528 = vpop.f32.mrb[0].mxu0
  %v1529 = vadd.f32 0.0, %v1528
  %v1530 = vpop.f32.mrb[0].mxu0
  %1531 = vmatprep.mubr.f32.mxu0 0.0
  %1532 = vmatmul.mubr.f32.gmra.mrb[0].mxu0 %v1318
  %v1533 = vpop.f32.mrb[0].mxu0
  %v1534 = vadd.f32 0.0, %v1533
  %v1535 = vpop.f32.mrb[0].mxu0
  %1536 = vmatprep.mubr.f32.mxu0 0.0
  %1537 = vmatmul.mubr.f32.gmra.mrb[0].mxu0 %v1321
  %v1538 = vpop.f32.mrb[0].mxu0
  %v1539 = vadd.f32 0.0, %v1538
  %v1540 = vpop.f32.mrb[0].mxu0
  %1541 = vmatprep.mubr.f32.mxu0 0.0
  %1542 = vmatmul.mubr.f32.gmra.mrb[0].mxu0 %v1324
  %v1543 = vpop.f32.mrb[0].mxu0
  %v1544 = vadd.f32 0.0, %v1543
  %v1545 = vpop.f32.mrb[0].mxu0
  %1546 = vmatprep.mubr.f32.mxu0 0.0
  %1547 = vmatmul.mubr.f32.gmra.mrb[0].mxu0 %v1327
  %v1548 = vpop.f32.mrb[0].mxu0
  %v1549 = vadd.f32 0.0, %v1548
  %v1550 = vpop.f32.mrb[0].mxu0
  %1551 = vmatprep.mubr.f32.mxu0 0.0
  %1552 = vmatmul.mubr.f32.gmra.mrb[0].mxu0 %v1330
  %v1553 = vpop.f32.mrb[0].mxu0
  %v1554 = vadd.f32 0.0, %v1553
  %v1555 = vpop.f32.mrb[0].mxu0
  %1556 = vmatprep.mubr.f32.mxu0 0.0
  %1557 = vmatmul.mubr.f32.gmra.mrb[0].mxu0 %v1333
  %v1558 = vpop.f32.mrb[0].mxu0
  %v1559 = vadd.f32 0.0, %v1558
  %v1560 = vpop.f32.mrb[0].mxu0
  %1561 = vmatprep.mubr.f32.mxu0 0.0
  %1562 = vmatmul.mubr.f32.gmra.mrb[0].mxu0 %v1336
  %v1563 = vpop.f32.mrb[0].mxu0
  %v1564 = vadd.f32 0.0, %v1563
  %v1565 = vpop.f32.mrb[0].mxu0
  %1566 = vmatprep.mubr.f32.mxu0 0.0
  %1567 = vmatmul.mubr.f32.gmra.mrb[0].mxu0 %v1339
  %v1568 = vpop.f32.mrb[0].mxu0
  %v1569 = vadd.f32 0.0, %v1568
  %v1570 = vpop.f32.mrb[0].mxu0
  %1571 = vmatprep.mubr.f32.mxu0 0.0
  %1572 = vmatmul.mubr.f32.gmra.mrb[0].mxu0 %v1342
  %v1573 = vpop.f32.mrb[0].mxu0
  %v1574 = vadd.f32 0.0, %v1573
  %v1575 = vpop.f32.mrb[0].mxu0
  %1576 = vmatprep.mubr.f32.mxu0 0.0
  %1577 = vmatmul.mubr.f32.gmra.mrb[0].mxu0 %v1345
  %v1578 = vpop.f32.mrb[0].mxu0
  %v1579 = vadd.f32 0.0, %v1578
  %v1580 = vpop.f32.mrb[0].mxu0
  %1581 = vmatprep.mubr.f32.mxu0 0.0
  %1582 = vmatmul.mubr.f32.gmra.mrb[0].mxu0 %v1348
  %v1583 = vpop.f32.mrb[0].mxu0
  %v1584 = vadd.f32 0.0, %v1583
  %v1585 = vpop.f32.mrb[0].mxu0
  %1586 = vmatprep.mubr.f32.mxu0 0.0
  %1587 = vmatmul.mubr.f32.gmra.mrb[0].mxu0 %v1351
  %v1588 = vpop.f32.mrb[0].mxu0
  %v1589 = vadd.f32 0.0, %v1588
  %v1590 = vpop.f32.mrb[0].mxu0
  %1591 = vmatprep.mubr.f32.mxu0 0.0
  %1592 = vmatmul.mubr.f32.gmra.mrb[0].mxu0 %v1354
  %v1593 = vpop.f32.mrb[0].mxu0
  %v1594 = vadd.f32 0.0, %v1593
  %v1595 = vpop.f32.mrb[0].mxu0
  %1596 = vmatprep.mubr.f32.mxu0 0.0
  %1597 = vmatmul.mubr.f32.gmra.mrb[0].mxu0 %v1357
  %v1598 = vpop.f32.mrb[0].mxu0
  %v1599 = vadd.f32 0.0, %v1598
  %v1600 = vpop.f32.mrb[0].mxu0
  %1601 = vmatprep.mubr.f32.mxu0 0.0
  %1602 = vmatmul.mubr.f32.gmra.mrb[0].mxu0 %v1360
  %v1603 = vpop.f32.mrb[0].mxu0
  %v1604 = vadd.f32 0.0, %v1603
  %v1605 = vpop.f32.mrb[0].mxu0
  %1606 = vdwg.mxu0
  %1607 = vrot.lane.b32.xlu0 %v1429, 9
  %v1608 = vpop.permute.xlu0 %1607
  %1609 = vrot.lane.b32.xlu0 %v1434, 9
  %v1610 = vpop.permute.xlu0 %1609
  %1611 = vrot.lane.b32.xlu0 %v1439, 9
  %v1612 = vpop.permute.xlu0 %1611
  %1613 = vrot.lane.b32.xlu0 %v1444, 9
  %v1614 = vpop.permute.xlu0 %1613
  %v1615 = vld [vmem:[%s4] sm:$0x1]
  %v1616 = vlaneseq
  %v1617 = vshrl.u32 %v1616, 7
  %v1618 = vsub.s32 0, %v1617
  %v1619 = vrot.slane %v1615, %v1618
  %v1620 = vmul.f32 %v1608, %v1619
  %v1621 = vmul.f32 %v1610, %v1619
  %v1622 = vmul.f32 %v1612, %v1619
  %v1623 = vmul.f32 %v1614, %v1619
  %1624 = vrot.lane.b32.xlu0 %v1449, 8
  %v1625 = vpop.permute.xlu0 %1624
  %1626 = vrot.lane.b32.xlu0 %v1454, 8
  %v1627 = vpop.permute.xlu0 %1626
  %1628 = vrot.lane.b32.xlu0 %v1459, 8
  %v1629 = vpop.permute.xlu0 %1628
  %1630 = vrot.lane.b32.xlu0 %v1464, 8
  %v1631 = vpop.permute.xlu0 %1630
  %v1632 = vld [vmem:[%s4 + $0x1] sm:$0x1]
  %v1633 = vlaneseq
  %v1634 = vshrl.u32 %v1633, 7
  %v1635 = vsub.s32 0, %v1634
  %v1636 = vrot.slane %v1632, %v1635
  %v1637 = vmul.f32 %v1625, %v1636
  %v1638 = vmul.f32 %v1627, %v1636
  %v1639 = vmul.f32 %v1629, %v1636
  %v1640 = vmul.f32 %v1631, %v1636
  %v1641 = vadd.f32 %v1620, %v1637
  %v1642 = vadd.f32 %v1621, %v1638
  %v1643 = vadd.f32 %v1622, %v1639
  %v1644 = vadd.f32 %v1623, %v1640
  %1645 = vrot.lane.b32.xlu0 %v1469, 7
  %v1646 = vpop.permute.xlu0 %1645
  %1647 = vrot.lane.b32.xlu0 %v1474, 7
  %v1648 = vpop.permute.xlu0 %1647
  %1649 = vrot.lane.b32.xlu0 %v1479, 7
  %v1650 = vpop.permute.xlu0 %1649
  %1651 = vrot.lane.b32.xlu0 %v1484, 7
  %v1652 = vpop.permute.xlu0 %1651
  %v1653 = vld [vmem:[%s4 + $0x2] sm:$0x1]
  %v1654 = vlaneseq
  %v1655 = vshrl.u32 %v1654, 7
  %v1656 = vsub.s32 0, %v1655
  %v1657 = vrot.slane %v1653, %v1656
  %v1658 = vmul.f32 %v1646, %v1657
  %v1659 = vmul.f32 %v1648, %v1657
  %v1660 = vmul.f32 %v1650, %v1657
  %v1661 = vmul.f32 %v1652, %v1657
  %v1662 = vadd.f32 %v1641, %v1658
  %v1663 = vadd.f32 %v1642, %v1659
  %v1664 = vadd.f32 %v1643, %v1660
  %v1665 = vadd.f32 %v1644, %v1661
  %1666 = vrot.lane.b32.xlu0 %v1489, 1
  %v1667 = vpop.permute.xlu0 %1666
  %1668 = vrot.lane.b32.xlu0 %v1494, 1
  %v1669 = vpop.permute.xlu0 %1668
  %1670 = vrot.lane.b32.xlu0 %v1499, 1
  %v1671 = vpop.permute.xlu0 %1670
  %1672 = vrot.lane.b32.xlu0 %v1504, 1
  %v1673 = vpop.permute.xlu0 %1672
  %v1674 = vld [vmem:[%s4 + $0x3] sm:$0x1]
  %v1675 = vlaneseq
  %v1676 = vshrl.u32 %v1675, 7
  %v1677 = vsub.s32 0, %v1676
  %v1678 = vrot.slane %v1674, %v1677
  %v1679 = vmul.f32 %v1667, %v1678
  %v1680 = vmul.f32 %v1669, %v1678
  %v1681 = vmul.f32 %v1671, %v1678
  %v1682 = vmul.f32 %v1673, %v1678
  %v1683 = vadd.f32 %v1662, %v1679
  %v1684 = vadd.f32 %v1663, %v1680
  %v1685 = vadd.f32 %v1664, %v1681
  %v1686 = vadd.f32 %v1665, %v1682
  %v1687 = vadd.f32 %v1683, %v1509
  %v1688 = vadd.f32 %v1684, %v1514
  %v1689 = vadd.f32 %v1685, %v1519
  %v1690 = vadd.f32 %v1686, %v1524
  %1691 = vrot.lane.b32.xlu0 %v1529, 127
  %v1692 = vpop.permute.xlu0 %1691
  %1693 = vrot.lane.b32.xlu0 %v1534, 127
  %v1694 = vpop.permute.xlu0 %1693
  %1695 = vrot.lane.b32.xlu0 %v1539, 127
  %v1696 = vpop.permute.xlu0 %1695
  %1697 = vrot.lane.b32.xlu0 %v1544, 127
  %v1698 = vpop.permute.xlu0 %1697
  %v1699 = vld [vmem:[%s4 + $0x5] sm:$0x1]
  %v1700 = vlaneseq
  %v1701 = vshrl.u32 %v1700, 7
  %v1702 = vsub.s32 0, %v1701
  %v1703 = vrot.slane %v1699, %v1702
  %v1704 = vmul.f32 %v1692, %v1703
  %v1705 = vmul.f32 %v1694, %v1703
  %v1706 = vmul.f32 %v1696, %v1703
  %v1707 = vmul.f32 %v1698, %v1703
  %v1708 = vadd.f32 %v1687, %v1704
  %v1709 = vadd.f32 %v1688, %v1705
  %v1710 = vadd.f32 %v1689, %v1706
  %v1711 = vadd.f32 %v1690, %v1707
  %1712 = vrot.lane.b32.xlu0 %v1549, 121
  %v1713 = vpop.permute.xlu0 %1712
  %1714 = vrot.lane.b32.xlu0 %v1554, 121
  %v1715 = vpop.permute.xlu0 %1714
  %1716 = vrot.lane.b32.xlu0 %v1559, 121
  %v1717 = vpop.permute.xlu0 %1716
  %1718 = vrot.lane.b32.xlu0 %v1564, 121
  %v1719 = vpop.permute.xlu0 %1718
  %v1720 = vld [vmem:[%s4 + $0x6] sm:$0x1]
  %v1721 = vlaneseq
  %v1722 = vshrl.u32 %v1721, 7
  %v1723 = vsub.s32 0, %v1722
  %v1724 = vrot.slane %v1720, %v1723
  %v1725 = vmul.f32 %v1713, %v1724
  %v1726 = vmul.f32 %v1715, %v1724
  %v1727 = vmul.f32 %v1717, %v1724
  %v1728 = vmul.f32 %v1719, %v1724
  %v1729 = vadd.f32 %v1708, %v1725
  %v1730 = vadd.f32 %v1709, %v1726
  %v1731 = vadd.f32 %v1710, %v1727
  %v1732 = vadd.f32 %v1711, %v1728
  %1733 = vrot.lane.b32.xlu0 %v1569, 120
  %v1734 = vpop.permute.xlu0 %1733
  %1735 = vrot.lane.b32.xlu0 %v1574, 120
  %v1736 = vpop.permute.xlu0 %1735
  %1737 = vrot.lane.b32.xlu0 %v1579, 120
  %v1738 = vpop.permute.xlu0 %1737
  %1739 = vrot.lane.b32.xlu0 %v1584, 120
  %v1740 = vpop.permute.xlu0 %1739
  %v1741 = vld [vmem:[%s4 + $0x7] sm:$0x1]
  %v1742 = vlaneseq
  %v1743 = vshrl.u32 %v1742, 7
  %v1744 = vsub.s32 0, %v1743
  %v1745 = vrot.slane %v1741, %v1744
  %v1746 = vmul.f32 %v1734, %v1745
  %v1747 = vmul.f32 %v1736, %v1745
  %v1748 = vmul.f32 %v1738, %v1745
  %v1749 = vmul.f32 %v1740, %v1745
  %v1750 = vadd.f32 %v1729, %v1746
  %v1751 = vadd.f32 %v1730, %v1747
  %v1752 = vadd.f32 %v1731, %v1748
  %v1753 = vadd.f32 %v1732, %v1749
  %1754 = vrot.lane.b32.xlu0 %v1589, 119
  %v1755 = vpop.permute.xlu0 %1754
  %1756 = vrot.lane.b32.xlu0 %v1594, 119
  %v1757 = vpop.permute.xlu0 %1756
  %1758 = vrot.lane.b32.xlu0 %v1599, 119
  %v1759 = vpop.permute.xlu0 %1758
  %1760 = vrot.lane.b32.xlu0 %v1604, 119
  %v1761 = vpop.permute.xlu0 %1760
  %v1762 = vld [vmem:[%s4 + $0x8] sm:$0x1]
  %v1763 = vlaneseq
  %v1764 = vshrl.u32 %v1763, 7
  %v1765 = vsub.s32 0, %v1764
  %v1766 = vrot.slane %v1762, %v1765
  %v1767 = vmul.f32 %v1755, %v1766
  %v1768 = vmul.f32 %v1757, %v1766
  %v1769 = vmul.f32 %v1759, %v1766
  %v1770 = vmul.f32 %v1761, %v1766
  %v1771 = vadd.f32 %v1750, %v1767
  %v1772 = vadd.f32 %v1751, %v1768
  %v1773 = vadd.f32 %v1752, %v1769
  %v1774 = vadd.f32 %v1753, %v1770
  %v1775 = vxor.u32 %v1771, 2147483648
  %v1776 = vmul.f32 %v1775, 1.442695
  %v1777 = vpow.pop %v1776
  %v1778 = vadd.f32 %v1777, 1.0
  %v1779 = vrcp.pop %v1778
  %v1780 = vmul.f32 1.0, %v1779
  %v1781 = vxor.u32 %v1772, 2147483648
  %v1782 = vmul.f32 %v1781, 1.442695
  %v1783 = vpow.pop %v1782
  %v1784 = vadd.f32 %v1783, 1.0
  %v1785 = vrcp.pop %v1784
  %v1786 = vmul.f32 1.0, %v1785
  %v1787 = vxor.u32 %v1773, 2147483648
  %v1788 = vmul.f32 %v1787, 1.442695
  %v1789 = vpow.pop %v1788
  %v1790 = vadd.f32 %v1789, 1.0
  %v1791 = vrcp.pop %v1790
  %v1792 = vmul.f32 1.0, %v1791
  %v1793 = vtanh.pop %v1774
  %v1794 = vld [vmem:[#allocation3] sm:$0xff]
  %v1795 = vmul.f32 %v1786, %v1794
  %v1796 = vmul.f32 %v1780, %v1793
  %v1797 = vadd.f32 %v1795, %v1796
  %v1798 = vtanh.pop %v1797
  %v1799 = vmul.f32 %v1792, %v1798
  %1800 = vst [vmem:[#allocation3] sm:$0xff] %v1797
  %1801 = vst [vmem:[#allocation2] sm:$0xff] %v1799
  %s1802 = scalar_lea.vmem %s5, 16
  %1803 = vst [vmem:[%s1802] sm:$0xff] %v1799
  %s1804 = scalar_lea.vmem %s0, 12
  %v1805 = vld [vmem:[%s1804] sm:$0xf]
  %1806 = vst [vmem:[#allocation2 + $0x8] sm:$0xf] %v1805
  %v1807 = vld [vmem:[%s3] sm:$0xff]
  %v1808 = vld [vmem:[%s3 + $0x8] sm:$0xff]
  %v1809 = vld [vmem:[%s3 + $0x10] sm:$0xff]
  %v1810 = vld [vmem:[%s3 + $0x18] sm:$0xff]
  %v1811 = vld [vmem:[%s3 + $0x20] sm:$0xff]
  %v1812 = vld [vmem:[%s3 + $0x28] sm:$0xff]
  %v1813 = vld [vmem:[%s3 + $0x30] sm:$0xff]
  %v1814 = vld [vmem:[%s3 + $0x38] sm:$0xff]
  %v1815 = vld [vmem:[%s3 + $0x40] sm:$0xff]
  %v1816 = vld [vmem:[%s3 + $0x48] sm:$0xff]
  %v1817 = vld [vmem:[%s3 + $0x50] sm:$0xff]
  %v1818 = vld [vmem:[%s3 + $0x58] sm:$0xff]
  %v1819 = vld [vmem:[%s3 + $0x60] sm:$0xff]
  %v1820 = vld [vmem:[%s3 + $0x68] sm:$0xff]
  %v1821 = vld [vmem:[%s3 + $0x70] sm:$0xff]
  %v1822 = vld [vmem:[%s3 + $0x78] sm:$0xff]
  %v1823 = vld [vmem:[%s3 + $0x80] sm:$0xff]
  %v1824 = vld [vmem:[%s3 + $0x88] sm:$0xff]
  %v1825 = vld [vmem:[%s3 + $0x90] sm:$0xff]
  %v1826 = vld [vmem:[%s3 + $0x98] sm:$0xff]
  %v1827 = vld [vmem:[%s3 + $0xa0] sm:$0xff]
  %v1828 = vld [vmem:[%s3 + $0xa8] sm:$0xff]
  %v1829 = vld [vmem:[%s3 + $0xb0] sm:$0xff]
  %v1830 = vld [vmem:[%s3 + $0xb8] sm:$0xff]
  %v1831 = vld [vmem:[%s3 + $0xc0] sm:$0xff]
  %v1832 = vld [vmem:[%s3 + $0xc8] sm:$0xff]
  %v1833 = vld [vmem:[%s3 + $0xd0] sm:$0xff]
  %v1834 = vld [vmem:[%s3 + $0xd8] sm:$0xff]
  %v1835 = vld [vmem:[%s3 + $0xe0] sm:$0xff]
  %v1836 = vld [vmem:[%s3 + $0xe8] sm:$0xff]
  %v1837 = vld [vmem:[%s3 + $0xf0] sm:$0xff]
  %v1838 = vld [vmem:[%s3 + $0xf8] sm:$0xff]
  %v1839 = vld [vmem:[%s3 + $0x100] sm:$0xff]
  %v1840 = vld [vmem:[%s3 + $0x108] sm:$0xff]
  %v1841 = vld [vmem:[%s3 + $0x110] sm:$0xff]
  %v1842 = vld [vmem:[%s3 + $0x118] sm:$0xff]
  %v1843 = vld [vmem:[#allocation2] sm:$0xff]
  %v1844 = vld [vmem:[#allocation2 + $0x8] sm:$0xff]
  %v1846 = vsel %vm72, %v1807, 0
  %v1849 = vsel %vm72, %v1808, 0
  %v1852 = vsel %vm72, %v1809, 0
  %v1855 = vsel %vm72, %v1810, 0
  %v1858 = vsel %vm72, %v1811, 0
  %v1861 = vsel %vm72, %v1812, 0
  %v1864 = vsel %vm72, %v1813, 0
  %v1867 = vsel %vm72, %v1814, 0
  %v1870 = vsel %vm72, %v1815, 0
  %v1873 = vsel %vm72, %v1816, 0
  %v1876 = vsel %vm72, %v1817, 0
  %v1879 = vsel %vm72, %v1818, 0
  %v1882 = vsel %vm72, %v1819, 0
  %v1885 = vsel %vm72, %v1820, 0
  %v1888 = vsel %vm72, %v1821, 0
  %v1891 = vsel %vm72, %v1822, 0
  %v1894 = vsel %vm72, %v1823, 0
  %v1897 = vsel %vm72, %v1824, 0
  %v1900 = vsel %vm72, %v1825, 0
  %v1903 = vsel %vm72, %v1826, 0
  %v1906 = vsel %vm72, %v1827, 0
  %v1909 = vsel %vm72, %v1828, 0
  %v1912 = vsel %vm72, %v1829, 0
  %v1915 = vsel %vm72, %v1830, 0
  %v1918 = vsel %vm72, %v1831, 0
  %v1921 = vsel %vm72, %v1832, 0
  %v1924 = vsel %vm72, %v1833, 0
  %v1927 = vsel %vm72, %v1834, 0
  %v1930 = vsel %vm72, %v1835, 0
  %v1933 = vsel %vm72, %v1836, 0
  %v1936 = vsel %vm72, %v1837, 0
  %v1939 = vsel %vm72, %v1838, 0
  %v1942 = vsel %vm72, %v1839, 0
  %v1945 = vsel %vm72, %v1840, 0
  %v1948 = vsel %vm72, %v1841, 0
  %v1951 = vsel %vm72, %v1842, 0
  %1953 = vmatprep.subr.mxu0 0.0
  %1954 = vmatpush1.msra.mxu0 %v1843
  %1955 = vmatprep.subr.mxu0 0.0
  %1956 = vmatpush1.msra.mxu0 %v1844
  %1957 = vmatprep.subr.mxu0 0.0
  %1958 = vmatpush1.msra.mxu0 0.0
  %1959 = vmatprep.subr.mxu0 0.0
  %1960 = vmatpush1.msra.mxu0 0.0
  %1961 = vmatprep.subr.mxu0 0.0
  %1962 = vmatpush1.msra.mxu0 0.0
  %1963 = vmatprep.subr.mxu0 0.0
  %1964 = vmatpush1.msra.mxu0 0.0
  %1965 = vmatprep.subr.mxu0 0.0
  %1966 = vmatpush1.msra.mxu0 0.0
  %1967 = vmatprep.subr.mxu0 0.0
  %1968 = vmatpush1.msra.mxu0 0.0
  %1969 = vmatprep.subr.mxu0 0.0
  %1970 = vmatpush1.msra.mxu0 0.0
  %1971 = vmatprep.subr.mxu0 0.0
  %1972 = vmatpush1.msra.mxu0 0.0
  %1973 = vmatprep.subr.mxu0 0.0
  %1974 = vmatpush1.msra.mxu0 0.0
  %1975 = vmatprep.subr.mxu0 0.0
  %1976 = vmatpush1.msra.mxu0 0.0
  %1977 = vmatprep.subr.mxu0 0.0
  %1978 = vmatpush1.msra.mxu0 0.0
  %1979 = vmatprep.subr.mxu0 0.0
  %1980 = vmatpush1.msra.mxu0 0.0
  %1981 = vmatprep.subr.mxu0 0.0
  %1982 = vmatpush1.msra.mxu0 0.0
  %1983 = vmatprep.subr.mxu0 0.0
  %1984 = vmatpush1.msra.mxu0 0.0
  %1985 = vmatprep.subr.mxu0 0.0
  %1986 = vmatpush1.msra.mxu0 0.0
  %1987 = vmatprep.subr.mxu0 0.0
  %1988 = vmatpush1.msra.mxu0 0.0
  %1989 = vmatprep.subr.mxu0 0.0
  %1990 = vmatpush1.msra.mxu0 0.0
  %1991 = vmatprep.subr.mxu0 0.0
  %1992 = vmatpush1.msra.mxu0 0.0
  %1993 = vmatprep.subr.mxu0 0.0
  %1994 = vmatpush1.msra.mxu0 0.0
  %1995 = vmatprep.subr.mxu0 0.0
  %1996 = vmatpush1.msra.mxu0 0.0
  %1997 = vmatprep.subr.mxu0 0.0
  %1998 = vmatpush1.msra.mxu0 0.0
  %1999 = vmatprep.subr.mxu0 0.0
  %2000 = vmatpush1.msra.mxu0 0.0
  %2001 = vmatprep.subr.mxu0 0.0
  %2002 = vmatpush1.msra.mxu0 0.0
  %2003 = vmatprep.subr.mxu0 0.0
  %2004 = vmatpush1.msra.mxu0 0.0
  %2005 = vmatprep.subr.mxu0 0.0
  %2006 = vmatpush1.msra.mxu0 0.0
  %2007 = vmatprep.subr.mxu0 0.0
  %2008 = vmatpush1.msra.mxu0 0.0
  %2009 = vmatprep.subr.mxu0 0.0
  %2010 = vmatpush1.msra.mxu0 0.0
  %2011 = vmatprep.subr.mxu0 0.0
  %2012 = vmatpush1.msra.mxu0 0.0
  %2013 = vmatprep.subr.mxu0 0.0
  %2014 = vmatpush1.msra.mxu0 0.0
  %2015 = vmatprep.subr.mxu0 0.0
  %2016 = vmatpush1.msra.mxu0 0.0
  %2017 = vmatprep.mubr.f32.mxu0 0.0
  %2018 = vmatmul.mubr.f32.gmra.mrb[0].mxu0 %v1846
  %v2019 = vpop.f32.mrb[0].mxu0
  %v2020 = vadd.f32 0.0, %v2019
  %v2021 = vpop.f32.mrb[0].mxu0
  %2022 = vmatprep.mubr.f32.mxu0 0.0
  %2023 = vmatmul.mubr.f32.gmra.mrb[0].mxu0 %v1849
  %v2024 = vpop.f32.mrb[0].mxu0
  %v2025 = vadd.f32 0.0, %v2024
  %v2026 = vpop.f32.mrb[0].mxu0
  %2027 = vmatprep.mubr.f32.mxu0 0.0
  %2028 = vmatmul.mubr.f32.gmra.mrb[0].mxu0 %v1852
  %v2029 = vpop.f32.mrb[0].mxu0
  %v2030 = vadd.f32 0.0, %v2029
  %v2031 = vpop.f32.mrb[0].mxu0
  %2032 = vmatprep.mubr.f32.mxu0 0.0
  %2033 = vmatmul.mubr.f32.gmra.mrb[0].mxu0 %v1855
  %v2034 = vpop.f32.mrb[0].mxu0
  %v2035 = vadd.f32 0.0, %v2034
  %v2036 = vpop.f32.mrb[0].mxu0
  %2037 = vmatprep.mubr.f32.mxu0 0.0
  %2038 = vmatmul.mubr.f32.gmra.mrb[0].mxu0 %v1858
  %v2039 = vpop.f32.mrb[0].mxu0
  %v2040 = vadd.f32 0.0, %v2039
  %v2041 = vpop.f32.mrb[0].mxu0
  %2042 = vmatprep.mubr.f32.mxu0 0.0
  %2043 = vmatmul.mubr.f32.gmra.mrb[0].mxu0 %v1861
  %v2044 = vpop.f32.mrb[0].mxu0
  %v2045 = vadd.f32 0.0, %v2044
  %v2046 = vpop.f32.mrb[0].mxu0
  %2047 = vmatprep.mubr.f32.mxu0 0.0
  %2048 = vmatmul.mubr.f32.gmra.mrb[0].mxu0 %v1864
  %v2049 = vpop.f32.mrb[0].mxu0
  %v2050 = vadd.f32 0.0, %v2049
  %v2051 = vpop.f32.mrb[0].mxu0
  %2052 = vmatprep.mubr.f32.mxu0 0.0
  %2053 = vmatmul.mubr.f32.gmra.mrb[0].mxu0 %v1867
  %v2054 = vpop.f32.mrb[0].mxu0
  %v2055 = vadd.f32 0.0, %v2054
  %v2056 = vpop.f32.mrb[0].mxu0
  %2057 = vmatprep.mubr.f32.mxu0 0.0
  %2058 = vmatmul.mubr.f32.gmra.mrb[0].mxu0 %v1870
  %v2059 = vpop.f32.mrb[0].mxu0
  %v2060 = vadd.f32 0.0, %v2059
  %v2061 = vpop.f32.mrb[0].mxu0
  %2062 = vmatprep.mubr.f32.mxu0 0.0
  %2063 = vmatmul.mubr.f32.gmra.mrb[0].mxu0 %v1873
  %v2064 = vpop.f32.mrb[0].mxu0
  %v2065 = vadd.f32 0.0, %v2064
  %v2066 = vpop.f32.mrb[0].mxu0
  %2067 = vmatprep.mubr.f32.mxu0 0.0
  %2068 = vmatmul.mubr.f32.gmra.mrb[0].mxu0 %v1876
  %v2069 = vpop.f32.mrb[0].mxu0
  %v2070 = vadd.f32 0.0, %v2069
  %v2071 = vpop.f32.mrb[0].mxu0
  %2072 = vmatprep.mubr.f32.mxu0 0.0
  %2073 = vmatmul.mubr.f32.gmra.mrb[0].mxu0 %v1879
  %v2074 = vpop.f32.mrb[0].mxu0
  %v2075 = vadd.f32 0.0, %v2074
  %v2076 = vpop.f32.mrb[0].mxu0
  %2077 = vmatprep.mubr.f32.mxu0 0.0
  %2078 = vmatmul.mubr.f32.gmra.mrb[0].mxu0 %v1882
  %v2079 = vpop.f32.mrb[0].mxu0
  %v2080 = vadd.f32 0.0, %v2079
  %v2081 = vpop.f32.mrb[0].mxu0
  %2082 = vmatprep.mubr.f32.mxu0 0.0
  %2083 = vmatmul.mubr.f32.gmra.mrb[0].mxu0 %v1885
  %v2084 = vpop.f32.mrb[0].mxu0
  %v2085 = vadd.f32 0.0, %v2084
  %v2086 = vpop.f32.mrb[0].mxu0
  %2087 = vmatprep.mubr.f32.mxu0 0.0
  %2088 = vmatmul.mubr.f32.gmra.mrb[0].mxu0 %v1888
  %v2089 = vpop.f32.mrb[0].mxu0
  %v2090 = vadd.f32 0.0, %v2089
  %v2091 = vpop.f32.mrb[0].mxu0
  %2092 = vmatprep.mubr.f32.mxu0 0.0
  %2093 = vmatmul.mubr.f32.gmra.mrb[0].mxu0 %v1891
  %v2094 = vpop.f32.mrb[0].mxu0
  %v2095 = vadd.f32 0.0, %v2094
  %v2096 = vpop.f32.mrb[0].mxu0
  %2097 = vmatprep.mubr.f32.mxu0 0.0
  %2098 = vmatmul.mubr.f32.gmra.mrb[0].mxu0 %v1894
  %v2099 = vpop.f32.mrb[0].mxu0
  %v2100 = vadd.f32 0.0, %v2099
  %v2101 = vpop.f32.mrb[0].mxu0
  %2102 = vmatprep.mubr.f32.mxu0 0.0
  %2103 = vmatmul.mubr.f32.gmra.mrb[0].mxu0 %v1897
  %v2104 = vpop.f32.mrb[0].mxu0
  %v2105 = vadd.f32 0.0, %v2104
  %v2106 = vpop.f32.mrb[0].mxu0
  %2107 = vmatprep.mubr.f32.mxu0 0.0
  %2108 = vmatmul.mubr.f32.gmra.mrb[0].mxu0 %v1900
  %v2109 = vpop.f32.mrb[0].mxu0
  %v2110 = vadd.f32 0.0, %v2109
  %v2111 = vpop.f32.mrb[0].mxu0
  %2112 = vmatprep.mubr.f32.mxu0 0.0
  %2113 = vmatmul.mubr.f32.gmra.mrb[0].mxu0 %v1903
  %v2114 = vpop.f32.mrb[0].mxu0
  %v2115 = vadd.f32 0.0, %v2114
  %v2116 = vpop.f32.mrb[0].mxu0
  %2117 = vmatprep.mubr.f32.mxu0 0.0
  %2118 = vmatmul.mubr.f32.gmra.mrb[0].mxu0 %v1906
  %v2119 = vpop.f32.mrb[0].mxu0
  %v2120 = vadd.f32 0.0, %v2119
  %v2121 = vpop.f32.mrb[0].mxu0
  %2122 = vmatprep.mubr.f32.mxu0 0.0
  %2123 = vmatmul.mubr.f32.gmra.mrb[0].mxu0 %v1909
  %v2124 = vpop.f32.mrb[0].mxu0
  %v2125 = vadd.f32 0.0, %v2124
  %v2126 = vpop.f32.mrb[0].mxu0
  %2127 = vmatprep.mubr.f32.mxu0 0.0
  %2128 = vmatmul.mubr.f32.gmra.mrb[0].mxu0 %v1912
  %v2129 = vpop.f32.mrb[0].mxu0
  %v2130 = vadd.f32 0.0, %v2129
  %v2131 = vpop.f32.mrb[0].mxu0
  %2132 = vmatprep.mubr.f32.mxu0 0.0
  %2133 = vmatmul.mubr.f32.gmra.mrb[0].mxu0 %v1915
  %v2134 = vpop.f32.mrb[0].mxu0
  %v2135 = vadd.f32 0.0, %v2134
  %v2136 = vpop.f32.mrb[0].mxu0
  %2137 = vmatprep.mubr.f32.mxu0 0.0
  %2138 = vmatmul.mubr.f32.gmra.mrb[0].mxu0 %v1918
  %v2139 = vpop.f32.mrb[0].mxu0
  %v2140 = vadd.f32 0.0, %v2139
  %v2141 = vpop.f32.mrb[0].mxu0
  %2142 = vmatprep.mubr.f32.mxu0 0.0
  %2143 = vmatmul.mubr.f32.gmra.mrb[0].mxu0 %v1921
  %v2144 = vpop.f32.mrb[0].mxu0
  %v2145 = vadd.f32 0.0, %v2144
  %v2146 = vpop.f32.mrb[0].mxu0
  %2147 = vmatprep.mubr.f32.mxu0 0.0
  %2148 = vmatmul.mubr.f32.gmra.mrb[0].mxu0 %v1924
  %v2149 = vpop.f32.mrb[0].mxu0
  %v2150 = vadd.f32 0.0, %v2149
  %v2151 = vpop.f32.mrb[0].mxu0
  %2152 = vmatprep.mubr.f32.mxu0 0.0
  %2153 = vmatmul.mubr.f32.gmra.mrb[0].mxu0 %v1927
  %v2154 = vpop.f32.mrb[0].mxu0
  %v2155 = vadd.f32 0.0, %v2154
  %v2156 = vpop.f32.mrb[0].mxu0
  %2157 = vmatprep.mubr.f32.mxu0 0.0
  %2158 = vmatmul.mubr.f32.gmra.mrb[0].mxu0 %v1930
  %v2159 = vpop.f32.mrb[0].mxu0
  %v2160 = vadd.f32 0.0, %v2159
  %v2161 = vpop.f32.mrb[0].mxu0
  %2162 = vmatprep.mubr.f32.mxu0 0.0
  %2163 = vmatmul.mubr.f32.gmra.mrb[0].mxu0 %v1933
  %v2164 = vpop.f32.mrb[0].mxu0
  %v2165 = vadd.f32 0.0, %v2164
  %v2166 = vpop.f32.mrb[0].mxu0
  %2167 = vmatprep.mubr.f32.mxu0 0.0
  %2168 = vmatmul.mubr.f32.gmra.mrb[0].mxu0 %v1936
  %v2169 = vpop.f32.mrb[0].mxu0
  %v2170 = vadd.f32 0.0, %v2169
  %v2171 = vpop.f32.mrb[0].mxu0
  %2172 = vmatprep.mubr.f32.mxu0 0.0
  %2173 = vmatmul.mubr.f32.gmra.mrb[0].mxu0 %v1939
  %v2174 = vpop.f32.mrb[0].mxu0
  %v2175 = vadd.f32 0.0, %v2174
  %v2176 = vpop.f32.mrb[0].mxu0
  %2177 = vmatprep.mubr.f32.mxu0 0.0
  %2178 = vmatmul.mubr.f32.gmra.mrb[0].mxu0 %v1942
  %v2179 = vpop.f32.mrb[0].mxu0
  %v2180 = vadd.f32 0.0, %v2179
  %v2181 = vpop.f32.mrb[0].mxu0
  %2182 = vmatprep.mubr.f32.mxu0 0.0
  %2183 = vmatmul.mubr.f32.gmra.mrb[0].mxu0 %v1945
  %v2184 = vpop.f32.mrb[0].mxu0
  %v2185 = vadd.f32 0.0, %v2184
  %v2186 = vpop.f32.mrb[0].mxu0
  %2187 = vmatprep.mubr.f32.mxu0 0.0
  %2188 = vmatmul.mubr.f32.gmra.mrb[0].mxu0 %v1948
  %v2189 = vpop.f32.mrb[0].mxu0
  %v2190 = vadd.f32 0.0, %v2189
  %v2191 = vpop.f32.mrb[0].mxu0
  %2192 = vmatprep.mubr.f32.mxu0 0.0
  %2193 = vmatmul.mubr.f32.gmra.mrb[0].mxu0 %v1951
  %v2194 = vpop.f32.mrb[0].mxu0
  %v2195 = vadd.f32 0.0, %v2194
  %v2196 = vpop.f32.mrb[0].mxu0
  %2197 = vdwg.mxu0
  %2198 = vrot.lane.b32.xlu0 %v2020, 9
  %v2199 = vpop.permute.xlu0 %2198
  %2200 = vrot.lane.b32.xlu0 %v2025, 9
  %v2201 = vpop.permute.xlu0 %2200
  %2202 = vrot.lane.b32.xlu0 %v2030, 9
  %v2203 = vpop.permute.xlu0 %2202
  %2204 = vrot.lane.b32.xlu0 %v2035, 9
  %v2205 = vpop.permute.xlu0 %2204
  %v2206 = vld [vmem:[%s4] sm:$0x1]
  %v2207 = vlaneseq
  %v2208 = vshrl.u32 %v2207, 7
  %v2209 = vsub.s32 0, %v2208
  %v2210 = vrot.slane %v2206, %v2209
  %v2211 = vmul.f32 %v2199, %v2210
  %v2212 = vmul.f32 %v2201, %v2210
  %v2213 = vmul.f32 %v2203, %v2210
  %v2214 = vmul.f32 %v2205, %v2210
  %2215 = vrot.lane.b32.xlu0 %v2040, 8
  %v2216 = vpop.permute.xlu0 %2215
  %2217 = vrot.lane.b32.xlu0 %v2045, 8
  %v2218 = vpop.permute.xlu0 %2217
  %2219 = vrot.lane.b32.xlu0 %v2050, 8
  %v2220 = vpop.permute.xlu0 %2219
  %2221 = vrot.lane.b32.xlu0 %v2055, 8
  %v2222 = vpop.permute.xlu0 %2221
  %v2223 = vld [vmem:[%s4 + $0x1] sm:$0x1]
  %v2224 = vlaneseq
  %v2225 = vshrl.u32 %v2224, 7
  %v2226 = vsub.s32 0, %v2225
  %v2227 = vrot.slane %v2223, %v2226
  %v2228 = vmul.f32 %v2216, %v2227
  %v2229 = vmul.f32 %v2218, %v2227
  %v2230 = vmul.f32 %v2220, %v2227
  %v2231 = vmul.f32 %v2222, %v2227
  %v2232 = vadd.f32 %v2211, %v2228
  %v2233 = vadd.f32 %v2212, %v2229
  %v2234 = vadd.f32 %v2213, %v2230
  %v2235 = vadd.f32 %v2214, %v2231
  %2236 = vrot.lane.b32.xlu0 %v2060, 7
  %v2237 = vpop.permute.xlu0 %2236
  %2238 = vrot.lane.b32.xlu0 %v2065, 7
  %v2239 = vpop.permute.xlu0 %2238
  %2240 = vrot.lane.b32.xlu0 %v2070, 7
  %v2241 = vpop.permute.xlu0 %2240
  %2242 = vrot.lane.b32.xlu0 %v2075, 7
  %v2243 = vpop.permute.xlu0 %2242
  %v2244 = vld [vmem:[%s4 + $0x2] sm:$0x1]
  %v2245 = vlaneseq
  %v2246 = vshrl.u32 %v2245, 7
  %v2247 = vsub.s32 0, %v2246
  %v2248 = vrot.slane %v2244, %v2247
  %v2249 = vmul.f32 %v2237, %v2248
  %v2250 = vmul.f32 %v2239, %v2248
  %v2251 = vmul.f32 %v2241, %v2248
  %v2252 = vmul.f32 %v2243, %v2248
  %v2253 = vadd.f32 %v2232, %v2249
  %v2254 = vadd.f32 %v2233, %v2250
  %v2255 = vadd.f32 %v2234, %v2251
  %v2256 = vadd.f32 %v2235, %v2252
  %2257 = vrot.lane.b32.xlu0 %v2080, 1
  %v2258 = vpop.permute.xlu0 %2257
  %2259 = vrot.lane.b32.xlu0 %v2085, 1
  %v2260 = vpop.permute.xlu0 %2259
  %2261 = vrot.lane.b32.xlu0 %v2090, 1
  %v2262 = vpop.permute.xlu0 %2261
  %2263 = vrot.lane.b32.xlu0 %v2095, 1
  %v2264 = vpop.permute.xlu0 %2263
  %v2265 = vld [vmem:[%s4 + $0x3] sm:$0x1]
  %v2266 = vlaneseq
  %v2267 = vshrl.u32 %v2266, 7
  %v2268 = vsub.s32 0, %v2267
  %v2269 = vrot.slane %v2265, %v2268
  %v2270 = vmul.f32 %v2258, %v2269
  %v2271 = vmul.f32 %v2260, %v2269
  %v2272 = vmul.f32 %v2262, %v2269
  %v2273 = vmul.f32 %v2264, %v2269
  %v2274 = vadd.f32 %v2253, %v2270
  %v2275 = vadd.f32 %v2254, %v2271
  %v2276 = vadd.f32 %v2255, %v2272
  %v2277 = vadd.f32 %v2256, %v2273
  %v2278 = vadd.f32 %v2274, %v2100
  %v2279 = vadd.f32 %v2275, %v2105
  %v2280 = vadd.f32 %v2276, %v2110
  %v2281 = vadd.f32 %v2277, %v2115
  %2282 = vrot.lane.b32.xlu0 %v2120, 127
  %v2283 = vpop.permute.xlu0 %2282
  %2284 = vrot.lane.b32.xlu0 %v2125, 127
  %v2285 = vpop.permute.xlu0 %2284
  %2286 = vrot.lane.b32.xlu0 %v2130, 127
  %v2287 = vpop.permute.xlu0 %2286
  %2288 = vrot.lane.b32.xlu0 %v2135, 127
  %v2289 = vpop.permute.xlu0 %2288
  %v2290 = vld [vmem:[%s4 + $0x5] sm:$0x1]
  %v2291 = vlaneseq
  %v2292 = vshrl.u32 %v2291, 7
  %v2293 = vsub.s32 0, %v2292
  %v2294 = vrot.slane %v2290, %v2293
  %v2295 = vmul.f32 %v2283, %v2294
  %v2296 = vmul.f32 %v2285, %v2294
  %v2297 = vmul.f32 %v2287, %v2294
  %v2298 = vmul.f32 %v2289, %v2294
  %v2299 = vadd.f32 %v2278, %v2295
  %v2300 = vadd.f32 %v2279, %v2296
  %v2301 = vadd.f32 %v2280, %v2297
  %v2302 = vadd.f32 %v2281, %v2298
  %2303 = vrot.lane.b32.xlu0 %v2140, 121
  %v2304 = vpop.permute.xlu0 %2303
  %2305 = vrot.lane.b32.xlu0 %v2145, 121
  %v2306 = vpop.permute.xlu0 %2305
  %2307 = vrot.lane.b32.xlu0 %v2150, 121
  %v2308 = vpop.permute.xlu0 %2307
  %2309 = vrot.lane.b32.xlu0 %v2155, 121
  %v2310 = vpop.permute.xlu0 %2309
  %v2311 = vld [vmem:[%s4 + $0x6] sm:$0x1]
  %v2312 = vlaneseq
  %v2313 = vshrl.u32 %v2312, 7
  %v2314 = vsub.s32 0, %v2313
  %v2315 = vrot.slane %v2311, %v2314
  %v2316 = vmul.f32 %v2304, %v2315
  %v2317 = vmul.f32 %v2306, %v2315
  %v2318 = vmul.f32 %v2308, %v2315
  %v2319 = vmul.f32 %v2310, %v2315
  %v2320 = vadd.f32 %v2299, %v2316
  %v2321 = vadd.f32 %v2300, %v2317
  %v2322 = vadd.f32 %v2301, %v2318
  %v2323 = vadd.f32 %v2302, %v2319
  %2324 = vrot.lane.b32.xlu0 %v2160, 120
  %v2325 = vpop.permute.xlu0 %2324
  %2326 = vrot.lane.b32.xlu0 %v2165, 120
  %v2327 = vpop.permute.xlu0 %2326
  %2328 = vrot.lane.b32.xlu0 %v2170, 120
  %v2329 = vpop.permute.xlu0 %2328
  %2330 = vrot.lane.b32.xlu0 %v2175, 120
  %v2331 = vpop.permute.xlu0 %2330
  %v2332 = vld [vmem:[%s4 + $0x7] sm:$0x1]
  %v2333 = vlaneseq
  %v2334 = vshrl.u32 %v2333, 7
  %v2335 = vsub.s32 0, %v2334
  %v2336 = vrot.slane %v2332, %v2335
  %v2337 = vmul.f32 %v2325, %v2336
  %v2338 = vmul.f32 %v2327, %v2336
  %v2339 = vmul.f32 %v2329, %v2336
  %v2340 = vmul.f32 %v2331, %v2336
  %v2341 = vadd.f32 %v2320, %v2337
  %v2342 = vadd.f32 %v2321, %v2338
  %v2343 = vadd.f32 %v2322, %v2339
  %v2344 = vadd.f32 %v2323, %v2340
  %2345 = vrot.lane.b32.xlu0 %v2180, 119
  %v2346 = vpop.permute.xlu0 %2345
  %2347 = vrot.lane.b32.xlu0 %v2185, 119
  %v2348 = vpop.permute.xlu0 %2347
  %2349 = vrot.lane.b32.xlu0 %v2190, 119
  %v2350 = vpop.permute.xlu0 %2349
  %2351 = vrot.lane.b32.xlu0 %v2195, 119
  %v2352 = vpop.permute.xlu0 %2351
  %v2353 = vld [vmem:[%s4 + $0x8] sm:$0x1]
  %v2354 = vlaneseq
  %v2355 = vshrl.u32 %v2354, 7
  %v2356 = vsub.s32 0, %v2355
  %v2357 = vrot.slane %v2353, %v2356
  %v2358 = vmul.f32 %v2346, %v2357
  %v2359 = vmul.f32 %v2348, %v2357
  %v2360 = vmul.f32 %v2350, %v2357
  %v2361 = vmul.f32 %v2352, %v2357
  %v2362 = vadd.f32 %v2341, %v2358
  %v2363 = vadd.f32 %v2342, %v2359
  %v2364 = vadd.f32 %v2343, %v2360
  %v2365 = vadd.f32 %v2344, %v2361
  %v2366 = vxor.u32 %v2362, 2147483648
  %v2367 = vmul.f32 %v2366, 1.442695
  %v2368 = vpow.pop %v2367
  %v2369 = vadd.f32 %v2368, 1.0
  %v2370 = vrcp.pop %v2369
  %v2371 = vmul.f32 1.0, %v2370
  %v2372 = vxor.u32 %v2363, 2147483648
  %v2373 = vmul.f32 %v2372, 1.442695
  %v2374 = vpow.pop %v2373
  %v2375 = vadd.f32 %v2374, 1.0
  %v2376 = vrcp.pop %v2375
  %v2377 = vmul.f32 1.0, %v2376
  %v2378 = vxor.u32 %v2364, 2147483648
  %v2379 = vmul.f32 %v2378, 1.442695
  %v2380 = vpow.pop %v2379
  %v2381 = vadd.f32 %v2380, 1.0
  %v2382 = vrcp.pop %v2381
  %v2383 = vmul.f32 1.0, %v2382
  %v2384 = vtanh.pop %v2365
  %v2385 = vld [vmem:[#allocation3] sm:$0xff]
  %v2386 = vmul.f32 %v2377, %v2385
  %v2387 = vmul.f32 %v2371, %v2384
  %v2388 = vadd.f32 %v2386, %v2387
  %v2389 = vtanh.pop %v2388
  %v2390 = vmul.f32 %v2383, %v2389
  %2391 = vst [vmem:[#allocation3] sm:$0xff] %v2388
  %2392 = vst [vmem:[#allocation2] sm:$0xff] %v2390
  %s2393 = scalar_lea.vmem %s5, 24
  %2394 = vst [vmem:[%s2393] sm:$0xff] %v2390
  // Predicated region
  $region26: #{_lambda_.1} parent=0 // pred_check
    %p2395 = pneg %p22
  $region27: #{_lambda_.1} parent=0 // pred_check_branch
    %2397 = sbr.rel (%p2395) target = $region29
  $region28: #{_lambda_.1} parent=0 // pred_region
    %2398 = vst [vmem:[%s6] sm:$0xff] %v2388
  $region29: #{_lambda_.1} parent=0 // pred_fallthru
    _
  // Predicated region
  $region30: #{_lambda_.1} parent=0 // pred_check
    _
  $region31: #{_lambda_.1} parent=0 // pred_check_branch
    %2400 = sbr.rel (0) target = $region33
  $region32: #{_lambda_.1} parent=0 // pred_region
    _
  $region33: #{_lambda_.1} parent=0 // pred_fallthru
    _
  // Predicated region
  $region34: #{_lambda_.1} parent=0 // pred_check
    _
  $region35: #{_lambda_.1} parent=0 // pred_check_branch
    %2402 = sbr.rel (0) target = $region37
  $region36: #{_lambda_.1} parent=0 // pred_region
    _
  $region37: #{_lambda_.1} parent=0 // pred_fallthru
    _
  // Predicated region
  $region38: #{_lambda_.1} parent=0 // pred_check
    _
  $region39: #{_lambda_.1} parent=0 // pred_check_branch
    %2404 = sbr.rel (0) target = $region41
  $region40: #{_lambda_.1} parent=0 // pred_region
    _
  $region41: #{_lambda_.1} parent=0 // pred_fallthru
    _
  // Predicated region
  $region42: #{_lambda_.1} parent=0 // pred_check
    _
  $region43: #{_lambda_.1} parent=0 // pred_check_branch
    %2406 = sbr.rel (0) target = $region45
  $region44: #{_lambda_.1} parent=0 // pred_region
    _
  $region45: #{_lambda_.1} parent=0 // pred_fallthru
    _

</llo_original>
